<compile_context>
chip_gen: v7x
topology: tpu7x:2x2x1
jax: 0.10.0
libtpu: 0.0.40
codegen_flags: <defaults>
</compile_context>

<pallas_src>
import functools

import jax
import jax.numpy as jnp
from jax.experimental import pallas as pl
from jax.experimental.pallas import tpu as pltpu

H1 = 128
H2 = 64


def _mlp_kernel(x_ref, w1_ref, b1_ref, w2_ref, b2_ref, w3_ref, b3_ref, o_ref):
    # Layer 1: [TB, in_dim] @ [in_dim, 128] on the MXU, f32 accumulate.
    h1 = jnp.dot(x_ref[...], w1_ref[...], preferred_element_type=jnp.float32)
    h1 = jnp.maximum(h1 + b1_ref[...], 0.0)            # (TB, 128) + (1, 128)
    # Dropout(0.2) -> identity in eval mode.
    # TODO(synk): training-mode stochastic dropout not implemented (inference only).

    # Layer 2: [TB, 128] @ [128, 64] on the MXU, f32 accumulate.
    h2 = jnp.dot(h1.astype(w2_ref.dtype), w2_ref[...],
                 preferred_element_type=jnp.float32)
    h2 = jnp.maximum(h2 + b2_ref[...], 0.0)             # (TB, 64) + (1, 64)
    # Dropout(0.2) -> identity in eval mode.

    # Layer 3 (out_features = 1): keep it off the MXU.  VPU multiply + lane
    # reduction; b3 comes from SMEM as a scalar.  Result is written as a
    # lane-dense (1, 1, TB) row.
    out = jnp.sum(h2 * w3_ref[...], axis=-1) + b3_ref[0]   # (TB,)
    o_ref[...] = out.astype(o_ref.dtype)[None, None, :]


@functools.partial(jax.jit, static_argnames=("block_b", "compute_dtype"))
def mlp_regressor_forward(x, params, *, block_b=256, compute_dtype=jnp.bfloat16):
    """x: [B, in_dim] float32 -> [B] float32 (matches MLPRegressor.forward)."""
    w1, b1, w2, b2, w3, b3 = params
    B, in_dim = x.shape

    # Tile size is independent of the batch size: pad the batch up to a
    # multiple of block_b; padded rows are computed and discarded.
    # (On v7x pick block_b so that B // block_b >= 2 to use both TensorCores.)
    num_tiles = pl.cdiv(B, block_b)
    b_pad = num_tiles * block_b
    if b_pad != B:
        x = jnp.pad(x, ((0, b_pad - B), (0, 0)))

    # bf16 feeds for the MXU (v6e/v7x fast path); accumulation stays f32.
    x_c = x.astype(compute_dtype)
    w1_c = w1.astype(compute_dtype)
    w2_c = w2.astype(compute_dtype)
    w3_row = w3.reshape(1, H2).astype(jnp.float32)   # used on the VPU in f32
    b3_s = b3.reshape((1,)).astype(jnp.float32)      # scalar via SMEM

    out = pl.pallas_call(
        _mlp_kernel,
        out_shape=jax.ShapeDtypeStruct((num_tiles, 1, block_b), jnp.float32),
        grid_spec=pltpu.PrefetchScalarGridSpec(
            num_scalar_prefetch=0,
            grid=(num_tiles,),
            in_specs=[
                # x: tile over the batch.
                pl.BlockSpec((block_b, in_dim), lambda i: (i, 0)),
                # weights / biases: full arrays, same block every iteration.
                pl.BlockSpec((in_dim, H1), lambda i: (0, 0)),
                pl.BlockSpec((1, H1), lambda i: (0, 0)),
                pl.BlockSpec((H1, H2), lambda i: (0, 0)),
                pl.BlockSpec((1, H2), lambda i: (0, 0)),
                pl.BlockSpec((1, H2), lambda i: (0, 0)),
                # b3: single scalar -> SMEM (no padded VMEM block / DMA).
                pl.BlockSpec(memory_space=pltpu.MemorySpace.SMEM),
            ],
            # Lane-dense output block: last dim = block_b (multiple of 128).
            out_specs=pl.BlockSpec((1, 1, block_b), lambda i: (i, 0, 0)),
        ),
        compiler_params=pltpu.CompilerParams(
            dimension_semantics=("parallel",),
            vmem_limit_bytes=32 * 1024 * 1024,
        ),
    )(x_c, w1_c, b1, w2_c, b2, w3_row, b3_s)

    return out.reshape(b_pad)[:B]   # squeeze(-1) + drop batch padding


def init_params(in_dim, key):
    """Deterministic parameter init (PyTorch-Linear-like uniform fan-in scaling)."""
    ks = jax.random.split(key, 6)

    def lin(kw, kb, fan_in, fan_out):
        bound = 1.0 / jnp.sqrt(float(fan_in))
        w = jax.random.uniform(kw, (fan_in, fan_out), jnp.float32, -bound, bound)
        b = jax.random.uniform(kb, (1, fan_out), jnp.float32, -bound, bound)
        return w, b

    w1, b1 = lin(ks[0], ks[1], in_dim, H1)
    w2, b2 = lin(ks[2], ks[3], H1, H2)
    w3, b3 = lin(ks[4], ks[5], H2, 1)
    return (w1, b1, w2, b2, w3, b3)


def reference_forward(x, params):
    """Pure-JAX reference for correctness check."""
    w1, b1, w2, b2, w3, b3 = params
    h1 = jnp.maximum(x @ w1 + b1, 0.0)
    h2 = jnp.maximum(h1 @ w2 + b2, 0.0)
    return (h2 @ w3 + b3)[:, 0]


if __name__ == "__main__":
    key = jax.random.PRNGKey(0)
    k_x, k_p = jax.random.split(key)

    B, in_dim = 8, 32
    x = jax.random.normal(k_x, (B, in_dim), jnp.float32)
    params = init_params(in_dim, k_p)
    y_ref = reference_forward(x, params)

    # f32 compute path: tight correctness check (batch padding + lane-dense
    # output layout exercised; block_b > B).
    y_f32 = mlp_regressor_forward(x, params, block_b=256,
                                  compute_dtype=jnp.float32)
    y_f32 = jax.block_until_ready(y_f32)
    assert y_f32.shape == (B,), y_f32.shape
    assert jnp.allclose(y_f32, y_ref, atol=1e-4, rtol=1e-4), (y_f32, y_ref)

    # bf16 fast path (v6e/v7x MXU): looser tolerance, as expected for bf16 inputs.
    y_bf16 = mlp_regressor_forward(x, params, block_b=256,
                                   compute_dtype=jnp.bfloat16)
    y_bf16 = jax.block_until_ready(y_bf16)
    assert y_bf16.shape == (B,), y_bf16.shape
    assert jnp.allclose(y_bf16, y_ref, atol=5e-2, rtol=5e-2), (y_bf16, y_ref)

    print("KERNEL_OK")
</pallas_src>

<mosaic_0001>
module attributes {stable_mosaic.version = 11 : i64} {
  func.func @_mlp_kernel(%arg0: i32, %arg1: memref<256x32xf32, #tpu.memory_space<vmem>>, %arg2: memref<32x128xf32, #tpu.memory_space<vmem>>, %arg3: memref<1x128xf32, #tpu.memory_space<vmem>>, %arg4: memref<128x64xf32, #tpu.memory_space<vmem>>, %arg5: memref<1x64xf32, #tpu.memory_space<vmem>>, %arg6: memref<1x64xf32, #tpu.memory_space<vmem>>, %arg7: memref<1xf32, #tpu.memory_space<smem>>, %arg8: memref<1x1x256xf32, #tpu.memory_space<vmem>>) attributes {dimension_semantics = [#tpu.dimension_semantics<parallel>], iteration_bounds = array<i64: 1>, scalar_prefetch = 0 : i64, scratch_operands = 0 : i64, tpu.core_type = #tpu.core_type<tc>, window_params = [{transform_indices = @transform_0, window_bounds = array<i64: 256, 32>}, {pipeline_mode = #tpu.pipeline_mode<synchronous>, transform_indices = @transform_1, window_bounds = array<i64: 32, 128>}, {pipeline_mode = #tpu.pipeline_mode<synchronous>, transform_indices = @transform_2, window_bounds = array<i64: 1, 128>}, {pipeline_mode = #tpu.pipeline_mode<synchronous>, transform_indices = @transform_3, window_bounds = array<i64: 128, 64>}, {pipeline_mode = #tpu.pipeline_mode<synchronous>, transform_indices = @transform_4, window_bounds = array<i64: 1, 64>}, {pipeline_mode = #tpu.pipeline_mode<synchronous>, transform_indices = @transform_5, window_bounds = array<i64: 1, 64>}, {transform_indices = @transform_6, window_bounds = array<i64: 1>}, {transform_indices = @transform_7, window_bounds = array<i64: 1, 1, 256>}]} {
    %c0 = arith.constant 0 : index
    %c0_0 = arith.constant 0 : index
    %0 = vector.load %arg1[%c0, %c0_0] : memref<256x32xf32, #tpu.memory_space<vmem>>, vector<256x32xf32>
    %c0_1 = arith.constant 0 : index
    %c0_2 = arith.constant 0 : index
    %1 = vector.load %arg2[%c0_1, %c0_2] : memref<32x128xf32, #tpu.memory_space<vmem>>, vector<32x128xf32>
    %cst = arith.constant dense<0.000000e+00> : vector<256x128xf32>
    %2 = tpu.matmul %0, %1, %cst {dimension_numbers = #tpu.dot_dimension_numbers<[1], [0], [0], [1], [0, 0, 1, 1], [], []>} : vector<256x32xf32>, vector<32x128xf32>, vector<256x128xf32> -> vector<256x128xf32>
    %c0_3 = arith.constant 0 : index
    %c0_4 = arith.constant 0 : index
    %3 = vector.load %arg3[%c0_3, %c0_4] : memref<1x128xf32, #tpu.memory_space<vmem>>, vector<1x128xf32>
    %4 = vector.broadcast %3 : vector<1x128xf32> to vector<256x128xf32>
    %5 = arith.addf %2, %4 : vector<256x128xf32>
    %cst_5 = arith.constant 0.000000e+00 : f32
    %6 = vector.broadcast %cst_5 : f32 to vector<256x128xf32>
    %7 = arith.maximumf %5, %6 : vector<256x128xf32>
    %c0_6 = arith.constant 0 : index
    %c0_7 = arith.constant 0 : index
    %8 = vector.load %arg4[%c0_6, %c0_7] : memref<128x64xf32, #tpu.memory_space<vmem>>, vector<128x64xf32>
    %cst_8 = arith.constant dense<0.000000e+00> : vector<256x64xf32>
    %9 = tpu.matmul %7, %8, %cst_8 {dimension_numbers = #tpu.dot_dimension_numbers<[1], [0], [0], [1], [0, 0, 1, 1], [], []>} : vector<256x128xf32>, vector<128x64xf32>, vector<256x64xf32> -> vector<256x64xf32>
    %c0_9 = arith.constant 0 : index
    %c0_10 = arith.constant 0 : index
    %10 = vector.load %arg5[%c0_9, %c0_10] : memref<1x64xf32, #tpu.memory_space<vmem>>, vector<1x64xf32>
    %11 = vector.broadcast %10 : vector<1x64xf32> to vector<256x64xf32>
    %12 = arith.addf %9, %11 : vector<256x64xf32>
    %cst_11 = arith.constant 0.000000e+00 : f32
    %13 = vector.broadcast %cst_11 : f32 to vector<256x64xf32>
    %14 = arith.maximumf %12, %13 : vector<256x64xf32>
    %c0_12 = arith.constant 0 : index
    %c0_13 = arith.constant 0 : index
    %15 = vector.load %arg6[%c0_12, %c0_13] : memref<1x64xf32, #tpu.memory_space<vmem>>, vector<1x64xf32>
    %16 = vector.broadcast %15 : vector<1x64xf32> to vector<256x64xf32>
    %17 = arith.mulf %14, %16 : vector<256x64xf32>
    %cst_14 = arith.constant dense<0.000000e+00> : vector<256xf32>
    %18 = vector.multi_reduction <add>, %17, %cst_14 [1] : vector<256x64xf32> to vector<256xf32>
    %c0_15 = arith.constant 0 : index
    %19 = memref.load %arg7[%c0_15] : memref<1xf32, #tpu.memory_space<smem>>
    %20 = vector.broadcast %19 : f32 to vector<256xf32>
    %21 = arith.addf %18, %20 : vector<256xf32>
    %22 = vector.shape_cast %21 : vector<256xf32> to vector<1x1x256xf32>
    %c0_16 = arith.constant 0 : index
    %c0_17 = arith.constant 0 : index
    %c0_18 = arith.constant 0 : index
    %23 = vector.load %arg8[%c0_16, %c0_17, %c0_18] : memref<1x1x256xf32, #tpu.memory_space<vmem>>, vector<1x1x256xf32>
    tpu.vector_store %arg8[%c0_16, %c0_17, %c0_18], %22 {strides = array<i32>} : memref<1x1x256xf32, #tpu.memory_space<vmem>>, vector<1x1x256xf32>,
    return
  }
  func.func @transform_0(%arg0: i32) -> (i32, i32) {
    %c0_i32 = arith.constant 0 : i32
    %c0_i32_0 = arith.constant 0 : i32
    return %arg0, %c0_i32 : i32, i32
  }
  func.func @transform_1(%arg0: i32) -> (i32, i32) {
    %c0_i32 = arith.constant 0 : i32
    %c0_i32_0 = arith.constant 0 : i32
    %c0_i32_1 = arith.constant 0 : i32
    return %c0_i32, %c0_i32_0 : i32, i32
  }
  func.func @transform_2(%arg0: i32) -> (i32, i32) {
    %c0_i32 = arith.constant 0 : i32
    %c0_i32_0 = arith.constant 0 : i32
    %c0_i32_1 = arith.constant 0 : i32
    return %c0_i32, %c0_i32_0 : i32, i32
  }
  func.func @transform_3(%arg0: i32) -> (i32, i32) {
    %c0_i32 = arith.constant 0 : i32
    %c0_i32_0 = arith.constant 0 : i32
    %c0_i32_1 = arith.constant 0 : i32
    return %c0_i32, %c0_i32_0 : i32, i32
  }
  func.func @transform_4(%arg0: i32) -> (i32, i32) {
    %c0_i32 = arith.constant 0 : i32
    %c0_i32_0 = arith.constant 0 : i32
    %c0_i32_1 = arith.constant 0 : i32
    return %c0_i32, %c0_i32_0 : i32, i32
  }
  func.func @transform_5(%arg0: i32) -> (i32, i32) {
    %c0_i32 = arith.constant 0 : i32
    %c0_i32_0 = arith.constant 0 : i32
    %c0_i32_1 = arith.constant 0 : i32
    return %c0_i32, %c0_i32_0 : i32, i32
  }
  func.func @transform_6(%arg0: i32) -> i32 {
    %c0_i32 = arith.constant 0 : i32
    %c0_i32_0 = arith.constant 0 : i32
    return %c0_i32 : i32
  }
  func.func @transform_7(%arg0: i32) -> (i32, i32, i32) {
    %c0_i32 = arith.constant 0 : i32
    %c0_i32_0 = arith.constant 0 : i32
    %c0_i32_1 = arith.constant 0 : i32
    return %arg0, %c0_i32, %c0_i32_0 : i32, i32, i32
  }
}

</mosaic_0001>

<llo_original>
// kernel: mlp_regressor_forward.1
$region0: #{mlp_regressor_forward.1}
  #allocation0 [shape = 'u32[]', space=smem, size = 0x4, offset = 0x4, fixed_abs, tag = 'smem constant byte address 0x4 - core index']
  #allocation1 [shape = 'u32[144,128]{1,0:T(1,128)}', space=vmem, size = 0x12000, scoped, tag = 'internal scratch']
  #allocation2 [shape = 'f32[1]{0:T(128)S(6)}', space=smem, size = 0x200, scoped, tag = 'scoped memory for mlp_regressor_forward.1']
  %s0 = inlined_call_operand.vmem [shape: f32[256,32], index: 0, kind: input, shape index: {}]
  %s1 = inlined_call_operand.vmem [shape: f32[32,128], index: 1, kind: input, shape index: {}]
  %s2 = inlined_call_operand.vmem [shape: f32[1,128], index: 2, kind: input, shape index: {}]
  %s3 = inlined_call_operand.vmem [shape: f32[128,64], index: 3, kind: input, shape index: {}]
  %s4 = inlined_call_operand.vmem [shape: f32[1,64], index: 4, kind: input, shape index: {}]
  %s5 = inlined_call_operand.vmem [shape: f32[1,64], index: 5, kind: input, shape index: {}]
  %s6 = inlined_call_operand.<no memory space> [shape: f32[1], index: 6, kind: input, shape index: {}]
  %s7 = inlined_call_operand.vmem [shape: f32[1,1,256], index: 7, kind: output, shape index: {}]
  %s8 = sld [smem:[#allocation0]]
  $region38: #{mlp_regressor_forward.1} parent=0
    _
  %s10 = ssub.s32 1, %s8
  %s11 = scalar_select 0, %s10, %s8
  %12 = sst [smem:[#allocation2]] %s6
  // Predicated region
  $region2: #{mlp_regressor_forward.1} parent=0 // pred_check
    _
  $region3: #{mlp_regressor_forward.1} parent=0 // pred_check_branch
    %14 = sbr.rel (0) target = $region5
  $region4: #{mlp_regressor_forward.1} parent=0 // pred_region
    _
  $region5: #{mlp_regressor_forward.1} parent=0 // pred_fallthru
    _
  // Predicated region
  $region6: #{mlp_regressor_forward.1} parent=0 // pred_check
    _
  $region7: #{mlp_regressor_forward.1} parent=0 // pred_check_branch
    %16 = sbr.rel (0) target = $region9
  $region8: #{mlp_regressor_forward.1} parent=0 // pred_region
    _
  $region9: #{mlp_regressor_forward.1} parent=0 // pred_fallthru
    _
  // Predicated region
  $region10: #{mlp_regressor_forward.1} parent=0 // pred_check
    _
  $region11: #{mlp_regressor_forward.1} parent=0 // pred_check_branch
    %18 = sbr.rel (0) target = $region13
  $region12: #{mlp_regressor_forward.1} parent=0 // pred_region
    _
  $region13: #{mlp_regressor_forward.1} parent=0 // pred_fallthru
    _
  // Predicated region
  $region14: #{mlp_regressor_forward.1} parent=0 // pred_check
    _
  $region15: #{mlp_regressor_forward.1} parent=0 // pred_check_branch
    %20 = sbr.rel (0) target = $region17
  $region16: #{mlp_regressor_forward.1} parent=0 // pred_region
    _
  $region17: #{mlp_regressor_forward.1} parent=0 // pred_fallthru
    _
  // Predicated region
  $region18: #{mlp_regressor_forward.1} parent=0 // pred_check
    _
  $region19: #{mlp_regressor_forward.1} parent=0 // pred_check_branch
    %22 = sbr.rel (0) target = $region21
  $region20: #{mlp_regressor_forward.1} parent=0 // pred_region
    _
  $region21: #{mlp_regressor_forward.1} parent=0 // pred_fallthru
    _
  // Predicated region
  $region22: #{mlp_regressor_forward.1} parent=0 // pred_check
    _
  $region23: #{mlp_regressor_forward.1} parent=0 // pred_check_branch
    %24 = sbr.rel (0) target = $region25
  $region24: #{mlp_regressor_forward.1} parent=0 // pred_region
    _
  $region25: #{mlp_regressor_forward.1} parent=0 // pred_fallthru
    _
  // Predicated region
  $region26: #{mlp_regressor_forward.1} parent=0 // pred_check
    _
  $region27: #{mlp_regressor_forward.1} parent=0 // pred_check_branch
    %26 = sbr.rel (0) target = $region29
  $region28: #{mlp_regressor_forward.1} parent=0 // pred_region
    _
  $region29: #{mlp_regressor_forward.1} parent=0 // pred_fallthru
    _
  %v27 = vld [vmem:[%s0] sm:$0xff]
  %v28 = vld [vmem:[%s0 + $0x8] sm:$0xff]
  %v29 = vld [vmem:[%s0 + $0x10] sm:$0xff]
  %v30 = vld [vmem:[%s0 + $0x18] sm:$0xff]
  %v31 = vld [vmem:[%s0 + $0x20] sm:$0xff]
  %v32 = vld [vmem:[%s0 + $0x28] sm:$0xff]
  %v33 = vld [vmem:[%s0 + $0x30] sm:$0xff]
  %v34 = vld [vmem:[%s0 + $0x38] sm:$0xff]
  %v35 = vld [vmem:[%s0 + $0x40] sm:$0xff]
  %v36 = vld [vmem:[%s0 + $0x48] sm:$0xff]
  %v37 = vld [vmem:[%s0 + $0x50] sm:$0xff]
  %v38 = vld [vmem:[%s0 + $0x58] sm:$0xff]
  %v39 = vld [vmem:[%s0 + $0x60] sm:$0xff]
  %v40 = vld [vmem:[%s0 + $0x68] sm:$0xff]
  %v41 = vld [vmem:[%s0 + $0x70] sm:$0xff]
  %v42 = vld [vmem:[%s0 + $0x78] sm:$0xff]
  %v43 = vld [vmem:[%s0 + $0x80] sm:$0xff]
  %v44 = vld [vmem:[%s0 + $0x88] sm:$0xff]
  %v45 = vld [vmem:[%s0 + $0x90] sm:$0xff]
  %v46 = vld [vmem:[%s0 + $0x98] sm:$0xff]
  %v47 = vld [vmem:[%s0 + $0xa0] sm:$0xff]
  %v48 = vld [vmem:[%s0 + $0xa8] sm:$0xff]
  %v49 = vld [vmem:[%s0 + $0xb0] sm:$0xff]
  %v50 = vld [vmem:[%s0 + $0xb8] sm:$0xff]
  %v51 = vld [vmem:[%s0 + $0xc0] sm:$0xff]
  %v52 = vld [vmem:[%s0 + $0xc8] sm:$0xff]
  %v53 = vld [vmem:[%s0 + $0xd0] sm:$0xff]
  %v54 = vld [vmem:[%s0 + $0xd8] sm:$0xff]
  %v55 = vld [vmem:[%s0 + $0xe0] sm:$0xff]
  %v56 = vld [vmem:[%s0 + $0xe8] sm:$0xff]
  %v57 = vld [vmem:[%s0 + $0xf0] sm:$0xff]
  %v58 = vld [vmem:[%s0 + $0xf8] sm:$0xff]
  %v59 = vld [vmem:[%s1] sm:$0xff]
  %v60 = vld [vmem:[%s1 + $0x8] sm:$0xff]
  %v61 = vld [vmem:[%s1 + $0x10] sm:$0xff]
  %v62 = vld [vmem:[%s1 + $0x18] sm:$0xff]
  %v63 = vld [vmem:[%s2] sm:$0x1]
  %v65 = vlaneseq
  %v66 = vshrl.u32 %v65, 7
  %v67 = vsub.s32 0, %v66
  %v68 = vrot.slane %v63, %v67
  %vm70 = vcmask 261120
  %v72 = vsel %vm70, %v27, 0
  %v75 = vsel %vm70, %v28, 0
  %v78 = vsel %vm70, %v29, 0
  %v81 = vsel %vm70, %v30, 0
  %v84 = vsel %vm70, %v31, 0
  %v87 = vsel %vm70, %v32, 0
  %v90 = vsel %vm70, %v33, 0
  %v93 = vsel %vm70, %v34, 0
  %v96 = vsel %vm70, %v35, 0
  %v99 = vsel %vm70, %v36, 0
  %v102 = vsel %vm70, %v37, 0
  %v105 = vsel %vm70, %v38, 0
  %v108 = vsel %vm70, %v39, 0
  %v111 = vsel %vm70, %v40, 0
  %v114 = vsel %vm70, %v41, 0
  %v117 = vsel %vm70, %v42, 0
  %v120 = vsel %vm70, %v43, 0
  %v123 = vsel %vm70, %v44, 0
  %v126 = vsel %vm70, %v45, 0
  %v129 = vsel %vm70, %v46, 0
  %v132 = vsel %vm70, %v47, 0
  %v135 = vsel %vm70, %v48, 0
  %v138 = vsel %vm70, %v49, 0
  %v141 = vsel %vm70, %v50, 0
  %v144 = vsel %vm70, %v51, 0
  %v147 = vsel %vm70, %v52, 0
  %v150 = vsel %vm70, %v53, 0
  %v153 = vsel %vm70, %v54, 0
  %v156 = vsel %vm70, %v55, 0
  %v159 = vsel %vm70, %v56, 0
  %v162 = vsel %vm70, %v57, 0
  %v165 = vsel %vm70, %v58, 0
  %167 = vmatprep.subr.mxu0 0.0
  %168 = vmatpush1.msra.mxu0 %v59
  %169 = vmatprep.subr.mxu0 0.0
  %170 = vmatpush1.msra.mxu0 %v60
  %171 = vmatprep.subr.mxu0 0.0
  %172 = vmatpush1.msra.mxu0 %v61
  %173 = vmatprep.subr.mxu0 0.0
  %174 = vmatpush1.msra.mxu0 %v62
  %175 = vmatprep.subr.mxu0 0.0
  %176 = vmatpush1.msra.mxu0 0.0
  %177 = vmatprep.subr.mxu0 0.0
  %178 = vmatpush1.msra.mxu0 0.0
  %179 = vmatprep.subr.mxu0 0.0
  %180 = vmatpush1.msra.mxu0 0.0
  %181 = vmatprep.subr.mxu0 0.0
  %182 = vmatpush1.msra.mxu0 0.0
  %183 = vmatprep.subr.mxu0 0.0
  %184 = vmatpush1.msra.mxu0 0.0
  %185 = vmatprep.subr.mxu0 0.0
  %186 = vmatpush1.msra.mxu0 0.0
  %187 = vmatprep.subr.mxu0 0.0
  %188 = vmatpush1.msra.mxu0 0.0
  %189 = vmatprep.subr.mxu0 0.0
  %190 = vmatpush1.msra.mxu0 0.0
  %191 = vmatprep.subr.mxu0 0.0
  %192 = vmatpush1.msra.mxu0 0.0
  %193 = vmatprep.subr.mxu0 0.0
  %194 = vmatpush1.msra.mxu0 0.0
  %195 = vmatprep.subr.mxu0 0.0
  %196 = vmatpush1.msra.mxu0 0.0
  %197 = vmatprep.subr.mxu0 0.0
  %198 = vmatpush1.msra.mxu0 0.0
  %199 = vmatprep.subr.mxu0 0.0
  %200 = vmatpush1.msra.mxu0 0.0
  %201 = vmatprep.subr.mxu0 0.0
  %202 = vmatpush1.msra.mxu0 0.0
  %203 = vmatprep.subr.mxu0 0.0
  %204 = vmatpush1.msra.mxu0 0.0
  %205 = vmatprep.subr.mxu0 0.0
  %206 = vmatpush1.msra.mxu0 0.0
  %207 = vmatprep.subr.mxu0 0.0
  %208 = vmatpush1.msra.mxu0 0.0
  %209 = vmatprep.subr.mxu0 0.0
  %210 = vmatpush1.msra.mxu0 0.0
  %211 = vmatprep.subr.mxu0 0.0
  %212 = vmatpush1.msra.mxu0 0.0
  %213 = vmatprep.subr.mxu0 0.0
  %214 = vmatpush1.msra.mxu0 0.0
  %215 = vmatprep.subr.mxu0 0.0
  %216 = vmatpush1.msra.mxu0 0.0
  %217 = vmatprep.subr.mxu0 0.0
  %218 = vmatpush1.msra.mxu0 0.0
  %219 = vmatprep.subr.mxu0 0.0
  %220 = vmatpush1.msra.mxu0 0.0
  %221 = vmatprep.subr.mxu0 0.0
  %222 = vmatpush1.msra.mxu0 0.0
  %223 = vmatprep.subr.mxu0 0.0
  %224 = vmatpush1.msra.mxu0 0.0
  %225 = vmatprep.subr.mxu0 0.0
  %226 = vmatpush1.msra.mxu0 0.0
  %227 = vmatprep.subr.mxu0 0.0
  %228 = vmatpush1.msra.mxu0 0.0
  %229 = vmatprep.subr.mxu0 0.0
  %230 = vmatpush1.msra.mxu0 0.0
  %231 = vmatprep.mubr.f32.mxu0 0.0
  %232 = vmatmul.mubr.f32.gmra.mrb[0].mxu0 %v72
  %v233 = vpop.f32.mrb[0].mxu0
  %v234 = vadd.f32 %v68, %v233
  %v235 = vpop.f32.mrb[0].mxu0
  %236 = vmatprep.mubr.f32.mxu0 0.0
  %237 = vmatmul.mubr.f32.gmra.mrb[0].mxu0 %v75
  %v238 = vpop.f32.mrb[0].mxu0
  %v239 = vadd.f32 %v68, %v238
  %v240 = vpop.f32.mrb[0].mxu0
  %241 = vmatprep.mubr.f32.mxu0 0.0
  %242 = vmatmul.mubr.f32.gmra.mrb[0].mxu0 %v78
  %v243 = vpop.f32.mrb[0].mxu0
  %v244 = vadd.f32 %v68, %v243
  %v245 = vpop.f32.mrb[0].mxu0
  %246 = vmatprep.mubr.f32.mxu0 0.0
  %247 = vmatmul.mubr.f32.gmra.mrb[0].mxu0 %v81
  %v248 = vpop.f32.mrb[0].mxu0
  %v249 = vadd.f32 %v68, %v248
  %v250 = vpop.f32.mrb[0].mxu0
  %251 = vmatprep.mubr.f32.mxu0 0.0
  %252 = vmatmul.mubr.f32.gmra.mrb[0].mxu0 %v84
  %v253 = vpop.f32.mrb[0].mxu0
  %v254 = vadd.f32 %v68, %v253
  %v255 = vpop.f32.mrb[0].mxu0
  %256 = vmatprep.mubr.f32.mxu0 0.0
  %257 = vmatmul.mubr.f32.gmra.mrb[0].mxu0 %v87
  %v258 = vpop.f32.mrb[0].mxu0
  %v259 = vadd.f32 %v68, %v258
  %v260 = vpop.f32.mrb[0].mxu0
  %261 = vmatprep.mubr.f32.mxu0 0.0
  %262 = vmatmul.mubr.f32.gmra.mrb[0].mxu0 %v90
  %v263 = vpop.f32.mrb[0].mxu0
  %v264 = vadd.f32 %v68, %v263
  %v265 = vpop.f32.mrb[0].mxu0
  %266 = vmatprep.mubr.f32.mxu0 0.0
  %267 = vmatmul.mubr.f32.gmra.mrb[0].mxu0 %v93
  %v268 = vpop.f32.mrb[0].mxu0
  %v269 = vadd.f32 %v68, %v268
  %v270 = vpop.f32.mrb[0].mxu0
  %271 = vmatprep.mubr.f32.mxu0 0.0
  %272 = vmatmul.mubr.f32.gmra.mrb[0].mxu0 %v96
  %v273 = vpop.f32.mrb[0].mxu0
  %v274 = vadd.f32 %v68, %v273
  %v275 = vpop.f32.mrb[0].mxu0
  %276 = vmatprep.mubr.f32.mxu0 0.0
  %277 = vmatmul.mubr.f32.gmra.mrb[0].mxu0 %v99
  %v278 = vpop.f32.mrb[0].mxu0
  %v279 = vadd.f32 %v68, %v278
  %v280 = vpop.f32.mrb[0].mxu0
  %281 = vmatprep.mubr.f32.mxu0 0.0
  %282 = vmatmul.mubr.f32.gmra.mrb[0].mxu0 %v102
  %v283 = vpop.f32.mrb[0].mxu0
  %v284 = vadd.f32 %v68, %v283
  %v285 = vpop.f32.mrb[0].mxu0
  %286 = vmatprep.mubr.f32.mxu0 0.0
  %287 = vmatmul.mubr.f32.gmra.mrb[0].mxu0 %v105
  %v288 = vpop.f32.mrb[0].mxu0
  %v289 = vadd.f32 %v68, %v288
  %v290 = vpop.f32.mrb[0].mxu0
  %291 = vmatprep.mubr.f32.mxu0 0.0
  %292 = vmatmul.mubr.f32.gmra.mrb[0].mxu0 %v108
  %v293 = vpop.f32.mrb[0].mxu0
  %v294 = vadd.f32 %v68, %v293
  %v295 = vpop.f32.mrb[0].mxu0
  %296 = vmatprep.mubr.f32.mxu0 0.0
  %297 = vmatmul.mubr.f32.gmra.mrb[0].mxu0 %v111
  %v298 = vpop.f32.mrb[0].mxu0
  %v299 = vadd.f32 %v68, %v298
  %v300 = vpop.f32.mrb[0].mxu0
  %301 = vmatprep.mubr.f32.mxu0 0.0
  %302 = vmatmul.mubr.f32.gmra.mrb[0].mxu0 %v114
  %v303 = vpop.f32.mrb[0].mxu0
  %v304 = vadd.f32 %v68, %v303
  %v305 = vpop.f32.mrb[0].mxu0
  %306 = vmatprep.mubr.f32.mxu0 0.0
  %307 = vmatmul.mubr.f32.gmra.mrb[0].mxu0 %v117
  %v308 = vpop.f32.mrb[0].mxu0
  %v309 = vadd.f32 %v68, %v308
  %v310 = vpop.f32.mrb[0].mxu0
  %311 = vmatprep.mubr.f32.mxu0 0.0
  %312 = vmatmul.mubr.f32.gmra.mrb[0].mxu0 %v120
  %v313 = vpop.f32.mrb[0].mxu0
  %v314 = vadd.f32 %v68, %v313
  %v315 = vpop.f32.mrb[0].mxu0
  %316 = vmatprep.mubr.f32.mxu0 0.0
  %317 = vmatmul.mubr.f32.gmra.mrb[0].mxu0 %v123
  %v318 = vpop.f32.mrb[0].mxu0
  %v319 = vadd.f32 %v68, %v318
  %v320 = vpop.f32.mrb[0].mxu0
  %321 = vmatprep.mubr.f32.mxu0 0.0
  %322 = vmatmul.mubr.f32.gmra.mrb[0].mxu0 %v126
  %v323 = vpop.f32.mrb[0].mxu0
  %v324 = vadd.f32 %v68, %v323
  %v325 = vpop.f32.mrb[0].mxu0
  %326 = vmatprep.mubr.f32.mxu0 0.0
  %327 = vmatmul.mubr.f32.gmra.mrb[0].mxu0 %v129
  %v328 = vpop.f32.mrb[0].mxu0
  %v329 = vadd.f32 %v68, %v328
  %v330 = vpop.f32.mrb[0].mxu0
  %331 = vmatprep.mubr.f32.mxu0 0.0
  %332 = vmatmul.mubr.f32.gmra.mrb[0].mxu0 %v132
  %v333 = vpop.f32.mrb[0].mxu0
  %v334 = vadd.f32 %v68, %v333
  %v335 = vpop.f32.mrb[0].mxu0
  %336 = vmatprep.mubr.f32.mxu0 0.0
  %337 = vmatmul.mubr.f32.gmra.mrb[0].mxu0 %v135
  %v338 = vpop.f32.mrb[0].mxu0
  %v339 = vadd.f32 %v68, %v338
  %v340 = vpop.f32.mrb[0].mxu0
  %341 = vmatprep.mubr.f32.mxu0 0.0
  %342 = vmatmul.mubr.f32.gmra.mrb[0].mxu0 %v138
  %v343 = vpop.f32.mrb[0].mxu0
  %v344 = vadd.f32 %v68, %v343
  %v345 = vpop.f32.mrb[0].mxu0
  %346 = vmatprep.mubr.f32.mxu0 0.0
  %347 = vmatmul.mubr.f32.gmra.mrb[0].mxu0 %v141
  %v348 = vpop.f32.mrb[0].mxu0
  %v349 = vadd.f32 %v68, %v348
  %v350 = vpop.f32.mrb[0].mxu0
  %351 = vmatprep.mubr.f32.mxu0 0.0
  %352 = vmatmul.mubr.f32.gmra.mrb[0].mxu0 %v144
  %v353 = vpop.f32.mrb[0].mxu0
  %v354 = vadd.f32 %v68, %v353
  %v355 = vpop.f32.mrb[0].mxu0
  %356 = vmatprep.mubr.f32.mxu0 0.0
  %357 = vmatmul.mubr.f32.gmra.mrb[0].mxu0 %v147
  %v358 = vpop.f32.mrb[0].mxu0
  %v359 = vadd.f32 %v68, %v358
  %v360 = vpop.f32.mrb[0].mxu0
  %361 = vmatprep.mubr.f32.mxu0 0.0
  %362 = vmatmul.mubr.f32.gmra.mrb[0].mxu0 %v150
  %v363 = vpop.f32.mrb[0].mxu0
  %v364 = vadd.f32 %v68, %v363
  %v365 = vpop.f32.mrb[0].mxu0
  %366 = vmatprep.mubr.f32.mxu0 0.0
  %367 = vmatmul.mubr.f32.gmra.mrb[0].mxu0 %v153
  %v368 = vpop.f32.mrb[0].mxu0
  %v369 = vadd.f32 %v68, %v368
  %v370 = vpop.f32.mrb[0].mxu0
  %371 = vmatprep.mubr.f32.mxu0 0.0
  %372 = vmatmul.mubr.f32.gmra.mrb[0].mxu0 %v156
  %v373 = vpop.f32.mrb[0].mxu0
  %v374 = vadd.f32 %v68, %v373
  %v375 = vpop.f32.mrb[0].mxu0
  %376 = vmatprep.mubr.f32.mxu0 0.0
  %377 = vmatmul.mubr.f32.gmra.mrb[0].mxu0 %v159
  %v378 = vpop.f32.mrb[0].mxu0
  %v379 = vadd.f32 %v68, %v378
  %v380 = vpop.f32.mrb[0].mxu0
  %381 = vmatprep.mubr.f32.mxu0 0.0
  %382 = vmatmul.mubr.f32.gmra.mrb[0].mxu0 %v162
  %v383 = vpop.f32.mrb[0].mxu0
  %v384 = vadd.f32 %v68, %v383
  %v385 = vpop.f32.mrb[0].mxu0
  %386 = vmatprep.mubr.f32.mxu0 0.0
  %387 = vmatmul.mubr.f32.gmra.mrb[0].mxu0 %v165
  %v388 = vpop.f32.mrb[0].mxu0
  %v389 = vadd.f32 %v68, %v388
  %v390 = vpop.f32.mrb[0].mxu0
  %391 = vdwg.mxu0
  %v392 = vmax.f32 %v234, 0.0
  %v393 = vmax.f32 %v239, 0.0
  %v394 = vmax.f32 %v244, 0.0
  %v395 = vmax.f32 %v249, 0.0
  %v396 = vmax.f32 %v254, 0.0
  %v397 = vmax.f32 %v259, 0.0
  %v398 = vmax.f32 %v264, 0.0
  %v399 = vmax.f32 %v269, 0.0
  %v400 = vmax.f32 %v274, 0.0
  %v401 = vmax.f32 %v279, 0.0
  %v402 = vmax.f32 %v284, 0.0
  %v403 = vmax.f32 %v289, 0.0
  %v404 = vmax.f32 %v294, 0.0
  %v405 = vmax.f32 %v299, 0.0
  %v406 = vmax.f32 %v304, 0.0
  %v407 = vmax.f32 %v309, 0.0
  %v408 = vmax.f32 %v314, 0.0
  %v409 = vmax.f32 %v319, 0.0
  %v410 = vmax.f32 %v324, 0.0
  %v411 = vmax.f32 %v329, 0.0
  %v412 = vmax.f32 %v334, 0.0
  %v413 = vmax.f32 %v339, 0.0
  %v414 = vmax.f32 %v344, 0.0
  %v415 = vmax.f32 %v349, 0.0
  %v416 = vmax.f32 %v354, 0.0
  %v417 = vmax.f32 %v359, 0.0
  %v418 = vmax.f32 %v364, 0.0
  %v419 = vmax.f32 %v369, 0.0
  %v420 = vmax.f32 %v374, 0.0
  %v421 = vmax.f32 %v379, 0.0
  %v422 = vmax.f32 %v384, 0.0
  %v423 = vmax.f32 %v389, 0.0
  %v424 = vld [vmem:[%s3] sm:$0xff]
  %v425 = vld [vmem:[%s3 + $0x8] sm:$0xff]
  %v426 = vld [vmem:[%s3 + $0x10] sm:$0xff]
  %v427 = vld [vmem:[%s3 + $0x18] sm:$0xff]
  %v428 = vld [vmem:[%s3 + $0x20] sm:$0xff]
  %v429 = vld [vmem:[%s3 + $0x28] sm:$0xff]
  %v430 = vld [vmem:[%s3 + $0x30] sm:$0xff]
  %v431 = vld [vmem:[%s3 + $0x38] sm:$0xff]
  %v432 = vld [vmem:[%s3 + $0x40] sm:$0xff]
  %v433 = vld [vmem:[%s3 + $0x48] sm:$0xff]
  %v434 = vld [vmem:[%s3 + $0x50] sm:$0xff]
  %v435 = vld [vmem:[%s3 + $0x58] sm:$0xff]
  %v436 = vld [vmem:[%s3 + $0x60] sm:$0xff]
  %v437 = vld [vmem:[%s3 + $0x68] sm:$0xff]
  %v438 = vld [vmem:[%s3 + $0x70] sm:$0xff]
  %v439 = vld [vmem:[%s3 + $0x78] sm:$0xff]
  %v440 = vld [vmem:[%s4] sm:$0x1]
  %v442 = vlaneseq
  %v443 = vshrl.u32 %v442, 7
  %v444 = vsub.s32 0, %v443
  %v445 = vrot.slane %v440, %v444
  %447 = vmatprep.subr.mxu0 0.0
  %448 = vmatpush1.msra.mxu0 %v424
  %449 = vmatprep.subr.mxu0 0.0
  %450 = vmatpush1.msra.mxu0 %v425
  %451 = vmatprep.subr.mxu0 0.0
  %452 = vmatpush1.msra.mxu0 %v426
  %453 = vmatprep.subr.mxu0 0.0
  %454 = vmatpush1.msra.mxu0 %v427
  %455 = vmatprep.subr.mxu0 0.0
  %456 = vmatpush1.msra.mxu0 %v428
  %457 = vmatprep.subr.mxu0 0.0
  %458 = vmatpush1.msra.mxu0 %v429
  %459 = vmatprep.subr.mxu0 0.0
  %460 = vmatpush1.msra.mxu0 %v430
  %461 = vmatprep.subr.mxu0 0.0
  %462 = vmatpush1.msra.mxu0 %v431
  %463 = vmatprep.subr.mxu0 0.0
  %464 = vmatpush1.msra.mxu0 %v432
  %465 = vmatprep.subr.mxu0 0.0
  %466 = vmatpush1.msra.mxu0 %v433
  %467 = vmatprep.subr.mxu0 0.0
  %468 = vmatpush1.msra.mxu0 %v434
  %469 = vmatprep.subr.mxu0 0.0
  %470 = vmatpush1.msra.mxu0 %v435
  %471 = vmatprep.subr.mxu0 0.0
  %472 = vmatpush1.msra.mxu0 %v436
  %473 = vmatprep.subr.mxu0 0.0
  %474 = vmatpush1.msra.mxu0 %v437
  %475 = vmatprep.subr.mxu0 0.0
  %476 = vmatpush1.msra.mxu0 %v438
  %477 = vmatprep.subr.mxu0 0.0
  %478 = vmatpush1.msra.mxu0 %v439
  %479 = vmatprep.subr.mxu0 0.0
  %480 = vmatpush1.msra.mxu0 0.0
  %481 = vmatprep.subr.mxu0 0.0
  %482 = vmatpush1.msra.mxu0 0.0
  %483 = vmatprep.subr.mxu0 0.0
  %484 = vmatpush1.msra.mxu0 0.0
  %485 = vmatprep.subr.mxu0 0.0
  %486 = vmatpush1.msra.mxu0 0.0
  %487 = vmatprep.subr.mxu0 0.0
  %488 = vmatpush1.msra.mxu0 0.0
  %489 = vmatprep.subr.mxu0 0.0
  %490 = vmatpush1.msra.mxu0 0.0
  %491 = vmatprep.subr.mxu0 0.0
  %492 = vmatpush1.msra.mxu0 0.0
  %493 = vmatprep.subr.mxu0 0.0
  %494 = vmatpush1.msra.mxu0 0.0
  %495 = vmatprep.subr.mxu0 0.0
  %496 = vmatpush1.msra.mxu0 0.0
  %497 = vmatprep.subr.mxu0 0.0
  %498 = vmatpush1.msra.mxu0 0.0
  %499 = vmatprep.subr.mxu0 0.0
  %500 = vmatpush1.msra.mxu0 0.0
  %501 = vmatprep.subr.mxu0 0.0
  %502 = vmatpush1.msra.mxu0 0.0
  %503 = vmatprep.subr.mxu0 0.0
  %504 = vmatpush1.msra.mxu0 0.0
  %505 = vmatprep.subr.mxu0 0.0
  %506 = vmatpush1.msra.mxu0 0.0
  %507 = vmatprep.subr.mxu0 0.0
  %508 = vmatpush1.msra.mxu0 0.0
  %509 = vmatprep.subr.mxu0 0.0
  %510 = vmatpush1.msra.mxu0 0.0
  %511 = vmatprep.mubr.f32.mxu0 0.0
  %512 = vmatmul.mubr.f32.gmra.mrb[0].mxu0 %v392
  %v513 = vpop.f32.mrb[0].mxu0
  %v514 = vadd.f32 %v445, %v513
  %v515 = vpop.f32.mrb[0].mxu0
  %516 = vmatprep.mubr.f32.mxu0 0.0
  %517 = vmatmul.mubr.f32.gmra.mrb[0].mxu0 %v393
  %v518 = vpop.f32.mrb[0].mxu0
  %v519 = vadd.f32 %v445, %v518
  %v520 = vpop.f32.mrb[0].mxu0
  %521 = vmatprep.mubr.f32.mxu0 0.0
  %522 = vmatmul.mubr.f32.gmra.mrb[0].mxu0 %v394
  %v523 = vpop.f32.mrb[0].mxu0
  %v524 = vadd.f32 %v445, %v523
  %v525 = vpop.f32.mrb[0].mxu0
  %526 = vmatprep.mubr.f32.mxu0 0.0
  %527 = vmatmul.mubr.f32.gmra.mrb[0].mxu0 %v395
  %v528 = vpop.f32.mrb[0].mxu0
  %v529 = vadd.f32 %v445, %v528
  %v530 = vpop.f32.mrb[0].mxu0
  %531 = vmatprep.mubr.f32.mxu0 0.0
  %532 = vmatmul.mubr.f32.gmra.mrb[0].mxu0 %v396
  %v533 = vpop.f32.mrb[0].mxu0
  %v534 = vadd.f32 %v445, %v533
  %v535 = vpop.f32.mrb[0].mxu0
  %536 = vmatprep.mubr.f32.mxu0 0.0
  %537 = vmatmul.mubr.f32.gmra.mrb[0].mxu0 %v397
  %v538 = vpop.f32.mrb[0].mxu0
  %v539 = vadd.f32 %v445, %v538
  %v540 = vpop.f32.mrb[0].mxu0
  %541 = vmatprep.mubr.f32.mxu0 0.0
  %542 = vmatmul.mubr.f32.gmra.mrb[0].mxu0 %v398
  %v543 = vpop.f32.mrb[0].mxu0
  %v544 = vadd.f32 %v445, %v543
  %v545 = vpop.f32.mrb[0].mxu0
  %546 = vmatprep.mubr.f32.mxu0 0.0
  %547 = vmatmul.mubr.f32.gmra.mrb[0].mxu0 %v399
  %v548 = vpop.f32.mrb[0].mxu0
  %v549 = vadd.f32 %v445, %v548
  %v550 = vpop.f32.mrb[0].mxu0
  %551 = vmatprep.mubr.f32.mxu0 0.0
  %552 = vmatmul.mubr.f32.gmra.mrb[0].mxu0 %v400
  %v553 = vpop.f32.mrb[0].mxu0
  %v554 = vadd.f32 %v445, %v553
  %v555 = vpop.f32.mrb[0].mxu0
  %556 = vmatprep.mubr.f32.mxu0 0.0
  %557 = vmatmul.mubr.f32.gmra.mrb[0].mxu0 %v401
  %v558 = vpop.f32.mrb[0].mxu0
  %v559 = vadd.f32 %v445, %v558
  %v560 = vpop.f32.mrb[0].mxu0
  %561 = vmatprep.mubr.f32.mxu0 0.0
  %562 = vmatmul.mubr.f32.gmra.mrb[0].mxu0 %v402
  %v563 = vpop.f32.mrb[0].mxu0
  %v564 = vadd.f32 %v445, %v563
  %v565 = vpop.f32.mrb[0].mxu0
  %566 = vmatprep.mubr.f32.mxu0 0.0
  %567 = vmatmul.mubr.f32.gmra.mrb[0].mxu0 %v403
  %v568 = vpop.f32.mrb[0].mxu0
  %v569 = vadd.f32 %v445, %v568
  %v570 = vpop.f32.mrb[0].mxu0
  %571 = vmatprep.mubr.f32.mxu0 0.0
  %572 = vmatmul.mubr.f32.gmra.mrb[0].mxu0 %v404
  %v573 = vpop.f32.mrb[0].mxu0
  %v574 = vadd.f32 %v445, %v573
  %v575 = vpop.f32.mrb[0].mxu0
  %576 = vmatprep.mubr.f32.mxu0 0.0
  %577 = vmatmul.mubr.f32.gmra.mrb[0].mxu0 %v405
  %v578 = vpop.f32.mrb[0].mxu0
  %v579 = vadd.f32 %v445, %v578
  %v580 = vpop.f32.mrb[0].mxu0
  %581 = vmatprep.mubr.f32.mxu0 0.0
  %582 = vmatmul.mubr.f32.gmra.mrb[0].mxu0 %v406
  %v583 = vpop.f32.mrb[0].mxu0
  %v584 = vadd.f32 %v445, %v583
  %v585 = vpop.f32.mrb[0].mxu0
  %586 = vmatprep.mubr.f32.mxu0 0.0
  %587 = vmatmul.mubr.f32.gmra.mrb[0].mxu0 %v407
  %v588 = vpop.f32.mrb[0].mxu0
  %v589 = vadd.f32 %v445, %v588
  %v590 = vpop.f32.mrb[0].mxu0
  %591 = vmatprep.mubr.f32.mxu0 0.0
  %592 = vmatmul.mubr.f32.gmra.mrb[0].mxu0 %v408
  %v593 = vpop.f32.mrb[0].mxu0
  %v594 = vadd.f32 %v445, %v593
  %v595 = vpop.f32.mrb[0].mxu0
  %596 = vmatprep.mubr.f32.mxu0 0.0
  %597 = vmatmul.mubr.f32.gmra.mrb[0].mxu0 %v409
  %v598 = vpop.f32.mrb[0].mxu0
  %v599 = vadd.f32 %v445, %v598
  %v600 = vpop.f32.mrb[0].mxu0
  %601 = vmatprep.mubr.f32.mxu0 0.0
  %602 = vmatmul.mubr.f32.gmra.mrb[0].mxu0 %v410
  %v603 = vpop.f32.mrb[0].mxu0
  %v604 = vadd.f32 %v445, %v603
  %v605 = vpop.f32.mrb[0].mxu0
  %606 = vmatprep.mubr.f32.mxu0 0.0
  %607 = vmatmul.mubr.f32.gmra.mrb[0].mxu0 %v411
  %v608 = vpop.f32.mrb[0].mxu0
  %v609 = vadd.f32 %v445, %v608
  %v610 = vpop.f32.mrb[0].mxu0
  %611 = vmatprep.mubr.f32.mxu0 0.0
  %612 = vmatmul.mubr.f32.gmra.mrb[0].mxu0 %v412
  %v613 = vpop.f32.mrb[0].mxu0
  %v614 = vadd.f32 %v445, %v613
  %v615 = vpop.f32.mrb[0].mxu0
  %616 = vmatprep.mubr.f32.mxu0 0.0
  %617 = vmatmul.mubr.f32.gmra.mrb[0].mxu0 %v413
  %v618 = vpop.f32.mrb[0].mxu0
  %v619 = vadd.f32 %v445, %v618
  %v620 = vpop.f32.mrb[0].mxu0
  %621 = vmatprep.mubr.f32.mxu0 0.0
  %622 = vmatmul.mubr.f32.gmra.mrb[0].mxu0 %v414
  %v623 = vpop.f32.mrb[0].mxu0
  %v624 = vadd.f32 %v445, %v623
  %v625 = vpop.f32.mrb[0].mxu0
  %626 = vmatprep.mubr.f32.mxu0 0.0
  %627 = vmatmul.mubr.f32.gmra.mrb[0].mxu0 %v415
  %v628 = vpop.f32.mrb[0].mxu0
  %v629 = vadd.f32 %v445, %v628
  %v630 = vpop.f32.mrb[0].mxu0
  %631 = vmatprep.mubr.f32.mxu0 0.0
  %632 = vmatmul.mubr.f32.gmra.mrb[0].mxu0 %v416
  %v633 = vpop.f32.mrb[0].mxu0
  %v634 = vadd.f32 %v445, %v633
  %v635 = vpop.f32.mrb[0].mxu0
  %636 = vmatprep.mubr.f32.mxu0 0.0
  %637 = vmatmul.mubr.f32.gmra.mrb[0].mxu0 %v417
  %v638 = vpop.f32.mrb[0].mxu0
  %v639 = vadd.f32 %v445, %v638
  %v640 = vpop.f32.mrb[0].mxu0
  %641 = vmatprep.mubr.f32.mxu0 0.0
  %642 = vmatmul.mubr.f32.gmra.mrb[0].mxu0 %v418
  %v643 = vpop.f32.mrb[0].mxu0
  %v644 = vadd.f32 %v445, %v643
  %v645 = vpop.f32.mrb[0].mxu0
  %646 = vmatprep.mubr.f32.mxu0 0.0
  %647 = vmatmul.mubr.f32.gmra.mrb[0].mxu0 %v419
  %v648 = vpop.f32.mrb[0].mxu0
  %v649 = vadd.f32 %v445, %v648
  %v650 = vpop.f32.mrb[0].mxu0
  %651 = vmatprep.mubr.f32.mxu0 0.0
  %652 = vmatmul.mubr.f32.gmra.mrb[0].mxu0 %v420
  %v653 = vpop.f32.mrb[0].mxu0
  %v654 = vadd.f32 %v445, %v653
  %v655 = vpop.f32.mrb[0].mxu0
  %656 = vmatprep.mubr.f32.mxu0 0.0
  %657 = vmatmul.mubr.f32.gmra.mrb[0].mxu0 %v421
  %v658 = vpop.f32.mrb[0].mxu0
  %v659 = vadd.f32 %v445, %v658
  %v660 = vpop.f32.mrb[0].mxu0
  %661 = vmatprep.mubr.f32.mxu0 0.0
  %662 = vmatmul.mubr.f32.gmra.mrb[0].mxu0 %v422
  %v663 = vpop.f32.mrb[0].mxu0
  %v664 = vadd.f32 %v445, %v663
  %v665 = vpop.f32.mrb[0].mxu0
  %666 = vmatprep.mubr.f32.mxu0 0.0
  %667 = vmatmul.mubr.f32.gmra.mrb[0].mxu0 %v423
  %v668 = vpop.f32.mrb[0].mxu0
  %v669 = vadd.f32 %v445, %v668
  %v670 = vpop.f32.mrb[0].mxu0
  %671 = vdwg.mxu0
  %v672 = vmax.f32 %v514, 0.0
  %v673 = vmax.f32 %v519, 0.0
  %v674 = vmax.f32 %v524, 0.0
  %v675 = vmax.f32 %v529, 0.0
  %v676 = vmax.f32 %v534, 0.0
  %v677 = vmax.f32 %v539, 0.0
  %v678 = vmax.f32 %v544, 0.0
  %v679 = vmax.f32 %v549, 0.0
  %v680 = vmax.f32 %v554, 0.0
  %v681 = vmax.f32 %v559, 0.0
  %v682 = vmax.f32 %v564, 0.0
  %v683 = vmax.f32 %v569, 0.0
  %v684 = vmax.f32 %v574, 0.0
  %v685 = vmax.f32 %v579, 0.0
  %v686 = vmax.f32 %v584, 0.0
  %v687 = vmax.f32 %v589, 0.0
  %v688 = vmax.f32 %v594, 0.0
  %v689 = vmax.f32 %v599, 0.0
  %v690 = vmax.f32 %v604, 0.0
  %v691 = vmax.f32 %v609, 0.0
  %v692 = vmax.f32 %v614, 0.0
  %v693 = vmax.f32 %v619, 0.0
  %v694 = vmax.f32 %v624, 0.0
  %v695 = vmax.f32 %v629, 0.0
  %v696 = vmax.f32 %v634, 0.0
  %v697 = vmax.f32 %v639, 0.0
  %v698 = vmax.f32 %v644, 0.0
  %v699 = vmax.f32 %v649, 0.0
  %v700 = vmax.f32 %v654, 0.0
  %v701 = vmax.f32 %v659, 0.0
  %v702 = vmax.f32 %v664, 0.0
  %v703 = vmax.f32 %v669, 0.0
  %v704 = vld [vmem:[%s5] sm:$0x1]
  %v706 = vlaneseq
  %v707 = vshrl.u32 %v706, 7
  %v708 = vsub.s32 0, %v707
  %v709 = vrot.slane %v704, %v708
  %v711 = vmul.f32 %v672, %v709
  %v712 = vmul.f32 %v673, %v709
  %v713 = vmul.f32 %v674, %v709
  %v714 = vmul.f32 %v675, %v709
  %v715 = vmul.f32 %v676, %v709
  %v716 = vmul.f32 %v677, %v709
  %v717 = vmul.f32 %v678, %v709
  %v718 = vmul.f32 %v679, %v709
  %v719 = vmul.f32 %v680, %v709
  %v720 = vmul.f32 %v681, %v709
  %v721 = vmul.f32 %v682, %v709
  %v722 = vmul.f32 %v683, %v709
  %v723 = vmul.f32 %v684, %v709
  %v724 = vmul.f32 %v685, %v709
  %v725 = vmul.f32 %v686, %v709
  %v726 = vmul.f32 %v687, %v709
  %v727 = vmul.f32 %v688, %v709
  %v728 = vmul.f32 %v689, %v709
  %v729 = vmul.f32 %v690, %v709
  %v730 = vmul.f32 %v691, %v709
  %v731 = vmul.f32 %v692, %v709
  %v732 = vmul.f32 %v693, %v709
  %v733 = vmul.f32 %v694, %v709
  %v734 = vmul.f32 %v695, %v709
  %v735 = vmul.f32 %v696, %v709
  %v736 = vmul.f32 %v697, %v709
  %v737 = vmul.f32 %v698, %v709
  %v738 = vmul.f32 %v699, %v709
  %v739 = vmul.f32 %v700, %v709
  %v740 = vmul.f32 %v701, %v709
  %v741 = vmul.f32 %v702, %v709
  %v742 = vmul.f32 %v703, %v709
  %vm743 = vcmask 523264
  %v744 = vsel %vm743, %v711, 0.0
  %745 = vadd.xlane.f32.xlu0 %v744
  %v746 = vpop.xlane.xlu0 %745
  %v747 = vsel %vm743, %v712, 0.0
  %748 = vadd.xlane.f32.xlu0 %v747
  %v749 = vpop.xlane.xlu0 %748
  %v750 = vsel %vm743, %v713, 0.0
  %751 = vadd.xlane.f32.xlu0 %v750
  %v752 = vpop.xlane.xlu0 %751
  %v753 = vsel %vm743, %v714, 0.0
  %754 = vadd.xlane.f32.xlu0 %v753
  %v755 = vpop.xlane.xlu0 %754
  %v756 = vsel %vm743, %v715, 0.0
  %757 = vadd.xlane.f32.xlu0 %v756
  %v758 = vpop.xlane.xlu0 %757
  %v759 = vsel %vm743, %v716, 0.0
  %760 = vadd.xlane.f32.xlu0 %v759
  %v761 = vpop.xlane.xlu0 %760
  %v762 = vsel %vm743, %v717, 0.0
  %763 = vadd.xlane.f32.xlu0 %v762
  %v764 = vpop.xlane.xlu0 %763
  %v765 = vsel %vm743, %v718, 0.0
  %766 = vadd.xlane.f32.xlu0 %v765
  %v767 = vpop.xlane.xlu0 %766
  %v768 = vsel %vm743, %v719, 0.0
  %769 = vadd.xlane.f32.xlu0 %v768
  %v770 = vpop.xlane.xlu0 %769
  %v771 = vsel %vm743, %v720, 0.0
  %772 = vadd.xlane.f32.xlu0 %v771
  %v773 = vpop.xlane.xlu0 %772
  %v774 = vsel %vm743, %v721, 0.0
  %775 = vadd.xlane.f32.xlu0 %v774
  %v776 = vpop.xlane.xlu0 %775
  %v777 = vsel %vm743, %v722, 0.0
  %778 = vadd.xlane.f32.xlu0 %v777
  %v779 = vpop.xlane.xlu0 %778
  %v780 = vsel %vm743, %v723, 0.0
  %781 = vadd.xlane.f32.xlu0 %v780
  %v782 = vpop.xlane.xlu0 %781
  %v783 = vsel %vm743, %v724, 0.0
  %784 = vadd.xlane.f32.xlu0 %v783
  %v785 = vpop.xlane.xlu0 %784
  %v786 = vsel %vm743, %v725, 0.0
  %787 = vadd.xlane.f32.xlu0 %v786
  %v788 = vpop.xlane.xlu0 %787
  %v789 = vsel %vm743, %v726, 0.0
  %790 = vadd.xlane.f32.xlu0 %v789
  %v791 = vpop.xlane.xlu0 %790
  %v792 = vsel %vm743, %v727, 0.0
  %793 = vadd.xlane.f32.xlu0 %v792
  %v794 = vpop.xlane.xlu0 %793
  %v795 = vsel %vm743, %v728, 0.0
  %796 = vadd.xlane.f32.xlu0 %v795
  %v797 = vpop.xlane.xlu0 %796
  %v798 = vsel %vm743, %v729, 0.0
  %799 = vadd.xlane.f32.xlu0 %v798
  %v800 = vpop.xlane.xlu0 %799
  %v801 = vsel %vm743, %v730, 0.0
  %802 = vadd.xlane.f32.xlu0 %v801
  %v803 = vpop.xlane.xlu0 %802
  %v804 = vsel %vm743, %v731, 0.0
  %805 = vadd.xlane.f32.xlu0 %v804
  %v806 = vpop.xlane.xlu0 %805
  %v807 = vsel %vm743, %v732, 0.0
  %808 = vadd.xlane.f32.xlu0 %v807
  %v809 = vpop.xlane.xlu0 %808
  %v810 = vsel %vm743, %v733, 0.0
  %811 = vadd.xlane.f32.xlu0 %v810
  %v812 = vpop.xlane.xlu0 %811
  %v813 = vsel %vm743, %v734, 0.0
  %814 = vadd.xlane.f32.xlu0 %v813
  %v815 = vpop.xlane.xlu0 %814
  %v816 = vsel %vm743, %v735, 0.0
  %817 = vadd.xlane.f32.xlu0 %v816
  %v818 = vpop.xlane.xlu0 %817
  %v819 = vsel %vm743, %v736, 0.0
  %820 = vadd.xlane.f32.xlu0 %v819
  %v821 = vpop.xlane.xlu0 %820
  %v822 = vsel %vm743, %v737, 0.0
  %823 = vadd.xlane.f32.xlu0 %v822
  %v824 = vpop.xlane.xlu0 %823
  %v825 = vsel %vm743, %v738, 0.0
  %826 = vadd.xlane.f32.xlu0 %v825
  %v827 = vpop.xlane.xlu0 %826
  %v828 = vsel %vm743, %v739, 0.0
  %829 = vadd.xlane.f32.xlu0 %v828
  %v830 = vpop.xlane.xlu0 %829
  %v831 = vsel %vm743, %v740, 0.0
  %832 = vadd.xlane.f32.xlu0 %v831
  %v833 = vpop.xlane.xlu0 %832
  %v834 = vsel %vm743, %v741, 0.0
  %835 = vadd.xlane.f32.xlu0 %v834
  %v836 = vpop.xlane.xlu0 %835
  %v837 = vsel %vm743, %v742, 0.0
  %838 = vadd.xlane.f32.xlu0 %v837
  %v839 = vpop.xlane.xlu0 %838
  %s840 = sld [smem:[#allocation2]]
  %v841 = vstv %s840
  %v842 = vadd.f32 %v746, %v841
  %v843 = vadd.f32 %v749, %v841
  %v844 = vadd.f32 %v752, %v841
  %v845 = vadd.f32 %v755, %v841
  %v846 = vadd.f32 %v758, %v841
  %v847 = vadd.f32 %v761, %v841
  %v848 = vadd.f32 %v764, %v841
  %v849 = vadd.f32 %v767, %v841
  %v850 = vadd.f32 %v770, %v841
  %v851 = vadd.f32 %v773, %v841
  %v852 = vadd.f32 %v776, %v841
  %v853 = vadd.f32 %v779, %v841
  %v854 = vadd.f32 %v782, %v841
  %v855 = vadd.f32 %v785, %v841
  %v856 = vadd.f32 %v788, %v841
  %v857 = vadd.f32 %v791, %v841
  %v858 = vadd.f32 %v794, %v841
  %v859 = vadd.f32 %v797, %v841
  %v860 = vadd.f32 %v800, %v841
  %v861 = vadd.f32 %v803, %v841
  %v862 = vadd.f32 %v806, %v841
  %v863 = vadd.f32 %v809, %v841
  %v864 = vadd.f32 %v812, %v841
  %v865 = vadd.f32 %v815, %v841
  %v866 = vadd.f32 %v818, %v841
  %v867 = vadd.f32 %v821, %v841
  %v868 = vadd.f32 %v824, %v841
  %v869 = vadd.f32 %v827, %v841
  %v870 = vadd.f32 %v830, %v841
  %v871 = vadd.f32 %v833, %v841
  %v872 = vadd.f32 %v836, %v841
  %v873 = vadd.f32 %v839, %v841
  %v906 = vlaneseq
  %v907 = vshrl.u32 %v906, 7
  %v908 = vsub.s32 0, %v907
  %v909 = vrot.slane %v842, %v908
  %v910 = vlaneseq
  %v911 = vshrl.u32 %v910, 7
  %v912 = vsub.s32 1, %v911
  %v913 = vrot.slane %v842, %v912
  %v914 = vlaneseq
  %v915 = vshrl.u32 %v914, 7
  %v916 = vsub.s32 2, %v915
  %v917 = vrot.slane %v842, %v916
  %v918 = vlaneseq
  %v919 = vshrl.u32 %v918, 7
  %v920 = vsub.s32 3, %v919
  %v921 = vrot.slane %v842, %v920
  %v922 = vlaneseq
  %v923 = vshrl.u32 %v922, 7
  %v924 = vsub.s32 4, %v923
  %v925 = vrot.slane %v842, %v924
  %v926 = vlaneseq
  %v927 = vshrl.u32 %v926, 7
  %v928 = vsub.s32 5, %v927
  %v929 = vrot.slane %v842, %v928
  %v930 = vlaneseq
  %v931 = vshrl.u32 %v930, 7
  %v932 = vsub.s32 6, %v931
  %v933 = vrot.slane %v842, %v932
  %v934 = vlaneseq
  %v935 = vshrl.u32 %v934, 7
  %v936 = vsub.s32 7, %v935
  %v937 = vrot.slane %v842, %v936
  %v938 = vlaneseq
  %v939 = vshrl.u32 %v938, 7
  %v940 = vsub.s32 0, %v939
  %v941 = vrot.slane %v843, %v940
  %v942 = vlaneseq
  %v943 = vshrl.u32 %v942, 7
  %v944 = vsub.s32 1, %v943
  %v945 = vrot.slane %v843, %v944
  %v946 = vlaneseq
  %v947 = vshrl.u32 %v946, 7
  %v948 = vsub.s32 2, %v947
  %v949 = vrot.slane %v843, %v948
  %v950 = vlaneseq
  %v951 = vshrl.u32 %v950, 7
  %v952 = vsub.s32 3, %v951
  %v953 = vrot.slane %v843, %v952
  %v954 = vlaneseq
  %v955 = vshrl.u32 %v954, 7
  %v956 = vsub.s32 4, %v955
  %v957 = vrot.slane %v843, %v956
  %v958 = vlaneseq
  %v959 = vshrl.u32 %v958, 7
  %v960 = vsub.s32 5, %v959
  %v961 = vrot.slane %v843, %v960
  %v962 = vlaneseq
  %v963 = vshrl.u32 %v962, 7
  %v964 = vsub.s32 6, %v963
  %v965 = vrot.slane %v843, %v964
  %v966 = vlaneseq
  %v967 = vshrl.u32 %v966, 7
  %v968 = vsub.s32 7, %v967
  %v969 = vrot.slane %v843, %v968
  %v970 = vlaneseq
  %v971 = vshrl.u32 %v970, 7
  %v972 = vsub.s32 0, %v971
  %v973 = vrot.slane %v844, %v972
  %v974 = vlaneseq
  %v975 = vshrl.u32 %v974, 7
  %v976 = vsub.s32 1, %v975
  %v977 = vrot.slane %v844, %v976
  %v978 = vlaneseq
  %v979 = vshrl.u32 %v978, 7
  %v980 = vsub.s32 2, %v979
  %v981 = vrot.slane %v844, %v980
  %v982 = vlaneseq
  %v983 = vshrl.u32 %v982, 7
  %v984 = vsub.s32 3, %v983
  %v985 = vrot.slane %v844, %v984
  %v986 = vlaneseq
  %v987 = vshrl.u32 %v986, 7
  %v988 = vsub.s32 4, %v987
  %v989 = vrot.slane %v844, %v988
  %v990 = vlaneseq
  %v991 = vshrl.u32 %v990, 7
  %v992 = vsub.s32 5, %v991
  %v993 = vrot.slane %v844, %v992
  %v994 = vlaneseq
  %v995 = vshrl.u32 %v994, 7
  %v996 = vsub.s32 6, %v995
  %v997 = vrot.slane %v844, %v996
  %v998 = vlaneseq
  %v999 = vshrl.u32 %v998, 7
  %v1000 = vsub.s32 7, %v999
  %v1001 = vrot.slane %v844, %v1000
  %v1002 = vlaneseq
  %v1003 = vshrl.u32 %v1002, 7
  %v1004 = vsub.s32 0, %v1003
  %v1005 = vrot.slane %v845, %v1004
  %v1006 = vlaneseq
  %v1007 = vshrl.u32 %v1006, 7
  %v1008 = vsub.s32 1, %v1007
  %v1009 = vrot.slane %v845, %v1008
  %v1010 = vlaneseq
  %v1011 = vshrl.u32 %v1010, 7
  %v1012 = vsub.s32 2, %v1011
  %v1013 = vrot.slane %v845, %v1012
  %v1014 = vlaneseq
  %v1015 = vshrl.u32 %v1014, 7
  %v1016 = vsub.s32 3, %v1015
  %v1017 = vrot.slane %v845, %v1016
  %v1018 = vlaneseq
  %v1019 = vshrl.u32 %v1018, 7
  %v1020 = vsub.s32 4, %v1019
  %v1021 = vrot.slane %v845, %v1020
  %v1022 = vlaneseq
  %v1023 = vshrl.u32 %v1022, 7
  %v1024 = vsub.s32 5, %v1023
  %v1025 = vrot.slane %v845, %v1024
  %v1026 = vlaneseq
  %v1027 = vshrl.u32 %v1026, 7
  %v1028 = vsub.s32 6, %v1027
  %v1029 = vrot.slane %v845, %v1028
  %v1030 = vlaneseq
  %v1031 = vshrl.u32 %v1030, 7
  %v1032 = vsub.s32 7, %v1031
  %v1033 = vrot.slane %v845, %v1032
  %v1034 = vlaneseq
  %v1035 = vshrl.u32 %v1034, 7
  %v1036 = vsub.s32 0, %v1035
  %v1037 = vrot.slane %v846, %v1036
  %v1038 = vlaneseq
  %v1039 = vshrl.u32 %v1038, 7
  %v1040 = vsub.s32 1, %v1039
  %v1041 = vrot.slane %v846, %v1040
  %v1042 = vlaneseq
  %v1043 = vshrl.u32 %v1042, 7
  %v1044 = vsub.s32 2, %v1043
  %v1045 = vrot.slane %v846, %v1044
  %v1046 = vlaneseq
  %v1047 = vshrl.u32 %v1046, 7
  %v1048 = vsub.s32 3, %v1047
  %v1049 = vrot.slane %v846, %v1048
  %v1050 = vlaneseq
  %v1051 = vshrl.u32 %v1050, 7
  %v1052 = vsub.s32 4, %v1051
  %v1053 = vrot.slane %v846, %v1052
  %v1054 = vlaneseq
  %v1055 = vshrl.u32 %v1054, 7
  %v1056 = vsub.s32 5, %v1055
  %v1057 = vrot.slane %v846, %v1056
  %v1058 = vlaneseq
  %v1059 = vshrl.u32 %v1058, 7
  %v1060 = vsub.s32 6, %v1059
  %v1061 = vrot.slane %v846, %v1060
  %v1062 = vlaneseq
  %v1063 = vshrl.u32 %v1062, 7
  %v1064 = vsub.s32 7, %v1063
  %v1065 = vrot.slane %v846, %v1064
  %v1066 = vlaneseq
  %v1067 = vshrl.u32 %v1066, 7
  %v1068 = vsub.s32 0, %v1067
  %v1069 = vrot.slane %v847, %v1068
  %v1070 = vlaneseq
  %v1071 = vshrl.u32 %v1070, 7
  %v1072 = vsub.s32 1, %v1071
  %v1073 = vrot.slane %v847, %v1072
  %v1074 = vlaneseq
  %v1075 = vshrl.u32 %v1074, 7
  %v1076 = vsub.s32 2, %v1075
  %v1077 = vrot.slane %v847, %v1076
  %v1078 = vlaneseq
  %v1079 = vshrl.u32 %v1078, 7
  %v1080 = vsub.s32 3, %v1079
  %v1081 = vrot.slane %v847, %v1080
  %v1082 = vlaneseq
  %v1083 = vshrl.u32 %v1082, 7
  %v1084 = vsub.s32 4, %v1083
  %v1085 = vrot.slane %v847, %v1084
  %v1086 = vlaneseq
  %v1087 = vshrl.u32 %v1086, 7
  %v1088 = vsub.s32 5, %v1087
  %v1089 = vrot.slane %v847, %v1088
  %v1090 = vlaneseq
  %v1091 = vshrl.u32 %v1090, 7
  %v1092 = vsub.s32 6, %v1091
  %v1093 = vrot.slane %v847, %v1092
  %v1094 = vlaneseq
  %v1095 = vshrl.u32 %v1094, 7
  %v1096 = vsub.s32 7, %v1095
  %v1097 = vrot.slane %v847, %v1096
  %v1098 = vlaneseq
  %v1099 = vshrl.u32 %v1098, 7
  %v1100 = vsub.s32 0, %v1099
  %v1101 = vrot.slane %v848, %v1100
  %v1102 = vlaneseq
  %v1103 = vshrl.u32 %v1102, 7
  %v1104 = vsub.s32 1, %v1103
  %v1105 = vrot.slane %v848, %v1104
  %v1106 = vlaneseq
  %v1107 = vshrl.u32 %v1106, 7
  %v1108 = vsub.s32 2, %v1107
  %v1109 = vrot.slane %v848, %v1108
  %v1110 = vlaneseq
  %v1111 = vshrl.u32 %v1110, 7
  %v1112 = vsub.s32 3, %v1111
  %v1113 = vrot.slane %v848, %v1112
  %v1114 = vlaneseq
  %v1115 = vshrl.u32 %v1114, 7
  %v1116 = vsub.s32 4, %v1115
  %v1117 = vrot.slane %v848, %v1116
  %v1118 = vlaneseq
  %v1119 = vshrl.u32 %v1118, 7
  %v1120 = vsub.s32 5, %v1119
  %v1121 = vrot.slane %v848, %v1120
  %v1122 = vlaneseq
  %v1123 = vshrl.u32 %v1122, 7
  %v1124 = vsub.s32 6, %v1123
  %v1125 = vrot.slane %v848, %v1124
  %v1126 = vlaneseq
  %v1127 = vshrl.u32 %v1126, 7
  %v1128 = vsub.s32 7, %v1127
  %v1129 = vrot.slane %v848, %v1128
  %v1130 = vlaneseq
  %v1131 = vshrl.u32 %v1130, 7
  %v1132 = vsub.s32 0, %v1131
  %v1133 = vrot.slane %v849, %v1132
  %v1134 = vlaneseq
  %v1135 = vshrl.u32 %v1134, 7
  %v1136 = vsub.s32 1, %v1135
  %v1137 = vrot.slane %v849, %v1136
  %v1138 = vlaneseq
  %v1139 = vshrl.u32 %v1138, 7
  %v1140 = vsub.s32 2, %v1139
  %v1141 = vrot.slane %v849, %v1140
  %v1142 = vlaneseq
  %v1143 = vshrl.u32 %v1142, 7
  %v1144 = vsub.s32 3, %v1143
  %v1145 = vrot.slane %v849, %v1144
  %v1146 = vlaneseq
  %v1147 = vshrl.u32 %v1146, 7
  %v1148 = vsub.s32 4, %v1147
  %v1149 = vrot.slane %v849, %v1148
  %v1150 = vlaneseq
  %v1151 = vshrl.u32 %v1150, 7
  %v1152 = vsub.s32 5, %v1151
  %v1153 = vrot.slane %v849, %v1152
  %v1154 = vlaneseq
  %v1155 = vshrl.u32 %v1154, 7
  %v1156 = vsub.s32 6, %v1155
  %v1157 = vrot.slane %v849, %v1156
  %v1158 = vlaneseq
  %v1159 = vshrl.u32 %v1158, 7
  %v1160 = vsub.s32 7, %v1159
  %v1161 = vrot.slane %v849, %v1160
  %v1162 = vlaneseq
  %v1163 = vshrl.u32 %v1162, 7
  %v1164 = vsub.s32 0, %v1163
  %v1165 = vrot.slane %v850, %v1164
  %v1166 = vlaneseq
  %v1167 = vshrl.u32 %v1166, 7
  %v1168 = vsub.s32 1, %v1167
  %v1169 = vrot.slane %v850, %v1168
  %v1170 = vlaneseq
  %v1171 = vshrl.u32 %v1170, 7
  %v1172 = vsub.s32 2, %v1171
  %v1173 = vrot.slane %v850, %v1172
  %v1174 = vlaneseq
  %v1175 = vshrl.u32 %v1174, 7
  %v1176 = vsub.s32 3, %v1175
  %v1177 = vrot.slane %v850, %v1176
  %v1178 = vlaneseq
  %v1179 = vshrl.u32 %v1178, 7
  %v1180 = vsub.s32 4, %v1179
  %v1181 = vrot.slane %v850, %v1180
  %v1182 = vlaneseq
  %v1183 = vshrl.u32 %v1182, 7
  %v1184 = vsub.s32 5, %v1183
  %v1185 = vrot.slane %v850, %v1184
  %v1186 = vlaneseq
  %v1187 = vshrl.u32 %v1186, 7
  %v1188 = vsub.s32 6, %v1187
  %v1189 = vrot.slane %v850, %v1188
  %v1190 = vlaneseq
  %v1191 = vshrl.u32 %v1190, 7
  %v1192 = vsub.s32 7, %v1191
  %v1193 = vrot.slane %v850, %v1192
  %v1194 = vlaneseq
  %v1195 = vshrl.u32 %v1194, 7
  %v1196 = vsub.s32 0, %v1195
  %v1197 = vrot.slane %v851, %v1196
  %v1198 = vlaneseq
  %v1199 = vshrl.u32 %v1198, 7
  %v1200 = vsub.s32 1, %v1199
  %v1201 = vrot.slane %v851, %v1200
  %v1202 = vlaneseq
  %v1203 = vshrl.u32 %v1202, 7
  %v1204 = vsub.s32 2, %v1203
  %v1205 = vrot.slane %v851, %v1204
  %v1206 = vlaneseq
  %v1207 = vshrl.u32 %v1206, 7
  %v1208 = vsub.s32 3, %v1207
  %v1209 = vrot.slane %v851, %v1208
  %v1210 = vlaneseq
  %v1211 = vshrl.u32 %v1210, 7
  %v1212 = vsub.s32 4, %v1211
  %v1213 = vrot.slane %v851, %v1212
  %v1214 = vlaneseq
  %v1215 = vshrl.u32 %v1214, 7
  %v1216 = vsub.s32 5, %v1215
  %v1217 = vrot.slane %v851, %v1216
  %v1218 = vlaneseq
  %v1219 = vshrl.u32 %v1218, 7
  %v1220 = vsub.s32 6, %v1219
  %v1221 = vrot.slane %v851, %v1220
  %v1222 = vlaneseq
  %v1223 = vshrl.u32 %v1222, 7
  %v1224 = vsub.s32 7, %v1223
  %v1225 = vrot.slane %v851, %v1224
  %v1226 = vlaneseq
  %v1227 = vshrl.u32 %v1226, 7
  %v1228 = vsub.s32 0, %v1227
  %v1229 = vrot.slane %v852, %v1228
  %v1230 = vlaneseq
  %v1231 = vshrl.u32 %v1230, 7
  %v1232 = vsub.s32 1, %v1231
  %v1233 = vrot.slane %v852, %v1232
  %v1234 = vlaneseq
  %v1235 = vshrl.u32 %v1234, 7
  %v1236 = vsub.s32 2, %v1235
  %v1237 = vrot.slane %v852, %v1236
  %v1238 = vlaneseq
  %v1239 = vshrl.u32 %v1238, 7
  %v1240 = vsub.s32 3, %v1239
  %v1241 = vrot.slane %v852, %v1240
  %v1242 = vlaneseq
  %v1243 = vshrl.u32 %v1242, 7
  %v1244 = vsub.s32 4, %v1243
  %v1245 = vrot.slane %v852, %v1244
  %v1246 = vlaneseq
  %v1247 = vshrl.u32 %v1246, 7
  %v1248 = vsub.s32 5, %v1247
  %v1249 = vrot.slane %v852, %v1248
  %v1250 = vlaneseq
  %v1251 = vshrl.u32 %v1250, 7
  %v1252 = vsub.s32 6, %v1251
  %v1253 = vrot.slane %v852, %v1252
  %v1254 = vlaneseq
  %v1255 = vshrl.u32 %v1254, 7
  %v1256 = vsub.s32 7, %v1255
  %v1257 = vrot.slane %v852, %v1256
  %v1258 = vlaneseq
  %v1259 = vshrl.u32 %v1258, 7
  %v1260 = vsub.s32 0, %v1259
  %v1261 = vrot.slane %v853, %v1260
  %v1262 = vlaneseq
  %v1263 = vshrl.u32 %v1262, 7
  %v1264 = vsub.s32 1, %v1263
  %v1265 = vrot.slane %v853, %v1264
  %v1266 = vlaneseq
  %v1267 = vshrl.u32 %v1266, 7
  %v1268 = vsub.s32 2, %v1267
  %v1269 = vrot.slane %v853, %v1268
  %v1270 = vlaneseq
  %v1271 = vshrl.u32 %v1270, 7
  %v1272 = vsub.s32 3, %v1271
  %v1273 = vrot.slane %v853, %v1272
  %v1274 = vlaneseq
  %v1275 = vshrl.u32 %v1274, 7
  %v1276 = vsub.s32 4, %v1275
  %v1277 = vrot.slane %v853, %v1276
  %v1278 = vlaneseq
  %v1279 = vshrl.u32 %v1278, 7
  %v1280 = vsub.s32 5, %v1279
  %v1281 = vrot.slane %v853, %v1280
  %v1282 = vlaneseq
  %v1283 = vshrl.u32 %v1282, 7
  %v1284 = vsub.s32 6, %v1283
  %v1285 = vrot.slane %v853, %v1284
  %v1286 = vlaneseq
  %v1287 = vshrl.u32 %v1286, 7
  %v1288 = vsub.s32 7, %v1287
  %v1289 = vrot.slane %v853, %v1288
  %v1290 = vlaneseq
  %v1291 = vshrl.u32 %v1290, 7
  %v1292 = vsub.s32 0, %v1291
  %v1293 = vrot.slane %v854, %v1292
  %v1294 = vlaneseq
  %v1295 = vshrl.u32 %v1294, 7
  %v1296 = vsub.s32 1, %v1295
  %v1297 = vrot.slane %v854, %v1296
  %v1298 = vlaneseq
  %v1299 = vshrl.u32 %v1298, 7
  %v1300 = vsub.s32 2, %v1299
  %v1301 = vrot.slane %v854, %v1300
  %v1302 = vlaneseq
  %v1303 = vshrl.u32 %v1302, 7
  %v1304 = vsub.s32 3, %v1303
  %v1305 = vrot.slane %v854, %v1304
  %v1306 = vlaneseq
  %v1307 = vshrl.u32 %v1306, 7
  %v1308 = vsub.s32 4, %v1307
  %v1309 = vrot.slane %v854, %v1308
  %v1310 = vlaneseq
  %v1311 = vshrl.u32 %v1310, 7
  %v1312 = vsub.s32 5, %v1311
  %v1313 = vrot.slane %v854, %v1312
  %v1314 = vlaneseq
  %v1315 = vshrl.u32 %v1314, 7
  %v1316 = vsub.s32 6, %v1315
  %v1317 = vrot.slane %v854, %v1316
  %v1318 = vlaneseq
  %v1319 = vshrl.u32 %v1318, 7
  %v1320 = vsub.s32 7, %v1319
  %v1321 = vrot.slane %v854, %v1320
  %v1322 = vlaneseq
  %v1323 = vshrl.u32 %v1322, 7
  %v1324 = vsub.s32 0, %v1323
  %v1325 = vrot.slane %v855, %v1324
  %v1326 = vlaneseq
  %v1327 = vshrl.u32 %v1326, 7
  %v1328 = vsub.s32 1, %v1327
  %v1329 = vrot.slane %v855, %v1328
  %v1330 = vlaneseq
  %v1331 = vshrl.u32 %v1330, 7
  %v1332 = vsub.s32 2, %v1331
  %v1333 = vrot.slane %v855, %v1332
  %v1334 = vlaneseq
  %v1335 = vshrl.u32 %v1334, 7
  %v1336 = vsub.s32 3, %v1335
  %v1337 = vrot.slane %v855, %v1336
  %v1338 = vlaneseq
  %v1339 = vshrl.u32 %v1338, 7
  %v1340 = vsub.s32 4, %v1339
  %v1341 = vrot.slane %v855, %v1340
  %v1342 = vlaneseq
  %v1343 = vshrl.u32 %v1342, 7
  %v1344 = vsub.s32 5, %v1343
  %v1345 = vrot.slane %v855, %v1344
  %v1346 = vlaneseq
  %v1347 = vshrl.u32 %v1346, 7
  %v1348 = vsub.s32 6, %v1347
  %v1349 = vrot.slane %v855, %v1348
  %v1350 = vlaneseq
  %v1351 = vshrl.u32 %v1350, 7
  %v1352 = vsub.s32 7, %v1351
  %v1353 = vrot.slane %v855, %v1352
  %v1354 = vlaneseq
  %v1355 = vshrl.u32 %v1354, 7
  %v1356 = vsub.s32 0, %v1355
  %v1357 = vrot.slane %v856, %v1356
  %v1358 = vlaneseq
  %v1359 = vshrl.u32 %v1358, 7
  %v1360 = vsub.s32 1, %v1359
  %v1361 = vrot.slane %v856, %v1360
  %v1362 = vlaneseq
  %v1363 = vshrl.u32 %v1362, 7
  %v1364 = vsub.s32 2, %v1363
  %v1365 = vrot.slane %v856, %v1364
  %v1366 = vlaneseq
  %v1367 = vshrl.u32 %v1366, 7
  %v1368 = vsub.s32 3, %v1367
  %v1369 = vrot.slane %v856, %v1368
  %v1370 = vlaneseq
  %v1371 = vshrl.u32 %v1370, 7
  %v1372 = vsub.s32 4, %v1371
  %v1373 = vrot.slane %v856, %v1372
  %v1374 = vlaneseq
  %v1375 = vshrl.u32 %v1374, 7
  %v1376 = vsub.s32 5, %v1375
  %v1377 = vrot.slane %v856, %v1376
  %v1378 = vlaneseq
  %v1379 = vshrl.u32 %v1378, 7
  %v1380 = vsub.s32 6, %v1379
  %v1381 = vrot.slane %v856, %v1380
  %v1382 = vlaneseq
  %v1383 = vshrl.u32 %v1382, 7
  %v1384 = vsub.s32 7, %v1383
  %v1385 = vrot.slane %v856, %v1384
  %v1386 = vlaneseq
  %v1387 = vshrl.u32 %v1386, 7
  %v1388 = vsub.s32 0, %v1387
  %v1389 = vrot.slane %v857, %v1388
  %v1390 = vlaneseq
  %v1391 = vshrl.u32 %v1390, 7
  %v1392 = vsub.s32 1, %v1391
  %v1393 = vrot.slane %v857, %v1392
  %v1394 = vlaneseq
  %v1395 = vshrl.u32 %v1394, 7
  %v1396 = vsub.s32 2, %v1395
  %v1397 = vrot.slane %v857, %v1396
  %v1398 = vlaneseq
  %v1399 = vshrl.u32 %v1398, 7
  %v1400 = vsub.s32 3, %v1399
  %v1401 = vrot.slane %v857, %v1400
  %v1402 = vlaneseq
  %v1403 = vshrl.u32 %v1402, 7
  %v1404 = vsub.s32 4, %v1403
  %v1405 = vrot.slane %v857, %v1404
  %v1406 = vlaneseq
  %v1407 = vshrl.u32 %v1406, 7
  %v1408 = vsub.s32 5, %v1407
  %v1409 = vrot.slane %v857, %v1408
  %v1410 = vlaneseq
  %v1411 = vshrl.u32 %v1410, 7
  %v1412 = vsub.s32 6, %v1411
  %v1413 = vrot.slane %v857, %v1412
  %v1414 = vlaneseq
  %v1415 = vshrl.u32 %v1414, 7
  %v1416 = vsub.s32 7, %v1415
  %v1417 = vrot.slane %v857, %v1416
  %v1418 = vlaneseq
  %v1419 = vshrl.u32 %v1418, 7
  %v1420 = vsub.s32 0, %v1419
  %v1421 = vrot.slane %v858, %v1420
  %v1422 = vlaneseq
  %v1423 = vshrl.u32 %v1422, 7
  %v1424 = vsub.s32 1, %v1423
  %v1425 = vrot.slane %v858, %v1424
  %v1426 = vlaneseq
  %v1427 = vshrl.u32 %v1426, 7
  %v1428 = vsub.s32 2, %v1427
  %v1429 = vrot.slane %v858, %v1428
  %v1430 = vlaneseq
  %v1431 = vshrl.u32 %v1430, 7
  %v1432 = vsub.s32 3, %v1431
  %v1433 = vrot.slane %v858, %v1432
  %v1434 = vlaneseq
  %v1435 = vshrl.u32 %v1434, 7
  %v1436 = vsub.s32 4, %v1435
  %v1437 = vrot.slane %v858, %v1436
  %v1438 = vlaneseq
  %v1439 = vshrl.u32 %v1438, 7
  %v1440 = vsub.s32 5, %v1439
  %v1441 = vrot.slane %v858, %v1440
  %v1442 = vlaneseq
  %v1443 = vshrl.u32 %v1442, 7
  %v1444 = vsub.s32 6, %v1443
  %v1445 = vrot.slane %v858, %v1444
  %v1446 = vlaneseq
  %v1447 = vshrl.u32 %v1446, 7
  %v1448 = vsub.s32 7, %v1447
  %v1449 = vrot.slane %v858, %v1448
  %v1450 = vlaneseq
  %v1451 = vshrl.u32 %v1450, 7
  %v1452 = vsub.s32 0, %v1451
  %v1453 = vrot.slane %v859, %v1452
  %v1454 = vlaneseq
  %v1455 = vshrl.u32 %v1454, 7
  %v1456 = vsub.s32 1, %v1455
  %v1457 = vrot.slane %v859, %v1456
  %v1458 = vlaneseq
  %v1459 = vshrl.u32 %v1458, 7
  %v1460 = vsub.s32 2, %v1459
  %v1461 = vrot.slane %v859, %v1460
  %v1462 = vlaneseq
  %v1463 = vshrl.u32 %v1462, 7
  %v1464 = vsub.s32 3, %v1463
  %v1465 = vrot.slane %v859, %v1464
  %v1466 = vlaneseq
  %v1467 = vshrl.u32 %v1466, 7
  %v1468 = vsub.s32 4, %v1467
  %v1469 = vrot.slane %v859, %v1468
  %v1470 = vlaneseq
  %v1471 = vshrl.u32 %v1470, 7
  %v1472 = vsub.s32 5, %v1471
  %v1473 = vrot.slane %v859, %v1472
  %v1474 = vlaneseq
  %v1475 = vshrl.u32 %v1474, 7
  %v1476 = vsub.s32 6, %v1475
  %v1477 = vrot.slane %v859, %v1476
  %v1478 = vlaneseq
  %v1479 = vshrl.u32 %v1478, 7
  %v1480 = vsub.s32 7, %v1479
  %v1481 = vrot.slane %v859, %v1480
  %v1482 = vlaneseq
  %v1483 = vshrl.u32 %v1482, 7
  %v1484 = vsub.s32 0, %v1483
  %v1485 = vrot.slane %v860, %v1484
  %v1486 = vlaneseq
  %v1487 = vshrl.u32 %v1486, 7
  %v1488 = vsub.s32 1, %v1487
  %v1489 = vrot.slane %v860, %v1488
  %v1490 = vlaneseq
  %v1491 = vshrl.u32 %v1490, 7
  %v1492 = vsub.s32 2, %v1491
  %v1493 = vrot.slane %v860, %v1492
  %v1494 = vlaneseq
  %v1495 = vshrl.u32 %v1494, 7
  %v1496 = vsub.s32 3, %v1495
  %v1497 = vrot.slane %v860, %v1496
  %v1498 = vlaneseq
  %v1499 = vshrl.u32 %v1498, 7
  %v1500 = vsub.s32 4, %v1499
  %v1501 = vrot.slane %v860, %v1500
  %v1502 = vlaneseq
  %v1503 = vshrl.u32 %v1502, 7
  %v1504 = vsub.s32 5, %v1503
  %v1505 = vrot.slane %v860, %v1504
  %v1506 = vlaneseq
  %v1507 = vshrl.u32 %v1506, 7
  %v1508 = vsub.s32 6, %v1507
  %v1509 = vrot.slane %v860, %v1508
  %v1510 = vlaneseq
  %v1511 = vshrl.u32 %v1510, 7
  %v1512 = vsub.s32 7, %v1511
  %v1513 = vrot.slane %v860, %v1512
  %v1514 = vlaneseq
  %v1515 = vshrl.u32 %v1514, 7
  %v1516 = vsub.s32 0, %v1515
  %v1517 = vrot.slane %v861, %v1516
  %v1518 = vlaneseq
  %v1519 = vshrl.u32 %v1518, 7
  %v1520 = vsub.s32 1, %v1519
  %v1521 = vrot.slane %v861, %v1520
  %v1522 = vlaneseq
  %v1523 = vshrl.u32 %v1522, 7
  %v1524 = vsub.s32 2, %v1523
  %v1525 = vrot.slane %v861, %v1524
  %v1526 = vlaneseq
  %v1527 = vshrl.u32 %v1526, 7
  %v1528 = vsub.s32 3, %v1527
  %v1529 = vrot.slane %v861, %v1528
  %v1530 = vlaneseq
  %v1531 = vshrl.u32 %v1530, 7
  %v1532 = vsub.s32 4, %v1531
  %v1533 = vrot.slane %v861, %v1532
  %v1534 = vlaneseq
  %v1535 = vshrl.u32 %v1534, 7
  %v1536 = vsub.s32 5, %v1535
  %v1537 = vrot.slane %v861, %v1536
  %v1538 = vlaneseq
  %v1539 = vshrl.u32 %v1538, 7
  %v1540 = vsub.s32 6, %v1539
  %v1541 = vrot.slane %v861, %v1540
  %v1542 = vlaneseq
  %v1543 = vshrl.u32 %v1542, 7
  %v1544 = vsub.s32 7, %v1543
  %v1545 = vrot.slane %v861, %v1544
  %v1546 = vlaneseq
  %v1547 = vshrl.u32 %v1546, 7
  %v1548 = vsub.s32 0, %v1547
  %v1549 = vrot.slane %v862, %v1548
  %v1550 = vlaneseq
  %v1551 = vshrl.u32 %v1550, 7
  %v1552 = vsub.s32 1, %v1551
  %v1553 = vrot.slane %v862, %v1552
  %v1554 = vlaneseq
  %v1555 = vshrl.u32 %v1554, 7
  %v1556 = vsub.s32 2, %v1555
  %v1557 = vrot.slane %v862, %v1556
  %v1558 = vlaneseq
  %v1559 = vshrl.u32 %v1558, 7
  %v1560 = vsub.s32 3, %v1559
  %v1561 = vrot.slane %v862, %v1560
  %v1562 = vlaneseq
  %v1563 = vshrl.u32 %v1562, 7
  %v1564 = vsub.s32 4, %v1563
  %v1565 = vrot.slane %v862, %v1564
  %v1566 = vlaneseq
  %v1567 = vshrl.u32 %v1566, 7
  %v1568 = vsub.s32 5, %v1567
  %v1569 = vrot.slane %v862, %v1568
  %v1570 = vlaneseq
  %v1571 = vshrl.u32 %v1570, 7
  %v1572 = vsub.s32 6, %v1571
  %v1573 = vrot.slane %v862, %v1572
  %v1574 = vlaneseq
  %v1575 = vshrl.u32 %v1574, 7
  %v1576 = vsub.s32 7, %v1575
  %v1577 = vrot.slane %v862, %v1576
  %v1578 = vlaneseq
  %v1579 = vshrl.u32 %v1578, 7
  %v1580 = vsub.s32 0, %v1579
  %v1581 = vrot.slane %v863, %v1580
  %v1582 = vlaneseq
  %v1583 = vshrl.u32 %v1582, 7
  %v1584 = vsub.s32 1, %v1583
  %v1585 = vrot.slane %v863, %v1584
  %v1586 = vlaneseq
  %v1587 = vshrl.u32 %v1586, 7
  %v1588 = vsub.s32 2, %v1587
  %v1589 = vrot.slane %v863, %v1588
  %v1590 = vlaneseq
  %v1591 = vshrl.u32 %v1590, 7
  %v1592 = vsub.s32 3, %v1591
  %v1593 = vrot.slane %v863, %v1592
  %v1594 = vlaneseq
  %v1595 = vshrl.u32 %v1594, 7
  %v1596 = vsub.s32 4, %v1595
  %v1597 = vrot.slane %v863, %v1596
  %v1598 = vlaneseq
  %v1599 = vshrl.u32 %v1598, 7
  %v1600 = vsub.s32 5, %v1599
  %v1601 = vrot.slane %v863, %v1600
  %v1602 = vlaneseq
  %v1603 = vshrl.u32 %v1602, 7
  %v1604 = vsub.s32 6, %v1603
  %v1605 = vrot.slane %v863, %v1604
  %v1606 = vlaneseq
  %v1607 = vshrl.u32 %v1606, 7
  %v1608 = vsub.s32 7, %v1607
  %v1609 = vrot.slane %v863, %v1608
  %v1610 = vlaneseq
  %v1611 = vshrl.u32 %v1610, 7
  %v1612 = vsub.s32 0, %v1611
  %v1613 = vrot.slane %v864, %v1612
  %v1614 = vlaneseq
  %v1615 = vshrl.u32 %v1614, 7
  %v1616 = vsub.s32 1, %v1615
  %v1617 = vrot.slane %v864, %v1616
  %v1618 = vlaneseq
  %v1619 = vshrl.u32 %v1618, 7
  %v1620 = vsub.s32 2, %v1619
  %v1621 = vrot.slane %v864, %v1620
  %v1622 = vlaneseq
  %v1623 = vshrl.u32 %v1622, 7
  %v1624 = vsub.s32 3, %v1623
  %v1625 = vrot.slane %v864, %v1624
  %v1626 = vlaneseq
  %v1627 = vshrl.u32 %v1626, 7
  %v1628 = vsub.s32 4, %v1627
  %v1629 = vrot.slane %v864, %v1628
  %v1630 = vlaneseq
  %v1631 = vshrl.u32 %v1630, 7
  %v1632 = vsub.s32 5, %v1631
  %v1633 = vrot.slane %v864, %v1632
  %v1634 = vlaneseq
  %v1635 = vshrl.u32 %v1634, 7
  %v1636 = vsub.s32 6, %v1635
  %v1637 = vrot.slane %v864, %v1636
  %v1638 = vlaneseq
  %v1639 = vshrl.u32 %v1638, 7
  %v1640 = vsub.s32 7, %v1639
  %v1641 = vrot.slane %v864, %v1640
  %v1642 = vlaneseq
  %v1643 = vshrl.u32 %v1642, 7
  %v1644 = vsub.s32 0, %v1643
  %v1645 = vrot.slane %v865, %v1644
  %v1646 = vlaneseq
  %v1647 = vshrl.u32 %v1646, 7
  %v1648 = vsub.s32 1, %v1647
  %v1649 = vrot.slane %v865, %v1648
  %v1650 = vlaneseq
  %v1651 = vshrl.u32 %v1650, 7
  %v1652 = vsub.s32 2, %v1651
  %v1653 = vrot.slane %v865, %v1652
  %v1654 = vlaneseq
  %v1655 = vshrl.u32 %v1654, 7
  %v1656 = vsub.s32 3, %v1655
  %v1657 = vrot.slane %v865, %v1656
  %v1658 = vlaneseq
  %v1659 = vshrl.u32 %v1658, 7
  %v1660 = vsub.s32 4, %v1659
  %v1661 = vrot.slane %v865, %v1660
  %v1662 = vlaneseq
  %v1663 = vshrl.u32 %v1662, 7
  %v1664 = vsub.s32 5, %v1663
  %v1665 = vrot.slane %v865, %v1664
  %v1666 = vlaneseq
  %v1667 = vshrl.u32 %v1666, 7
  %v1668 = vsub.s32 6, %v1667
  %v1669 = vrot.slane %v865, %v1668
  %v1670 = vlaneseq
  %v1671 = vshrl.u32 %v1670, 7
  %v1672 = vsub.s32 7, %v1671
  %v1673 = vrot.slane %v865, %v1672
  %v1674 = vlaneseq
  %v1675 = vshrl.u32 %v1674, 7
  %v1676 = vsub.s32 0, %v1675
  %v1677 = vrot.slane %v866, %v1676
  %v1678 = vlaneseq
  %v1679 = vshrl.u32 %v1678, 7
  %v1680 = vsub.s32 1, %v1679
  %v1681 = vrot.slane %v866, %v1680
  %v1682 = vlaneseq
  %v1683 = vshrl.u32 %v1682, 7
  %v1684 = vsub.s32 2, %v1683
  %v1685 = vrot.slane %v866, %v1684
  %v1686 = vlaneseq
  %v1687 = vshrl.u32 %v1686, 7
  %v1688 = vsub.s32 3, %v1687
  %v1689 = vrot.slane %v866, %v1688
  %v1690 = vlaneseq
  %v1691 = vshrl.u32 %v1690, 7
  %v1692 = vsub.s32 4, %v1691
  %v1693 = vrot.slane %v866, %v1692
  %v1694 = vlaneseq
  %v1695 = vshrl.u32 %v1694, 7
  %v1696 = vsub.s32 5, %v1695
  %v1697 = vrot.slane %v866, %v1696
  %v1698 = vlaneseq
  %v1699 = vshrl.u32 %v1698, 7
  %v1700 = vsub.s32 6, %v1699
  %v1701 = vrot.slane %v866, %v1700
  %v1702 = vlaneseq
  %v1703 = vshrl.u32 %v1702, 7
  %v1704 = vsub.s32 7, %v1703
  %v1705 = vrot.slane %v866, %v1704
  %v1706 = vlaneseq
  %v1707 = vshrl.u32 %v1706, 7
  %v1708 = vsub.s32 0, %v1707
  %v1709 = vrot.slane %v867, %v1708
  %v1710 = vlaneseq
  %v1711 = vshrl.u32 %v1710, 7
  %v1712 = vsub.s32 1, %v1711
  %v1713 = vrot.slane %v867, %v1712
  %v1714 = vlaneseq
  %v1715 = vshrl.u32 %v1714, 7
  %v1716 = vsub.s32 2, %v1715
  %v1717 = vrot.slane %v867, %v1716
  %v1718 = vlaneseq
  %v1719 = vshrl.u32 %v1718, 7
  %v1720 = vsub.s32 3, %v1719
  %v1721 = vrot.slane %v867, %v1720
  %v1722 = vlaneseq
  %v1723 = vshrl.u32 %v1722, 7
  %v1724 = vsub.s32 4, %v1723
  %v1725 = vrot.slane %v867, %v1724
  %v1726 = vlaneseq
  %v1727 = vshrl.u32 %v1726, 7
  %v1728 = vsub.s32 5, %v1727
  %v1729 = vrot.slane %v867, %v1728
  %v1730 = vlaneseq
  %v1731 = vshrl.u32 %v1730, 7
  %v1732 = vsub.s32 6, %v1731
  %v1733 = vrot.slane %v867, %v1732
  %v1734 = vlaneseq
  %v1735 = vshrl.u32 %v1734, 7
  %v1736 = vsub.s32 7, %v1735
  %v1737 = vrot.slane %v867, %v1736
  %v1738 = vlaneseq
  %v1739 = vshrl.u32 %v1738, 7
  %v1740 = vsub.s32 0, %v1739
  %v1741 = vrot.slane %v868, %v1740
  %v1742 = vlaneseq
  %v1743 = vshrl.u32 %v1742, 7
  %v1744 = vsub.s32 1, %v1743
  %v1745 = vrot.slane %v868, %v1744
  %v1746 = vlaneseq
  %v1747 = vshrl.u32 %v1746, 7
  %v1748 = vsub.s32 2, %v1747
  %v1749 = vrot.slane %v868, %v1748
  %v1750 = vlaneseq
  %v1751 = vshrl.u32 %v1750, 7
  %v1752 = vsub.s32 3, %v1751
  %v1753 = vrot.slane %v868, %v1752
  %v1754 = vlaneseq
  %v1755 = vshrl.u32 %v1754, 7
  %v1756 = vsub.s32 4, %v1755
  %v1757 = vrot.slane %v868, %v1756
  %v1758 = vlaneseq
  %v1759 = vshrl.u32 %v1758, 7
  %v1760 = vsub.s32 5, %v1759
  %v1761 = vrot.slane %v868, %v1760
  %v1762 = vlaneseq
  %v1763 = vshrl.u32 %v1762, 7
  %v1764 = vsub.s32 6, %v1763
  %v1765 = vrot.slane %v868, %v1764
  %v1766 = vlaneseq
  %v1767 = vshrl.u32 %v1766, 7
  %v1768 = vsub.s32 7, %v1767
  %v1769 = vrot.slane %v868, %v1768
  %v1770 = vlaneseq
  %v1771 = vshrl.u32 %v1770, 7
  %v1772 = vsub.s32 0, %v1771
  %v1773 = vrot.slane %v869, %v1772
  %v1774 = vlaneseq
  %v1775 = vshrl.u32 %v1774, 7
  %v1776 = vsub.s32 1, %v1775
  %v1777 = vrot.slane %v869, %v1776
  %v1778 = vlaneseq
  %v1779 = vshrl.u32 %v1778, 7
  %v1780 = vsub.s32 2, %v1779
  %v1781 = vrot.slane %v869, %v1780
  %v1782 = vlaneseq
  %v1783 = vshrl.u32 %v1782, 7
  %v1784 = vsub.s32 3, %v1783
  %v1785 = vrot.slane %v869, %v1784
  %v1786 = vlaneseq
  %v1787 = vshrl.u32 %v1786, 7
  %v1788 = vsub.s32 4, %v1787
  %v1789 = vrot.slane %v869, %v1788
  %v1790 = vlaneseq
  %v1791 = vshrl.u32 %v1790, 7
  %v1792 = vsub.s32 5, %v1791
  %v1793 = vrot.slane %v869, %v1792
  %v1794 = vlaneseq
  %v1795 = vshrl.u32 %v1794, 7
  %v1796 = vsub.s32 6, %v1795
  %v1797 = vrot.slane %v869, %v1796
  %v1798 = vlaneseq
  %v1799 = vshrl.u32 %v1798, 7
  %v1800 = vsub.s32 7, %v1799
  %v1801 = vrot.slane %v869, %v1800
  %v1802 = vlaneseq
  %v1803 = vshrl.u32 %v1802, 7
  %v1804 = vsub.s32 0, %v1803
  %v1805 = vrot.slane %v870, %v1804
  %v1806 = vlaneseq
  %v1807 = vshrl.u32 %v1806, 7
  %v1808 = vsub.s32 1, %v1807
  %v1809 = vrot.slane %v870, %v1808
  %v1810 = vlaneseq
  %v1811 = vshrl.u32 %v1810, 7
  %v1812 = vsub.s32 2, %v1811
  %v1813 = vrot.slane %v870, %v1812
  %v1814 = vlaneseq
  %v1815 = vshrl.u32 %v1814, 7
  %v1816 = vsub.s32 3, %v1815
  %v1817 = vrot.slane %v870, %v1816
  %v1818 = vlaneseq
  %v1819 = vshrl.u32 %v1818, 7
  %v1820 = vsub.s32 4, %v1819
  %v1821 = vrot.slane %v870, %v1820
  %v1822 = vlaneseq
  %v1823 = vshrl.u32 %v1822, 7
  %v1824 = vsub.s32 5, %v1823
  %v1825 = vrot.slane %v870, %v1824
  %v1826 = vlaneseq
  %v1827 = vshrl.u32 %v1826, 7
  %v1828 = vsub.s32 6, %v1827
  %v1829 = vrot.slane %v870, %v1828
  %v1830 = vlaneseq
  %v1831 = vshrl.u32 %v1830, 7
  %v1832 = vsub.s32 7, %v1831
  %v1833 = vrot.slane %v870, %v1832
  %v1834 = vlaneseq
  %v1835 = vshrl.u32 %v1834, 7
  %v1836 = vsub.s32 0, %v1835
  %v1837 = vrot.slane %v871, %v1836
  %v1838 = vlaneseq
  %v1839 = vshrl.u32 %v1838, 7
  %v1840 = vsub.s32 1, %v1839
  %v1841 = vrot.slane %v871, %v1840
  %v1842 = vlaneseq
  %v1843 = vshrl.u32 %v1842, 7
  %v1844 = vsub.s32 2, %v1843
  %v1845 = vrot.slane %v871, %v1844
  %v1846 = vlaneseq
  %v1847 = vshrl.u32 %v1846, 7
  %v1848 = vsub.s32 3, %v1847
  %v1849 = vrot.slane %v871, %v1848
  %v1850 = vlaneseq
  %v1851 = vshrl.u32 %v1850, 7
  %v1852 = vsub.s32 4, %v1851
  %v1853 = vrot.slane %v871, %v1852
  %v1854 = vlaneseq
  %v1855 = vshrl.u32 %v1854, 7
  %v1856 = vsub.s32 5, %v1855
  %v1857 = vrot.slane %v871, %v1856
  %v1858 = vlaneseq
  %v1859 = vshrl.u32 %v1858, 7
  %v1860 = vsub.s32 6, %v1859
  %v1861 = vrot.slane %v871, %v1860
  %v1862 = vlaneseq
  %v1863 = vshrl.u32 %v1862, 7
  %v1864 = vsub.s32 7, %v1863
  %v1865 = vrot.slane %v871, %v1864
  %v1866 = vlaneseq
  %v1867 = vshrl.u32 %v1866, 7
  %v1868 = vsub.s32 0, %v1867
  %v1869 = vrot.slane %v872, %v1868
  %v1870 = vlaneseq
  %v1871 = vshrl.u32 %v1870, 7
  %v1872 = vsub.s32 1, %v1871
  %v1873 = vrot.slane %v872, %v1872
  %v1874 = vlaneseq
  %v1875 = vshrl.u32 %v1874, 7
  %v1876 = vsub.s32 2, %v1875
  %v1877 = vrot.slane %v872, %v1876
  %v1878 = vlaneseq
  %v1879 = vshrl.u32 %v1878, 7
  %v1880 = vsub.s32 3, %v1879
  %v1881 = vrot.slane %v872, %v1880
  %v1882 = vlaneseq
  %v1883 = vshrl.u32 %v1882, 7
  %v1884 = vsub.s32 4, %v1883
  %v1885 = vrot.slane %v872, %v1884
  %v1886 = vlaneseq
  %v1887 = vshrl.u32 %v1886, 7
  %v1888 = vsub.s32 5, %v1887
  %v1889 = vrot.slane %v872, %v1888
  %v1890 = vlaneseq
  %v1891 = vshrl.u32 %v1890, 7
  %v1892 = vsub.s32 6, %v1891
  %v1893 = vrot.slane %v872, %v1892
  %v1894 = vlaneseq
  %v1895 = vshrl.u32 %v1894, 7
  %v1896 = vsub.s32 7, %v1895
  %v1897 = vrot.slane %v872, %v1896
  %v1898 = vlaneseq
  %v1899 = vshrl.u32 %v1898, 7
  %v1900 = vsub.s32 0, %v1899
  %v1901 = vrot.slane %v873, %v1900
  %v1902 = vlaneseq
  %v1903 = vshrl.u32 %v1902, 7
  %v1904 = vsub.s32 1, %v1903
  %v1905 = vrot.slane %v873, %v1904
  %v1906 = vlaneseq
  %v1907 = vshrl.u32 %v1906, 7
  %v1908 = vsub.s32 2, %v1907
  %v1909 = vrot.slane %v873, %v1908
  %v1910 = vlaneseq
  %v1911 = vshrl.u32 %v1910, 7
  %v1912 = vsub.s32 3, %v1911
  %v1913 = vrot.slane %v873, %v1912
  %v1914 = vlaneseq
  %v1915 = vshrl.u32 %v1914, 7
  %v1916 = vsub.s32 4, %v1915
  %v1917 = vrot.slane %v873, %v1916
  %v1918 = vlaneseq
  %v1919 = vshrl.u32 %v1918, 7
  %v1920 = vsub.s32 5, %v1919
  %v1921 = vrot.slane %v873, %v1920
  %v1922 = vlaneseq
  %v1923 = vshrl.u32 %v1922, 7
  %v1924 = vsub.s32 6, %v1923
  %v1925 = vrot.slane %v873, %v1924
  %v1926 = vlaneseq
  %v1927 = vshrl.u32 %v1926, 7
  %v1928 = vsub.s32 7, %v1927
  %v1929 = vrot.slane %v873, %v1928
  %v1930 = vcombine.low %v909, %v913
  %v1931 = vcombine.low %v917, %v921
  %v1932 = vcombine.low %v925, %v929
  %v1933 = vcombine.low %v933, %v937
  %v1935 = vunpack.c.l.s4 1966171168
  %v1936 = vunpack.c.0.s8 %v1935
  %v1937 = vlaneseq
  %v1938 = vshrl.u32 %v1937, 7
  %v1939 = vsub.s32 %v1936, %v1938
  %v1940 = vrot.slane %v1930, %v1939
  %v1942 = vunpack.c.l.s4 1966171168
  %v1943 = vunpack.c.0.s8 %v1942
  %v1944 = vlaneseq
  %v1945 = vshrl.u32 %v1944, 7
  %v1946 = vsub.s32 %v1943, %v1945
  %v1947 = vrot.slane %v1931, %v1946
  %v1949 = vunpack.c.l.s4 1966171168
  %v1950 = vunpack.c.0.s8 %v1949
  %v1951 = vlaneseq
  %v1952 = vshrl.u32 %v1951, 7
  %v1953 = vsub.s32 %v1950, %v1952
  %v1954 = vrot.slane %v1932, %v1953
  %v1956 = vunpack.c.l.s4 1966171168
  %v1957 = vunpack.c.0.s8 %v1956
  %v1958 = vlaneseq
  %v1959 = vshrl.u32 %v1958, 7
  %v1960 = vsub.s32 %v1957, %v1959
  %v1961 = vrot.slane %v1933, %v1960
  %v1962 = vcombine.low %v1940, %v1947
  %v1963 = vcombine.low %v1954, %v1961
  %v1965 = vunpack.c.l.s4 1966171168
  %v1966 = vunpack.c.0.s8 %v1965
  %v1967 = vlaneseq
  %v1968 = vshrl.u32 %v1967, 7
  %v1969 = vsub.s32 %v1966, %v1968
  %v1970 = vrot.slane %v1962, %v1969
  %v1972 = vunpack.c.l.s4 1966171168
  %v1973 = vunpack.c.0.s8 %v1972
  %v1974 = vlaneseq
  %v1975 = vshrl.u32 %v1974, 7
  %v1976 = vsub.s32 %v1973, %v1975
  %v1977 = vrot.slane %v1963, %v1976
  %v1978 = vcombine.low %v1970, %v1977
  %v1979 = vcombine.low %v941, %v945
  %v1980 = vcombine.low %v949, %v953
  %v1981 = vcombine.low %v957, %v961
  %v1982 = vcombine.low %v965, %v969
  %v1984 = vunpack.c.l.s4 1966171168
  %v1985 = vunpack.c.0.s8 %v1984
  %v1986 = vlaneseq
  %v1987 = vshrl.u32 %v1986, 7
  %v1988 = vsub.s32 %v1985, %v1987
  %v1989 = vrot.slane %v1979, %v1988
  %v1991 = vunpack.c.l.s4 1966171168
  %v1992 = vunpack.c.0.s8 %v1991
  %v1993 = vlaneseq
  %v1994 = vshrl.u32 %v1993, 7
  %v1995 = vsub.s32 %v1992, %v1994
  %v1996 = vrot.slane %v1980, %v1995
  %v1998 = vunpack.c.l.s4 1966171168
  %v1999 = vunpack.c.0.s8 %v1998
  %v2000 = vlaneseq
  %v2001 = vshrl.u32 %v2000, 7
  %v2002 = vsub.s32 %v1999, %v2001
  %v2003 = vrot.slane %v1981, %v2002
  %v2005 = vunpack.c.l.s4 1966171168
  %v2006 = vunpack.c.0.s8 %v2005
  %v2007 = vlaneseq
  %v2008 = vshrl.u32 %v2007, 7
  %v2009 = vsub.s32 %v2006, %v2008
  %v2010 = vrot.slane %v1982, %v2009
  %v2011 = vcombine.low %v1989, %v1996
  %v2012 = vcombine.low %v2003, %v2010
  %v2014 = vunpack.c.l.s4 1966171168
  %v2015 = vunpack.c.0.s8 %v2014
  %v2016 = vlaneseq
  %v2017 = vshrl.u32 %v2016, 7
  %v2018 = vsub.s32 %v2015, %v2017
  %v2019 = vrot.slane %v2011, %v2018
  %v2021 = vunpack.c.l.s4 1966171168
  %v2022 = vunpack.c.0.s8 %v2021
  %v2023 = vlaneseq
  %v2024 = vshrl.u32 %v2023, 7
  %v2025 = vsub.s32 %v2022, %v2024
  %v2026 = vrot.slane %v2012, %v2025
  %v2027 = vcombine.low %v2019, %v2026
  %v2028 = vcombine.low %v973, %v977
  %v2029 = vcombine.low %v981, %v985
  %v2030 = vcombine.low %v989, %v993
  %v2031 = vcombine.low %v997, %v1001
  %v2033 = vunpack.c.l.s4 1966171168
  %v2034 = vunpack.c.0.s8 %v2033
  %v2035 = vlaneseq
  %v2036 = vshrl.u32 %v2035, 7
  %v2037 = vsub.s32 %v2034, %v2036
  %v2038 = vrot.slane %v2028, %v2037
  %v2040 = vunpack.c.l.s4 1966171168
  %v2041 = vunpack.c.0.s8 %v2040
  %v2042 = vlaneseq
  %v2043 = vshrl.u32 %v2042, 7
  %v2044 = vsub.s32 %v2041, %v2043
  %v2045 = vrot.slane %v2029, %v2044
  %v2047 = vunpack.c.l.s4 1966171168
  %v2048 = vunpack.c.0.s8 %v2047
  %v2049 = vlaneseq
  %v2050 = vshrl.u32 %v2049, 7
  %v2051 = vsub.s32 %v2048, %v2050
  %v2052 = vrot.slane %v2030, %v2051
  %v2054 = vunpack.c.l.s4 1966171168
  %v2055 = vunpack.c.0.s8 %v2054
  %v2056 = vlaneseq
  %v2057 = vshrl.u32 %v2056, 7
  %v2058 = vsub.s32 %v2055, %v2057
  %v2059 = vrot.slane %v2031, %v2058
  %v2060 = vcombine.low %v2038, %v2045
  %v2061 = vcombine.low %v2052, %v2059
  %v2063 = vunpack.c.l.s4 1966171168
  %v2064 = vunpack.c.0.s8 %v2063
  %v2065 = vlaneseq
  %v2066 = vshrl.u32 %v2065, 7
  %v2067 = vsub.s32 %v2064, %v2066
  %v2068 = vrot.slane %v2060, %v2067
  %v2070 = vunpack.c.l.s4 1966171168
  %v2071 = vunpack.c.0.s8 %v2070
  %v2072 = vlaneseq
  %v2073 = vshrl.u32 %v2072, 7
  %v2074 = vsub.s32 %v2071, %v2073
  %v2075 = vrot.slane %v2061, %v2074
  %v2076 = vcombine.low %v2068, %v2075
  %v2077 = vcombine.low %v1005, %v1009
  %v2078 = vcombine.low %v1013, %v1017
  %v2079 = vcombine.low %v1021, %v1025
  %v2080 = vcombine.low %v1029, %v1033
  %v2082 = vunpack.c.l.s4 1966171168
  %v2083 = vunpack.c.0.s8 %v2082
  %v2084 = vlaneseq
  %v2085 = vshrl.u32 %v2084, 7
  %v2086 = vsub.s32 %v2083, %v2085
  %v2087 = vrot.slane %v2077, %v2086
  %v2089 = vunpack.c.l.s4 1966171168
  %v2090 = vunpack.c.0.s8 %v2089
  %v2091 = vlaneseq
  %v2092 = vshrl.u32 %v2091, 7
  %v2093 = vsub.s32 %v2090, %v2092
  %v2094 = vrot.slane %v2078, %v2093
  %v2096 = vunpack.c.l.s4 1966171168
  %v2097 = vunpack.c.0.s8 %v2096
  %v2098 = vlaneseq
  %v2099 = vshrl.u32 %v2098, 7
  %v2100 = vsub.s32 %v2097, %v2099
  %v2101 = vrot.slane %v2079, %v2100
  %v2103 = vunpack.c.l.s4 1966171168
  %v2104 = vunpack.c.0.s8 %v2103
  %v2105 = vlaneseq
  %v2106 = vshrl.u32 %v2105, 7
  %v2107 = vsub.s32 %v2104, %v2106
  %v2108 = vrot.slane %v2080, %v2107
  %v2109 = vcombine.low %v2087, %v2094
  %v2110 = vcombine.low %v2101, %v2108
  %v2112 = vunpack.c.l.s4 1966171168
  %v2113 = vunpack.c.0.s8 %v2112
  %v2114 = vlaneseq
  %v2115 = vshrl.u32 %v2114, 7
  %v2116 = vsub.s32 %v2113, %v2115
  %v2117 = vrot.slane %v2109, %v2116
  %v2119 = vunpack.c.l.s4 1966171168
  %v2120 = vunpack.c.0.s8 %v2119
  %v2121 = vlaneseq
  %v2122 = vshrl.u32 %v2121, 7
  %v2123 = vsub.s32 %v2120, %v2122
  %v2124 = vrot.slane %v2110, %v2123
  %v2125 = vcombine.low %v2117, %v2124
  %v2126 = vcombine.low %v1037, %v1041
  %v2127 = vcombine.low %v1045, %v1049
  %v2128 = vcombine.low %v1053, %v1057
  %v2129 = vcombine.low %v1061, %v1065
  %v2131 = vunpack.c.l.s4 1966171168
  %v2132 = vunpack.c.0.s8 %v2131
  %v2133 = vlaneseq
  %v2134 = vshrl.u32 %v2133, 7
  %v2135 = vsub.s32 %v2132, %v2134
  %v2136 = vrot.slane %v2126, %v2135
  %v2138 = vunpack.c.l.s4 1966171168
  %v2139 = vunpack.c.0.s8 %v2138
  %v2140 = vlaneseq
  %v2141 = vshrl.u32 %v2140, 7
  %v2142 = vsub.s32 %v2139, %v2141
  %v2143 = vrot.slane %v2127, %v2142
  %v2145 = vunpack.c.l.s4 1966171168
  %v2146 = vunpack.c.0.s8 %v2145
  %v2147 = vlaneseq
  %v2148 = vshrl.u32 %v2147, 7
  %v2149 = vsub.s32 %v2146, %v2148
  %v2150 = vrot.slane %v2128, %v2149
  %v2152 = vunpack.c.l.s4 1966171168
  %v2153 = vunpack.c.0.s8 %v2152
  %v2154 = vlaneseq
  %v2155 = vshrl.u32 %v2154, 7
  %v2156 = vsub.s32 %v2153, %v2155
  %v2157 = vrot.slane %v2129, %v2156
  %v2158 = vcombine.low %v2136, %v2143
  %v2159 = vcombine.low %v2150, %v2157
  %v2161 = vunpack.c.l.s4 1966171168
  %v2162 = vunpack.c.0.s8 %v2161
  %v2163 = vlaneseq
  %v2164 = vshrl.u32 %v2163, 7
  %v2165 = vsub.s32 %v2162, %v2164
  %v2166 = vrot.slane %v2158, %v2165
  %v2168 = vunpack.c.l.s4 1966171168
  %v2169 = vunpack.c.0.s8 %v2168
  %v2170 = vlaneseq
  %v2171 = vshrl.u32 %v2170, 7
  %v2172 = vsub.s32 %v2169, %v2171
  %v2173 = vrot.slane %v2159, %v2172
  %v2174 = vcombine.low %v2166, %v2173
  %v2175 = vcombine.low %v1069, %v1073
  %v2176 = vcombine.low %v1077, %v1081
  %v2177 = vcombine.low %v1085, %v1089
  %v2178 = vcombine.low %v1093, %v1097
  %v2180 = vunpack.c.l.s4 1966171168
  %v2181 = vunpack.c.0.s8 %v2180
  %v2182 = vlaneseq
  %v2183 = vshrl.u32 %v2182, 7
  %v2184 = vsub.s32 %v2181, %v2183
  %v2185 = vrot.slane %v2175, %v2184
  %v2187 = vunpack.c.l.s4 1966171168
  %v2188 = vunpack.c.0.s8 %v2187
  %v2189 = vlaneseq
  %v2190 = vshrl.u32 %v2189, 7
  %v2191 = vsub.s32 %v2188, %v2190
  %v2192 = vrot.slane %v2176, %v2191
  %v2194 = vunpack.c.l.s4 1966171168
  %v2195 = vunpack.c.0.s8 %v2194
  %v2196 = vlaneseq
  %v2197 = vshrl.u32 %v2196, 7
  %v2198 = vsub.s32 %v2195, %v2197
  %v2199 = vrot.slane %v2177, %v2198
  %v2201 = vunpack.c.l.s4 1966171168
  %v2202 = vunpack.c.0.s8 %v2201
  %v2203 = vlaneseq
  %v2204 = vshrl.u32 %v2203, 7
  %v2205 = vsub.s32 %v2202, %v2204
  %v2206 = vrot.slane %v2178, %v2205
  %v2207 = vcombine.low %v2185, %v2192
  %v2208 = vcombine.low %v2199, %v2206
  %v2210 = vunpack.c.l.s4 1966171168
  %v2211 = vunpack.c.0.s8 %v2210
  %v2212 = vlaneseq
  %v2213 = vshrl.u32 %v2212, 7
  %v2214 = vsub.s32 %v2211, %v2213
  %v2215 = vrot.slane %v2207, %v2214
  %v2217 = vunpack.c.l.s4 1966171168
  %v2218 = vunpack.c.0.s8 %v2217
  %v2219 = vlaneseq
  %v2220 = vshrl.u32 %v2219, 7
  %v2221 = vsub.s32 %v2218, %v2220
  %v2222 = vrot.slane %v2208, %v2221
  %v2223 = vcombine.low %v2215, %v2222
  %v2224 = vcombine.low %v1101, %v1105
  %v2225 = vcombine.low %v1109, %v1113
  %v2226 = vcombine.low %v1117, %v1121
  %v2227 = vcombine.low %v1125, %v1129
  %v2229 = vunpack.c.l.s4 1966171168
  %v2230 = vunpack.c.0.s8 %v2229
  %v2231 = vlaneseq
  %v2232 = vshrl.u32 %v2231, 7
  %v2233 = vsub.s32 %v2230, %v2232
  %v2234 = vrot.slane %v2224, %v2233
  %v2236 = vunpack.c.l.s4 1966171168
  %v2237 = vunpack.c.0.s8 %v2236
  %v2238 = vlaneseq
  %v2239 = vshrl.u32 %v2238, 7
  %v2240 = vsub.s32 %v2237, %v2239
  %v2241 = vrot.slane %v2225, %v2240
  %v2243 = vunpack.c.l.s4 1966171168
  %v2244 = vunpack.c.0.s8 %v2243
  %v2245 = vlaneseq
  %v2246 = vshrl.u32 %v2245, 7
  %v2247 = vsub.s32 %v2244, %v2246
  %v2248 = vrot.slane %v2226, %v2247
  %v2250 = vunpack.c.l.s4 1966171168
  %v2251 = vunpack.c.0.s8 %v2250
  %v2252 = vlaneseq
  %v2253 = vshrl.u32 %v2252, 7
  %v2254 = vsub.s32 %v2251, %v2253
  %v2255 = vrot.slane %v2227, %v2254
  %v2256 = vcombine.low %v2234, %v2241
  %v2257 = vcombine.low %v2248, %v2255
  %v2259 = vunpack.c.l.s4 1966171168
  %v2260 = vunpack.c.0.s8 %v2259
  %v2261 = vlaneseq
  %v2262 = vshrl.u32 %v2261, 7
  %v2263 = vsub.s32 %v2260, %v2262
  %v2264 = vrot.slane %v2256, %v2263
  %v2266 = vunpack.c.l.s4 1966171168
  %v2267 = vunpack.c.0.s8 %v2266
  %v2268 = vlaneseq
  %v2269 = vshrl.u32 %v2268, 7
  %v2270 = vsub.s32 %v2267, %v2269
  %v2271 = vrot.slane %v2257, %v2270
  %v2272 = vcombine.low %v2264, %v2271
  %v2273 = vcombine.low %v1133, %v1137
  %v2274 = vcombine.low %v1141, %v1145
  %v2275 = vcombine.low %v1149, %v1153
  %v2276 = vcombine.low %v1157, %v1161
  %v2278 = vunpack.c.l.s4 1966171168
  %v2279 = vunpack.c.0.s8 %v2278
  %v2280 = vlaneseq
  %v2281 = vshrl.u32 %v2280, 7
  %v2282 = vsub.s32 %v2279, %v2281
  %v2283 = vrot.slane %v2273, %v2282
  %v2285 = vunpack.c.l.s4 1966171168
  %v2286 = vunpack.c.0.s8 %v2285
  %v2287 = vlaneseq
  %v2288 = vshrl.u32 %v2287, 7
  %v2289 = vsub.s32 %v2286, %v2288
  %v2290 = vrot.slane %v2274, %v2289
  %v2292 = vunpack.c.l.s4 1966171168
  %v2293 = vunpack.c.0.s8 %v2292
  %v2294 = vlaneseq
  %v2295 = vshrl.u32 %v2294, 7
  %v2296 = vsub.s32 %v2293, %v2295
  %v2297 = vrot.slane %v2275, %v2296
  %v2299 = vunpack.c.l.s4 1966171168
  %v2300 = vunpack.c.0.s8 %v2299
  %v2301 = vlaneseq
  %v2302 = vshrl.u32 %v2301, 7
  %v2303 = vsub.s32 %v2300, %v2302
  %v2304 = vrot.slane %v2276, %v2303
  %v2305 = vcombine.low %v2283, %v2290
  %v2306 = vcombine.low %v2297, %v2304
  %v2308 = vunpack.c.l.s4 1966171168
  %v2309 = vunpack.c.0.s8 %v2308
  %v2310 = vlaneseq
  %v2311 = vshrl.u32 %v2310, 7
  %v2312 = vsub.s32 %v2309, %v2311
  %v2313 = vrot.slane %v2305, %v2312
  %v2315 = vunpack.c.l.s4 1966171168
  %v2316 = vunpack.c.0.s8 %v2315
  %v2317 = vlaneseq
  %v2318 = vshrl.u32 %v2317, 7
  %v2319 = vsub.s32 %v2316, %v2318
  %v2320 = vrot.slane %v2306, %v2319
  %v2321 = vcombine.low %v2313, %v2320
  %v2322 = vcombine.low %v1165, %v1169
  %v2323 = vcombine.low %v1173, %v1177
  %v2324 = vcombine.low %v1181, %v1185
  %v2325 = vcombine.low %v1189, %v1193
  %v2327 = vunpack.c.l.s4 1966171168
  %v2328 = vunpack.c.0.s8 %v2327
  %v2329 = vlaneseq
  %v2330 = vshrl.u32 %v2329, 7
  %v2331 = vsub.s32 %v2328, %v2330
  %v2332 = vrot.slane %v2322, %v2331
  %v2334 = vunpack.c.l.s4 1966171168
  %v2335 = vunpack.c.0.s8 %v2334
  %v2336 = vlaneseq
  %v2337 = vshrl.u32 %v2336, 7
  %v2338 = vsub.s32 %v2335, %v2337
  %v2339 = vrot.slane %v2323, %v2338
  %v2341 = vunpack.c.l.s4 1966171168
  %v2342 = vunpack.c.0.s8 %v2341
  %v2343 = vlaneseq
  %v2344 = vshrl.u32 %v2343, 7
  %v2345 = vsub.s32 %v2342, %v2344
  %v2346 = vrot.slane %v2324, %v2345
  %v2348 = vunpack.c.l.s4 1966171168
  %v2349 = vunpack.c.0.s8 %v2348
  %v2350 = vlaneseq
  %v2351 = vshrl.u32 %v2350, 7
  %v2352 = vsub.s32 %v2349, %v2351
  %v2353 = vrot.slane %v2325, %v2352
  %v2354 = vcombine.low %v2332, %v2339
  %v2355 = vcombine.low %v2346, %v2353
  %v2357 = vunpack.c.l.s4 1966171168
  %v2358 = vunpack.c.0.s8 %v2357
  %v2359 = vlaneseq
  %v2360 = vshrl.u32 %v2359, 7
  %v2361 = vsub.s32 %v2358, %v2360
  %v2362 = vrot.slane %v2354, %v2361
  %v2364 = vunpack.c.l.s4 1966171168
  %v2365 = vunpack.c.0.s8 %v2364
  %v2366 = vlaneseq
  %v2367 = vshrl.u32 %v2366, 7
  %v2368 = vsub.s32 %v2365, %v2367
  %v2369 = vrot.slane %v2355, %v2368
  %v2370 = vcombine.low %v2362, %v2369
  %v2371 = vcombine.low %v1197, %v1201
  %v2372 = vcombine.low %v1205, %v1209
  %v2373 = vcombine.low %v1213, %v1217
  %v2374 = vcombine.low %v1221, %v1225
  %v2376 = vunpack.c.l.s4 1966171168
  %v2377 = vunpack.c.0.s8 %v2376
  %v2378 = vlaneseq
  %v2379 = vshrl.u32 %v2378, 7
  %v2380 = vsub.s32 %v2377, %v2379
  %v2381 = vrot.slane %v2371, %v2380
  %v2383 = vunpack.c.l.s4 1966171168
  %v2384 = vunpack.c.0.s8 %v2383
  %v2385 = vlaneseq
  %v2386 = vshrl.u32 %v2385, 7
  %v2387 = vsub.s32 %v2384, %v2386
  %v2388 = vrot.slane %v2372, %v2387
  %v2390 = vunpack.c.l.s4 1966171168
  %v2391 = vunpack.c.0.s8 %v2390
  %v2392 = vlaneseq
  %v2393 = vshrl.u32 %v2392, 7
  %v2394 = vsub.s32 %v2391, %v2393
  %v2395 = vrot.slane %v2373, %v2394
  %v2397 = vunpack.c.l.s4 1966171168
  %v2398 = vunpack.c.0.s8 %v2397
  %v2399 = vlaneseq
  %v2400 = vshrl.u32 %v2399, 7
  %v2401 = vsub.s32 %v2398, %v2400
  %v2402 = vrot.slane %v2374, %v2401
  %v2403 = vcombine.low %v2381, %v2388
  %v2404 = vcombine.low %v2395, %v2402
  %v2406 = vunpack.c.l.s4 1966171168
  %v2407 = vunpack.c.0.s8 %v2406
  %v2408 = vlaneseq
  %v2409 = vshrl.u32 %v2408, 7
  %v2410 = vsub.s32 %v2407, %v2409
  %v2411 = vrot.slane %v2403, %v2410
  %v2413 = vunpack.c.l.s4 1966171168
  %v2414 = vunpack.c.0.s8 %v2413
  %v2415 = vlaneseq
  %v2416 = vshrl.u32 %v2415, 7
  %v2417 = vsub.s32 %v2414, %v2416
  %v2418 = vrot.slane %v2404, %v2417
  %v2419 = vcombine.low %v2411, %v2418
  %v2420 = vcombine.low %v1229, %v1233
  %v2421 = vcombine.low %v1237, %v1241
  %v2422 = vcombine.low %v1245, %v1249
  %v2423 = vcombine.low %v1253, %v1257
  %v2425 = vunpack.c.l.s4 1966171168
  %v2426 = vunpack.c.0.s8 %v2425
  %v2427 = vlaneseq
  %v2428 = vshrl.u32 %v2427, 7
  %v2429 = vsub.s32 %v2426, %v2428
  %v2430 = vrot.slane %v2420, %v2429
  %v2432 = vunpack.c.l.s4 1966171168
  %v2433 = vunpack.c.0.s8 %v2432
  %v2434 = vlaneseq
  %v2435 = vshrl.u32 %v2434, 7
  %v2436 = vsub.s32 %v2433, %v2435
  %v2437 = vrot.slane %v2421, %v2436
  %v2439 = vunpack.c.l.s4 1966171168
  %v2440 = vunpack.c.0.s8 %v2439
  %v2441 = vlaneseq
  %v2442 = vshrl.u32 %v2441, 7
  %v2443 = vsub.s32 %v2440, %v2442
  %v2444 = vrot.slane %v2422, %v2443
  %v2446 = vunpack.c.l.s4 1966171168
  %v2447 = vunpack.c.0.s8 %v2446
  %v2448 = vlaneseq
  %v2449 = vshrl.u32 %v2448, 7
  %v2450 = vsub.s32 %v2447, %v2449
  %v2451 = vrot.slane %v2423, %v2450
  %v2452 = vcombine.low %v2430, %v2437
  %v2453 = vcombine.low %v2444, %v2451
  %v2455 = vunpack.c.l.s4 1966171168
  %v2456 = vunpack.c.0.s8 %v2455
  %v2457 = vlaneseq
  %v2458 = vshrl.u32 %v2457, 7
  %v2459 = vsub.s32 %v2456, %v2458
  %v2460 = vrot.slane %v2452, %v2459
  %v2462 = vunpack.c.l.s4 1966171168
  %v2463 = vunpack.c.0.s8 %v2462
  %v2464 = vlaneseq
  %v2465 = vshrl.u32 %v2464, 7
  %v2466 = vsub.s32 %v2463, %v2465
  %v2467 = vrot.slane %v2453, %v2466
  %v2468 = vcombine.low %v2460, %v2467
  %v2469 = vcombine.low %v1261, %v1265
  %v2470 = vcombine.low %v1269, %v1273
  %v2471 = vcombine.low %v1277, %v1281
  %v2472 = vcombine.low %v1285, %v1289
  %v2474 = vunpack.c.l.s4 1966171168
  %v2475 = vunpack.c.0.s8 %v2474
  %v2476 = vlaneseq
  %v2477 = vshrl.u32 %v2476, 7
  %v2478 = vsub.s32 %v2475, %v2477
  %v2479 = vrot.slane %v2469, %v2478
  %v2481 = vunpack.c.l.s4 1966171168
  %v2482 = vunpack.c.0.s8 %v2481
  %v2483 = vlaneseq
  %v2484 = vshrl.u32 %v2483, 7
  %v2485 = vsub.s32 %v2482, %v2484
  %v2486 = vrot.slane %v2470, %v2485
  %v2488 = vunpack.c.l.s4 1966171168
  %v2489 = vunpack.c.0.s8 %v2488
  %v2490 = vlaneseq
  %v2491 = vshrl.u32 %v2490, 7
  %v2492 = vsub.s32 %v2489, %v2491
  %v2493 = vrot.slane %v2471, %v2492
  %v2495 = vunpack.c.l.s4 1966171168
  %v2496 = vunpack.c.0.s8 %v2495
  %v2497 = vlaneseq
  %v2498 = vshrl.u32 %v2497, 7
  %v2499 = vsub.s32 %v2496, %v2498
  %v2500 = vrot.slane %v2472, %v2499
  %v2501 = vcombine.low %v2479, %v2486
  %v2502 = vcombine.low %v2493, %v2500
  %v2504 = vunpack.c.l.s4 1966171168
  %v2505 = vunpack.c.0.s8 %v2504
  %v2506 = vlaneseq
  %v2507 = vshrl.u32 %v2506, 7
  %v2508 = vsub.s32 %v2505, %v2507
  %v2509 = vrot.slane %v2501, %v2508
  %v2511 = vunpack.c.l.s4 1966171168
  %v2512 = vunpack.c.0.s8 %v2511
  %v2513 = vlaneseq
  %v2514 = vshrl.u32 %v2513, 7
  %v2515 = vsub.s32 %v2512, %v2514
  %v2516 = vrot.slane %v2502, %v2515
  %v2517 = vcombine.low %v2509, %v2516
  %v2518 = vcombine.low %v1293, %v1297
  %v2519 = vcombine.low %v1301, %v1305
  %v2520 = vcombine.low %v1309, %v1313
  %v2521 = vcombine.low %v1317, %v1321
  %v2523 = vunpack.c.l.s4 1966171168
  %v2524 = vunpack.c.0.s8 %v2523
  %v2525 = vlaneseq
  %v2526 = vshrl.u32 %v2525, 7
  %v2527 = vsub.s32 %v2524, %v2526
  %v2528 = vrot.slane %v2518, %v2527
  %v2530 = vunpack.c.l.s4 1966171168
  %v2531 = vunpack.c.0.s8 %v2530
  %v2532 = vlaneseq
  %v2533 = vshrl.u32 %v2532, 7
  %v2534 = vsub.s32 %v2531, %v2533
  %v2535 = vrot.slane %v2519, %v2534
  %v2537 = vunpack.c.l.s4 1966171168
  %v2538 = vunpack.c.0.s8 %v2537
  %v2539 = vlaneseq
  %v2540 = vshrl.u32 %v2539, 7
  %v2541 = vsub.s32 %v2538, %v2540
  %v2542 = vrot.slane %v2520, %v2541
  %v2544 = vunpack.c.l.s4 1966171168
  %v2545 = vunpack.c.0.s8 %v2544
  %v2546 = vlaneseq
  %v2547 = vshrl.u32 %v2546, 7
  %v2548 = vsub.s32 %v2545, %v2547
  %v2549 = vrot.slane %v2521, %v2548
  %v2550 = vcombine.low %v2528, %v2535
  %v2551 = vcombine.low %v2542, %v2549
  %v2553 = vunpack.c.l.s4 1966171168
  %v2554 = vunpack.c.0.s8 %v2553
  %v2555 = vlaneseq
  %v2556 = vshrl.u32 %v2555, 7
  %v2557 = vsub.s32 %v2554, %v2556
  %v2558 = vrot.slane %v2550, %v2557
  %v2560 = vunpack.c.l.s4 1966171168
  %v2561 = vunpack.c.0.s8 %v2560
  %v2562 = vlaneseq
  %v2563 = vshrl.u32 %v2562, 7
  %v2564 = vsub.s32 %v2561, %v2563
  %v2565 = vrot.slane %v2551, %v2564
  %v2566 = vcombine.low %v2558, %v2565
  %v2567 = vcombine.low %v1325, %v1329
  %v2568 = vcombine.low %v1333, %v1337
  %v2569 = vcombine.low %v1341, %v1345
  %v2570 = vcombine.low %v1349, %v1353
  %v2572 = vunpack.c.l.s4 1966171168
  %v2573 = vunpack.c.0.s8 %v2572
  %v2574 = vlaneseq
  %v2575 = vshrl.u32 %v2574, 7
  %v2576 = vsub.s32 %v2573, %v2575
  %v2577 = vrot.slane %v2567, %v2576
  %v2579 = vunpack.c.l.s4 1966171168
  %v2580 = vunpack.c.0.s8 %v2579
  %v2581 = vlaneseq
  %v2582 = vshrl.u32 %v2581, 7
  %v2583 = vsub.s32 %v2580, %v2582
  %v2584 = vrot.slane %v2568, %v2583
  %v2586 = vunpack.c.l.s4 1966171168
  %v2587 = vunpack.c.0.s8 %v2586
  %v2588 = vlaneseq
  %v2589 = vshrl.u32 %v2588, 7
  %v2590 = vsub.s32 %v2587, %v2589
  %v2591 = vrot.slane %v2569, %v2590
  %v2593 = vunpack.c.l.s4 1966171168
  %v2594 = vunpack.c.0.s8 %v2593
  %v2595 = vlaneseq
  %v2596 = vshrl.u32 %v2595, 7
  %v2597 = vsub.s32 %v2594, %v2596
  %v2598 = vrot.slane %v2570, %v2597
  %v2599 = vcombine.low %v2577, %v2584
  %v2600 = vcombine.low %v2591, %v2598
  %v2602 = vunpack.c.l.s4 1966171168
  %v2603 = vunpack.c.0.s8 %v2602
  %v2604 = vlaneseq
  %v2605 = vshrl.u32 %v2604, 7
  %v2606 = vsub.s32 %v2603, %v2605
  %v2607 = vrot.slane %v2599, %v2606
  %v2609 = vunpack.c.l.s4 1966171168
  %v2610 = vunpack.c.0.s8 %v2609
  %v2611 = vlaneseq
  %v2612 = vshrl.u32 %v2611, 7
  %v2613 = vsub.s32 %v2610, %v2612
  %v2614 = vrot.slane %v2600, %v2613
  %v2615 = vcombine.low %v2607, %v2614
  %v2616 = vcombine.low %v1357, %v1361
  %v2617 = vcombine.low %v1365, %v1369
  %v2618 = vcombine.low %v1373, %v1377
  %v2619 = vcombine.low %v1381, %v1385
  %v2621 = vunpack.c.l.s4 1966171168
  %v2622 = vunpack.c.0.s8 %v2621
  %v2623 = vlaneseq
  %v2624 = vshrl.u32 %v2623, 7
  %v2625 = vsub.s32 %v2622, %v2624
  %v2626 = vrot.slane %v2616, %v2625
  %v2628 = vunpack.c.l.s4 1966171168
  %v2629 = vunpack.c.0.s8 %v2628
  %v2630 = vlaneseq
  %v2631 = vshrl.u32 %v2630, 7
  %v2632 = vsub.s32 %v2629, %v2631
  %v2633 = vrot.slane %v2617, %v2632
  %v2635 = vunpack.c.l.s4 1966171168
  %v2636 = vunpack.c.0.s8 %v2635
  %v2637 = vlaneseq
  %v2638 = vshrl.u32 %v2637, 7
  %v2639 = vsub.s32 %v2636, %v2638
  %v2640 = vrot.slane %v2618, %v2639
  %v2642 = vunpack.c.l.s4 1966171168
  %v2643 = vunpack.c.0.s8 %v2642
  %v2644 = vlaneseq
  %v2645 = vshrl.u32 %v2644, 7
  %v2646 = vsub.s32 %v2643, %v2645
  %v2647 = vrot.slane %v2619, %v2646
  %v2648 = vcombine.low %v2626, %v2633
  %v2649 = vcombine.low %v2640, %v2647
  %v2651 = vunpack.c.l.s4 1966171168
  %v2652 = vunpack.c.0.s8 %v2651
  %v2653 = vlaneseq
  %v2654 = vshrl.u32 %v2653, 7
  %v2655 = vsub.s32 %v2652, %v2654
  %v2656 = vrot.slane %v2648, %v2655
  %v2658 = vunpack.c.l.s4 1966171168
  %v2659 = vunpack.c.0.s8 %v2658
  %v2660 = vlaneseq
  %v2661 = vshrl.u32 %v2660, 7
  %v2662 = vsub.s32 %v2659, %v2661
  %v2663 = vrot.slane %v2649, %v2662
  %v2664 = vcombine.low %v2656, %v2663
  %v2665 = vcombine.low %v1389, %v1393
  %v2666 = vcombine.low %v1397, %v1401
  %v2667 = vcombine.low %v1405, %v1409
  %v2668 = vcombine.low %v1413, %v1417
  %v2670 = vunpack.c.l.s4 1966171168
  %v2671 = vunpack.c.0.s8 %v2670
  %v2672 = vlaneseq
  %v2673 = vshrl.u32 %v2672, 7
  %v2674 = vsub.s32 %v2671, %v2673
  %v2675 = vrot.slane %v2665, %v2674
  %v2677 = vunpack.c.l.s4 1966171168
  %v2678 = vunpack.c.0.s8 %v2677
  %v2679 = vlaneseq
  %v2680 = vshrl.u32 %v2679, 7
  %v2681 = vsub.s32 %v2678, %v2680
  %v2682 = vrot.slane %v2666, %v2681
  %v2684 = vunpack.c.l.s4 1966171168
  %v2685 = vunpack.c.0.s8 %v2684
  %v2686 = vlaneseq
  %v2687 = vshrl.u32 %v2686, 7
  %v2688 = vsub.s32 %v2685, %v2687
  %v2689 = vrot.slane %v2667, %v2688
  %v2691 = vunpack.c.l.s4 1966171168
  %v2692 = vunpack.c.0.s8 %v2691
  %v2693 = vlaneseq
  %v2694 = vshrl.u32 %v2693, 7
  %v2695 = vsub.s32 %v2692, %v2694
  %v2696 = vrot.slane %v2668, %v2695
  %v2697 = vcombine.low %v2675, %v2682
  %v2698 = vcombine.low %v2689, %v2696
  %v2700 = vunpack.c.l.s4 1966171168
  %v2701 = vunpack.c.0.s8 %v2700
  %v2702 = vlaneseq
  %v2703 = vshrl.u32 %v2702, 7
  %v2704 = vsub.s32 %v2701, %v2703
  %v2705 = vrot.slane %v2697, %v2704
  %v2707 = vunpack.c.l.s4 1966171168
  %v2708 = vunpack.c.0.s8 %v2707
  %v2709 = vlaneseq
  %v2710 = vshrl.u32 %v2709, 7
  %v2711 = vsub.s32 %v2708, %v2710
  %v2712 = vrot.slane %v2698, %v2711
  %v2713 = vcombine.low %v2705, %v2712
  %v2714 = vcombine.low %v1421, %v1425
  %v2715 = vcombine.low %v1429, %v1433
  %v2716 = vcombine.low %v1437, %v1441
  %v2717 = vcombine.low %v1445, %v1449
  %v2719 = vunpack.c.l.s4 1966171168
  %v2720 = vunpack.c.0.s8 %v2719
  %v2721 = vlaneseq
  %v2722 = vshrl.u32 %v2721, 7
  %v2723 = vsub.s32 %v2720, %v2722
  %v2724 = vrot.slane %v2714, %v2723
  %v2726 = vunpack.c.l.s4 1966171168
  %v2727 = vunpack.c.0.s8 %v2726
  %v2728 = vlaneseq
  %v2729 = vshrl.u32 %v2728, 7
  %v2730 = vsub.s32 %v2727, %v2729
  %v2731 = vrot.slane %v2715, %v2730
  %v2733 = vunpack.c.l.s4 1966171168
  %v2734 = vunpack.c.0.s8 %v2733
  %v2735 = vlaneseq
  %v2736 = vshrl.u32 %v2735, 7
  %v2737 = vsub.s32 %v2734, %v2736
  %v2738 = vrot.slane %v2716, %v2737
  %v2740 = vunpack.c.l.s4 1966171168
  %v2741 = vunpack.c.0.s8 %v2740
  %v2742 = vlaneseq
  %v2743 = vshrl.u32 %v2742, 7
  %v2744 = vsub.s32 %v2741, %v2743
  %v2745 = vrot.slane %v2717, %v2744
  %v2746 = vcombine.low %v2724, %v2731
  %v2747 = vcombine.low %v2738, %v2745
  %v2749 = vunpack.c.l.s4 1966171168
  %v2750 = vunpack.c.0.s8 %v2749
  %v2751 = vlaneseq
  %v2752 = vshrl.u32 %v2751, 7
  %v2753 = vsub.s32 %v2750, %v2752
  %v2754 = vrot.slane %v2746, %v2753
  %v2756 = vunpack.c.l.s4 1966171168
  %v2757 = vunpack.c.0.s8 %v2756
  %v2758 = vlaneseq
  %v2759 = vshrl.u32 %v2758, 7
  %v2760 = vsub.s32 %v2757, %v2759
  %v2761 = vrot.slane %v2747, %v2760
  %v2762 = vcombine.low %v2754, %v2761
  %v2763 = vcombine.low %v1453, %v1457
  %v2764 = vcombine.low %v1461, %v1465
  %v2765 = vcombine.low %v1469, %v1473
  %v2766 = vcombine.low %v1477, %v1481
  %v2768 = vunpack.c.l.s4 1966171168
  %v2769 = vunpack.c.0.s8 %v2768
  %v2770 = vlaneseq
  %v2771 = vshrl.u32 %v2770, 7
  %v2772 = vsub.s32 %v2769, %v2771
  %v2773 = vrot.slane %v2763, %v2772
  %v2775 = vunpack.c.l.s4 1966171168
  %v2776 = vunpack.c.0.s8 %v2775
  %v2777 = vlaneseq
  %v2778 = vshrl.u32 %v2777, 7
  %v2779 = vsub.s32 %v2776, %v2778
  %v2780 = vrot.slane %v2764, %v2779
  %v2782 = vunpack.c.l.s4 1966171168
  %v2783 = vunpack.c.0.s8 %v2782
  %v2784 = vlaneseq
  %v2785 = vshrl.u32 %v2784, 7
  %v2786 = vsub.s32 %v2783, %v2785
  %v2787 = vrot.slane %v2765, %v2786
  %v2789 = vunpack.c.l.s4 1966171168
  %v2790 = vunpack.c.0.s8 %v2789
  %v2791 = vlaneseq
  %v2792 = vshrl.u32 %v2791, 7
  %v2793 = vsub.s32 %v2790, %v2792
  %v2794 = vrot.slane %v2766, %v2793
  %v2795 = vcombine.low %v2773, %v2780
  %v2796 = vcombine.low %v2787, %v2794
  %v2798 = vunpack.c.l.s4 1966171168
  %v2799 = vunpack.c.0.s8 %v2798
  %v2800 = vlaneseq
  %v2801 = vshrl.u32 %v2800, 7
  %v2802 = vsub.s32 %v2799, %v2801
  %v2803 = vrot.slane %v2795, %v2802
  %v2805 = vunpack.c.l.s4 1966171168
  %v2806 = vunpack.c.0.s8 %v2805
  %v2807 = vlaneseq
  %v2808 = vshrl.u32 %v2807, 7
  %v2809 = vsub.s32 %v2806, %v2808
  %v2810 = vrot.slane %v2796, %v2809
  %v2811 = vcombine.low %v2803, %v2810
  %v2812 = vcombine.low %v1485, %v1489
  %v2813 = vcombine.low %v1493, %v1497
  %v2814 = vcombine.low %v1501, %v1505
  %v2815 = vcombine.low %v1509, %v1513
  %v2817 = vunpack.c.l.s4 1966171168
  %v2818 = vunpack.c.0.s8 %v2817
  %v2819 = vlaneseq
  %v2820 = vshrl.u32 %v2819, 7
  %v2821 = vsub.s32 %v2818, %v2820
  %v2822 = vrot.slane %v2812, %v2821
  %v2824 = vunpack.c.l.s4 1966171168
  %v2825 = vunpack.c.0.s8 %v2824
  %v2826 = vlaneseq
  %v2827 = vshrl.u32 %v2826, 7
  %v2828 = vsub.s32 %v2825, %v2827
  %v2829 = vrot.slane %v2813, %v2828
  %v2831 = vunpack.c.l.s4 1966171168
  %v2832 = vunpack.c.0.s8 %v2831
  %v2833 = vlaneseq
  %v2834 = vshrl.u32 %v2833, 7
  %v2835 = vsub.s32 %v2832, %v2834
  %v2836 = vrot.slane %v2814, %v2835
  %v2838 = vunpack.c.l.s4 1966171168
  %v2839 = vunpack.c.0.s8 %v2838
  %v2840 = vlaneseq
  %v2841 = vshrl.u32 %v2840, 7
  %v2842 = vsub.s32 %v2839, %v2841
  %v2843 = vrot.slane %v2815, %v2842
  %v2844 = vcombine.low %v2822, %v2829
  %v2845 = vcombine.low %v2836, %v2843
  %v2847 = vunpack.c.l.s4 1966171168
  %v2848 = vunpack.c.0.s8 %v2847
  %v2849 = vlaneseq
  %v2850 = vshrl.u32 %v2849, 7
  %v2851 = vsub.s32 %v2848, %v2850
  %v2852 = vrot.slane %v2844, %v2851
  %v2854 = vunpack.c.l.s4 1966171168
  %v2855 = vunpack.c.0.s8 %v2854
  %v2856 = vlaneseq
  %v2857 = vshrl.u32 %v2856, 7
  %v2858 = vsub.s32 %v2855, %v2857
  %v2859 = vrot.slane %v2845, %v2858
  %v2860 = vcombine.low %v2852, %v2859
  %v2861 = vcombine.low %v1517, %v1521
  %v2862 = vcombine.low %v1525, %v1529
  %v2863 = vcombine.low %v1533, %v1537
  %v2864 = vcombine.low %v1541, %v1545
  %v2866 = vunpack.c.l.s4 1966171168
  %v2867 = vunpack.c.0.s8 %v2866
  %v2868 = vlaneseq
  %v2869 = vshrl.u32 %v2868, 7
  %v2870 = vsub.s32 %v2867, %v2869
  %v2871 = vrot.slane %v2861, %v2870
  %v2873 = vunpack.c.l.s4 1966171168
  %v2874 = vunpack.c.0.s8 %v2873
  %v2875 = vlaneseq
  %v2876 = vshrl.u32 %v2875, 7
  %v2877 = vsub.s32 %v2874, %v2876
  %v2878 = vrot.slane %v2862, %v2877
  %v2880 = vunpack.c.l.s4 1966171168
  %v2881 = vunpack.c.0.s8 %v2880
  %v2882 = vlaneseq
  %v2883 = vshrl.u32 %v2882, 7
  %v2884 = vsub.s32 %v2881, %v2883
  %v2885 = vrot.slane %v2863, %v2884
  %v2887 = vunpack.c.l.s4 1966171168
  %v2888 = vunpack.c.0.s8 %v2887
  %v2889 = vlaneseq
  %v2890 = vshrl.u32 %v2889, 7
  %v2891 = vsub.s32 %v2888, %v2890
  %v2892 = vrot.slane %v2864, %v2891
  %v2893 = vcombine.low %v2871, %v2878
  %v2894 = vcombine.low %v2885, %v2892
  %v2896 = vunpack.c.l.s4 1966171168
  %v2897 = vunpack.c.0.s8 %v2896
  %v2898 = vlaneseq
  %v2899 = vshrl.u32 %v2898, 7
  %v2900 = vsub.s32 %v2897, %v2899
  %v2901 = vrot.slane %v2893, %v2900
  %v2903 = vunpack.c.l.s4 1966171168
  %v2904 = vunpack.c.0.s8 %v2903
  %v2905 = vlaneseq
  %v2906 = vshrl.u32 %v2905, 7
  %v2907 = vsub.s32 %v2904, %v2906
  %v2908 = vrot.slane %v2894, %v2907
  %v2909 = vcombine.low %v2901, %v2908
  %v2910 = vcombine.low %v1549, %v1553
  %v2911 = vcombine.low %v1557, %v1561
  %v2912 = vcombine.low %v1565, %v1569
  %v2913 = vcombine.low %v1573, %v1577
  %v2915 = vunpack.c.l.s4 1966171168
  %v2916 = vunpack.c.0.s8 %v2915
  %v2917 = vlaneseq
  %v2918 = vshrl.u32 %v2917, 7
  %v2919 = vsub.s32 %v2916, %v2918
  %v2920 = vrot.slane %v2910, %v2919
  %v2922 = vunpack.c.l.s4 1966171168
  %v2923 = vunpack.c.0.s8 %v2922
  %v2924 = vlaneseq
  %v2925 = vshrl.u32 %v2924, 7
  %v2926 = vsub.s32 %v2923, %v2925
  %v2927 = vrot.slane %v2911, %v2926
  %v2929 = vunpack.c.l.s4 1966171168
  %v2930 = vunpack.c.0.s8 %v2929
  %v2931 = vlaneseq
  %v2932 = vshrl.u32 %v2931, 7
  %v2933 = vsub.s32 %v2930, %v2932
  %v2934 = vrot.slane %v2912, %v2933
  %v2936 = vunpack.c.l.s4 1966171168
  %v2937 = vunpack.c.0.s8 %v2936
  %v2938 = vlaneseq
  %v2939 = vshrl.u32 %v2938, 7
  %v2940 = vsub.s32 %v2937, %v2939
  %v2941 = vrot.slane %v2913, %v2940
  %v2942 = vcombine.low %v2920, %v2927
  %v2943 = vcombine.low %v2934, %v2941
  %v2945 = vunpack.c.l.s4 1966171168
  %v2946 = vunpack.c.0.s8 %v2945
  %v2947 = vlaneseq
  %v2948 = vshrl.u32 %v2947, 7
  %v2949 = vsub.s32 %v2946, %v2948
  %v2950 = vrot.slane %v2942, %v2949
  %v2952 = vunpack.c.l.s4 1966171168
  %v2953 = vunpack.c.0.s8 %v2952
  %v2954 = vlaneseq
  %v2955 = vshrl.u32 %v2954, 7
  %v2956 = vsub.s32 %v2953, %v2955
  %v2957 = vrot.slane %v2943, %v2956
  %v2958 = vcombine.low %v2950, %v2957
  %v2959 = vcombine.low %v1581, %v1585
  %v2960 = vcombine.low %v1589, %v1593
  %v2961 = vcombine.low %v1597, %v1601
  %v2962 = vcombine.low %v1605, %v1609
  %v2964 = vunpack.c.l.s4 1966171168
  %v2965 = vunpack.c.0.s8 %v2964
  %v2966 = vlaneseq
  %v2967 = vshrl.u32 %v2966, 7
  %v2968 = vsub.s32 %v2965, %v2967
  %v2969 = vrot.slane %v2959, %v2968
  %v2971 = vunpack.c.l.s4 1966171168
  %v2972 = vunpack.c.0.s8 %v2971
  %v2973 = vlaneseq
  %v2974 = vshrl.u32 %v2973, 7
  %v2975 = vsub.s32 %v2972, %v2974
  %v2976 = vrot.slane %v2960, %v2975
  %v2978 = vunpack.c.l.s4 1966171168
  %v2979 = vunpack.c.0.s8 %v2978
  %v2980 = vlaneseq
  %v2981 = vshrl.u32 %v2980, 7
  %v2982 = vsub.s32 %v2979, %v2981
  %v2983 = vrot.slane %v2961, %v2982
  %v2985 = vunpack.c.l.s4 1966171168
  %v2986 = vunpack.c.0.s8 %v2985
  %v2987 = vlaneseq
  %v2988 = vshrl.u32 %v2987, 7
  %v2989 = vsub.s32 %v2986, %v2988
  %v2990 = vrot.slane %v2962, %v2989
  %v2991 = vcombine.low %v2969, %v2976
  %v2992 = vcombine.low %v2983, %v2990
  %v2994 = vunpack.c.l.s4 1966171168
  %v2995 = vunpack.c.0.s8 %v2994
  %v2996 = vlaneseq
  %v2997 = vshrl.u32 %v2996, 7
  %v2998 = vsub.s32 %v2995, %v2997
  %v2999 = vrot.slane %v2991, %v2998
  %v3001 = vunpack.c.l.s4 1966171168
  %v3002 = vunpack.c.0.s8 %v3001
  %v3003 = vlaneseq
  %v3004 = vshrl.u32 %v3003, 7
  %v3005 = vsub.s32 %v3002, %v3004
  %v3006 = vrot.slane %v2992, %v3005
  %v3007 = vcombine.low %v2999, %v3006
  %v3008 = vcombine.low %v1613, %v1617
  %v3009 = vcombine.low %v1621, %v1625
  %v3010 = vcombine.low %v1629, %v1633
  %v3011 = vcombine.low %v1637, %v1641
  %v3013 = vunpack.c.l.s4 1966171168
  %v3014 = vunpack.c.0.s8 %v3013
  %v3015 = vlaneseq
  %v3016 = vshrl.u32 %v3015, 7
  %v3017 = vsub.s32 %v3014, %v3016
  %v3018 = vrot.slane %v3008, %v3017
  %v3020 = vunpack.c.l.s4 1966171168
  %v3021 = vunpack.c.0.s8 %v3020
  %v3022 = vlaneseq
  %v3023 = vshrl.u32 %v3022, 7
  %v3024 = vsub.s32 %v3021, %v3023
  %v3025 = vrot.slane %v3009, %v3024
  %v3027 = vunpack.c.l.s4 1966171168
  %v3028 = vunpack.c.0.s8 %v3027
  %v3029 = vlaneseq
  %v3030 = vshrl.u32 %v3029, 7
  %v3031 = vsub.s32 %v3028, %v3030
  %v3032 = vrot.slane %v3010, %v3031
  %v3034 = vunpack.c.l.s4 1966171168
  %v3035 = vunpack.c.0.s8 %v3034
  %v3036 = vlaneseq
  %v3037 = vshrl.u32 %v3036, 7
  %v3038 = vsub.s32 %v3035, %v3037
  %v3039 = vrot.slane %v3011, %v3038
  %v3040 = vcombine.low %v3018, %v3025
  %v3041 = vcombine.low %v3032, %v3039
  %v3043 = vunpack.c.l.s4 1966171168
  %v3044 = vunpack.c.0.s8 %v3043
  %v3045 = vlaneseq
  %v3046 = vshrl.u32 %v3045, 7
  %v3047 = vsub.s32 %v3044, %v3046
  %v3048 = vrot.slane %v3040, %v3047
  %v3050 = vunpack.c.l.s4 1966171168
  %v3051 = vunpack.c.0.s8 %v3050
  %v3052 = vlaneseq
  %v3053 = vshrl.u32 %v3052, 7
  %v3054 = vsub.s32 %v3051, %v3053
  %v3055 = vrot.slane %v3041, %v3054
  %v3056 = vcombine.low %v3048, %v3055
  %v3057 = vcombine.low %v1645, %v1649
  %v3058 = vcombine.low %v1653, %v1657
  %v3059 = vcombine.low %v1661, %v1665
  %v3060 = vcombine.low %v1669, %v1673
  %v3062 = vunpack.c.l.s4 1966171168
  %v3063 = vunpack.c.0.s8 %v3062
  %v3064 = vlaneseq
  %v3065 = vshrl.u32 %v3064, 7
  %v3066 = vsub.s32 %v3063, %v3065
  %v3067 = vrot.slane %v3057, %v3066
  %v3069 = vunpack.c.l.s4 1966171168
  %v3070 = vunpack.c.0.s8 %v3069
  %v3071 = vlaneseq
  %v3072 = vshrl.u32 %v3071, 7
  %v3073 = vsub.s32 %v3070, %v3072
  %v3074 = vrot.slane %v3058, %v3073
  %v3076 = vunpack.c.l.s4 1966171168
  %v3077 = vunpack.c.0.s8 %v3076
  %v3078 = vlaneseq
  %v3079 = vshrl.u32 %v3078, 7
  %v3080 = vsub.s32 %v3077, %v3079
  %v3081 = vrot.slane %v3059, %v3080
  %v3083 = vunpack.c.l.s4 1966171168
  %v3084 = vunpack.c.0.s8 %v3083
  %v3085 = vlaneseq
  %v3086 = vshrl.u32 %v3085, 7
  %v3087 = vsub.s32 %v3084, %v3086
  %v3088 = vrot.slane %v3060, %v3087
  %v3089 = vcombine.low %v3067, %v3074
  %v3090 = vcombine.low %v3081, %v3088
  %v3092 = vunpack.c.l.s4 1966171168
  %v3093 = vunpack.c.0.s8 %v3092
  %v3094 = vlaneseq
  %v3095 = vshrl.u32 %v3094, 7
  %v3096 = vsub.s32 %v3093, %v3095
  %v3097 = vrot.slane %v3089, %v3096
  %v3099 = vunpack.c.l.s4 1966171168
  %v3100 = vunpack.c.0.s8 %v3099
  %v3101 = vlaneseq
  %v3102 = vshrl.u32 %v3101, 7
  %v3103 = vsub.s32 %v3100, %v3102
  %v3104 = vrot.slane %v3090, %v3103
  %v3105 = vcombine.low %v3097, %v3104
  %v3106 = vcombine.low %v1677, %v1681
  %v3107 = vcombine.low %v1685, %v1689
  %v3108 = vcombine.low %v1693, %v1697
  %v3109 = vcombine.low %v1701, %v1705
  %v3111 = vunpack.c.l.s4 1966171168
  %v3112 = vunpack.c.0.s8 %v3111
  %v3113 = vlaneseq
  %v3114 = vshrl.u32 %v3113, 7
  %v3115 = vsub.s32 %v3112, %v3114
  %v3116 = vrot.slane %v3106, %v3115
  %v3118 = vunpack.c.l.s4 1966171168
  %v3119 = vunpack.c.0.s8 %v3118
  %v3120 = vlaneseq
  %v3121 = vshrl.u32 %v3120, 7
  %v3122 = vsub.s32 %v3119, %v3121
  %v3123 = vrot.slane %v3107, %v3122
  %v3125 = vunpack.c.l.s4 1966171168
  %v3126 = vunpack.c.0.s8 %v3125
  %v3127 = vlaneseq
  %v3128 = vshrl.u32 %v3127, 7
  %v3129 = vsub.s32 %v3126, %v3128
  %v3130 = vrot.slane %v3108, %v3129
  %v3132 = vunpack.c.l.s4 1966171168
  %v3133 = vunpack.c.0.s8 %v3132
  %v3134 = vlaneseq
  %v3135 = vshrl.u32 %v3134, 7
  %v3136 = vsub.s32 %v3133, %v3135
  %v3137 = vrot.slane %v3109, %v3136
  %v3138 = vcombine.low %v3116, %v3123
  %v3139 = vcombine.low %v3130, %v3137
  %v3141 = vunpack.c.l.s4 1966171168
  %v3142 = vunpack.c.0.s8 %v3141
  %v3143 = vlaneseq
  %v3144 = vshrl.u32 %v3143, 7
  %v3145 = vsub.s32 %v3142, %v3144
  %v3146 = vrot.slane %v3138, %v3145
  %v3148 = vunpack.c.l.s4 1966171168
  %v3149 = vunpack.c.0.s8 %v3148
  %v3150 = vlaneseq
  %v3151 = vshrl.u32 %v3150, 7
  %v3152 = vsub.s32 %v3149, %v3151
  %v3153 = vrot.slane %v3139, %v3152
  %v3154 = vcombine.low %v3146, %v3153
  %v3155 = vcombine.low %v1709, %v1713
  %v3156 = vcombine.low %v1717, %v1721
  %v3157 = vcombine.low %v1725, %v1729
  %v3158 = vcombine.low %v1733, %v1737
  %v3160 = vunpack.c.l.s4 1966171168
  %v3161 = vunpack.c.0.s8 %v3160
  %v3162 = vlaneseq
  %v3163 = vshrl.u32 %v3162, 7
  %v3164 = vsub.s32 %v3161, %v3163
  %v3165 = vrot.slane %v3155, %v3164
  %v3167 = vunpack.c.l.s4 1966171168
  %v3168 = vunpack.c.0.s8 %v3167
  %v3169 = vlaneseq
  %v3170 = vshrl.u32 %v3169, 7
  %v3171 = vsub.s32 %v3168, %v3170
  %v3172 = vrot.slane %v3156, %v3171
  %v3174 = vunpack.c.l.s4 1966171168
  %v3175 = vunpack.c.0.s8 %v3174
  %v3176 = vlaneseq
  %v3177 = vshrl.u32 %v3176, 7
  %v3178 = vsub.s32 %v3175, %v3177
  %v3179 = vrot.slane %v3157, %v3178
  %v3181 = vunpack.c.l.s4 1966171168
  %v3182 = vunpack.c.0.s8 %v3181
  %v3183 = vlaneseq
  %v3184 = vshrl.u32 %v3183, 7
  %v3185 = vsub.s32 %v3182, %v3184
  %v3186 = vrot.slane %v3158, %v3185
  %v3187 = vcombine.low %v3165, %v3172
  %v3188 = vcombine.low %v3179, %v3186
  %v3190 = vunpack.c.l.s4 1966171168
  %v3191 = vunpack.c.0.s8 %v3190
  %v3192 = vlaneseq
  %v3193 = vshrl.u32 %v3192, 7
  %v3194 = vsub.s32 %v3191, %v3193
  %v3195 = vrot.slane %v3187, %v3194
  %v3197 = vunpack.c.l.s4 1966171168
  %v3198 = vunpack.c.0.s8 %v3197
  %v3199 = vlaneseq
  %v3200 = vshrl.u32 %v3199, 7
  %v3201 = vsub.s32 %v3198, %v3200
  %v3202 = vrot.slane %v3188, %v3201
  %v3203 = vcombine.low %v3195, %v3202
  %v3204 = vcombine.low %v1741, %v1745
  %v3205 = vcombine.low %v1749, %v1753
  %v3206 = vcombine.low %v1757, %v1761
  %v3207 = vcombine.low %v1765, %v1769
  %v3209 = vunpack.c.l.s4 1966171168
  %v3210 = vunpack.c.0.s8 %v3209
  %v3211 = vlaneseq
  %v3212 = vshrl.u32 %v3211, 7
  %v3213 = vsub.s32 %v3210, %v3212
  %v3214 = vrot.slane %v3204, %v3213
  %v3216 = vunpack.c.l.s4 1966171168
  %v3217 = vunpack.c.0.s8 %v3216
  %v3218 = vlaneseq
  %v3219 = vshrl.u32 %v3218, 7
  %v3220 = vsub.s32 %v3217, %v3219
  %v3221 = vrot.slane %v3205, %v3220
  %v3223 = vunpack.c.l.s4 1966171168
  %v3224 = vunpack.c.0.s8 %v3223
  %v3225 = vlaneseq
  %v3226 = vshrl.u32 %v3225, 7
  %v3227 = vsub.s32 %v3224, %v3226
  %v3228 = vrot.slane %v3206, %v3227
  %v3230 = vunpack.c.l.s4 1966171168
  %v3231 = vunpack.c.0.s8 %v3230
  %v3232 = vlaneseq
  %v3233 = vshrl.u32 %v3232, 7
  %v3234 = vsub.s32 %v3231, %v3233
  %v3235 = vrot.slane %v3207, %v3234
  %v3236 = vcombine.low %v3214, %v3221
  %v3237 = vcombine.low %v3228, %v3235
  %v3239 = vunpack.c.l.s4 1966171168
  %v3240 = vunpack.c.0.s8 %v3239
  %v3241 = vlaneseq
  %v3242 = vshrl.u32 %v3241, 7
  %v3243 = vsub.s32 %v3240, %v3242
  %v3244 = vrot.slane %v3236, %v3243
  %v3246 = vunpack.c.l.s4 1966171168
  %v3247 = vunpack.c.0.s8 %v3246
  %v3248 = vlaneseq
  %v3249 = vshrl.u32 %v3248, 7
  %v3250 = vsub.s32 %v3247, %v3249
  %v3251 = vrot.slane %v3237, %v3250
  %v3252 = vcombine.low %v3244, %v3251
  %v3253 = vcombine.low %v1773, %v1777
  %v3254 = vcombine.low %v1781, %v1785
  %v3255 = vcombine.low %v1789, %v1793
  %v3256 = vcombine.low %v1797, %v1801
  %v3258 = vunpack.c.l.s4 1966171168
  %v3259 = vunpack.c.0.s8 %v3258
  %v3260 = vlaneseq
  %v3261 = vshrl.u32 %v3260, 7
  %v3262 = vsub.s32 %v3259, %v3261
  %v3263 = vrot.slane %v3253, %v3262
  %v3265 = vunpack.c.l.s4 1966171168
  %v3266 = vunpack.c.0.s8 %v3265
  %v3267 = vlaneseq
  %v3268 = vshrl.u32 %v3267, 7
  %v3269 = vsub.s32 %v3266, %v3268
  %v3270 = vrot.slane %v3254, %v3269
  %v3272 = vunpack.c.l.s4 1966171168
  %v3273 = vunpack.c.0.s8 %v3272
  %v3274 = vlaneseq
  %v3275 = vshrl.u32 %v3274, 7
  %v3276 = vsub.s32 %v3273, %v3275
  %v3277 = vrot.slane %v3255, %v3276
  %v3279 = vunpack.c.l.s4 1966171168
  %v3280 = vunpack.c.0.s8 %v3279
  %v3281 = vlaneseq
  %v3282 = vshrl.u32 %v3281, 7
  %v3283 = vsub.s32 %v3280, %v3282
  %v3284 = vrot.slane %v3256, %v3283
  %v3285 = vcombine.low %v3263, %v3270
  %v3286 = vcombine.low %v3277, %v3284
  %v3288 = vunpack.c.l.s4 1966171168
  %v3289 = vunpack.c.0.s8 %v3288
  %v3290 = vlaneseq
  %v3291 = vshrl.u32 %v3290, 7
  %v3292 = vsub.s32 %v3289, %v3291
  %v3293 = vrot.slane %v3285, %v3292
  %v3295 = vunpack.c.l.s4 1966171168
  %v3296 = vunpack.c.0.s8 %v3295
  %v3297 = vlaneseq
  %v3298 = vshrl.u32 %v3297, 7
  %v3299 = vsub.s32 %v3296, %v3298
  %v3300 = vrot.slane %v3286, %v3299
  %v3301 = vcombine.low %v3293, %v3300
  %v3302 = vcombine.low %v1805, %v1809
  %v3303 = vcombine.low %v1813, %v1817
  %v3304 = vcombine.low %v1821, %v1825
  %v3305 = vcombine.low %v1829, %v1833
  %v3307 = vunpack.c.l.s4 1966171168
  %v3308 = vunpack.c.0.s8 %v3307
  %v3309 = vlaneseq
  %v3310 = vshrl.u32 %v3309, 7
  %v3311 = vsub.s32 %v3308, %v3310
  %v3312 = vrot.slane %v3302, %v3311
  %v3314 = vunpack.c.l.s4 1966171168
  %v3315 = vunpack.c.0.s8 %v3314
  %v3316 = vlaneseq
  %v3317 = vshrl.u32 %v3316, 7
  %v3318 = vsub.s32 %v3315, %v3317
  %v3319 = vrot.slane %v3303, %v3318
  %v3321 = vunpack.c.l.s4 1966171168
  %v3322 = vunpack.c.0.s8 %v3321
  %v3323 = vlaneseq
  %v3324 = vshrl.u32 %v3323, 7
  %v3325 = vsub.s32 %v3322, %v3324
  %v3326 = vrot.slane %v3304, %v3325
  %v3328 = vunpack.c.l.s4 1966171168
  %v3329 = vunpack.c.0.s8 %v3328
  %v3330 = vlaneseq
  %v3331 = vshrl.u32 %v3330, 7
  %v3332 = vsub.s32 %v3329, %v3331
  %v3333 = vrot.slane %v3305, %v3332
  %v3334 = vcombine.low %v3312, %v3319
  %v3335 = vcombine.low %v3326, %v3333
  %v3337 = vunpack.c.l.s4 1966171168
  %v3338 = vunpack.c.0.s8 %v3337
  %v3339 = vlaneseq
  %v3340 = vshrl.u32 %v3339, 7
  %v3341 = vsub.s32 %v3338, %v3340
  %v3342 = vrot.slane %v3334, %v3341
  %v3344 = vunpack.c.l.s4 1966171168
  %v3345 = vunpack.c.0.s8 %v3344
  %v3346 = vlaneseq
  %v3347 = vshrl.u32 %v3346, 7
  %v3348 = vsub.s32 %v3345, %v3347
  %v3349 = vrot.slane %v3335, %v3348
  %v3350 = vcombine.low %v3342, %v3349
  %v3351 = vcombine.low %v1837, %v1841
  %v3352 = vcombine.low %v1845, %v1849
  %v3353 = vcombine.low %v1853, %v1857
  %v3354 = vcombine.low %v1861, %v1865
  %v3356 = vunpack.c.l.s4 1966171168
  %v3357 = vunpack.c.0.s8 %v3356
  %v3358 = vlaneseq
  %v3359 = vshrl.u32 %v3358, 7
  %v3360 = vsub.s32 %v3357, %v3359
  %v3361 = vrot.slane %v3351, %v3360
  %v3363 = vunpack.c.l.s4 1966171168
  %v3364 = vunpack.c.0.s8 %v3363
  %v3365 = vlaneseq
  %v3366 = vshrl.u32 %v3365, 7
  %v3367 = vsub.s32 %v3364, %v3366
  %v3368 = vrot.slane %v3352, %v3367
  %v3370 = vunpack.c.l.s4 1966171168
  %v3371 = vunpack.c.0.s8 %v3370
  %v3372 = vlaneseq
  %v3373 = vshrl.u32 %v3372, 7
  %v3374 = vsub.s32 %v3371, %v3373
  %v3375 = vrot.slane %v3353, %v3374
  %v3377 = vunpack.c.l.s4 1966171168
  %v3378 = vunpack.c.0.s8 %v3377
  %v3379 = vlaneseq
  %v3380 = vshrl.u32 %v3379, 7
  %v3381 = vsub.s32 %v3378, %v3380
  %v3382 = vrot.slane %v3354, %v3381
  %v3383 = vcombine.low %v3361, %v3368
  %v3384 = vcombine.low %v3375, %v3382
  %v3386 = vunpack.c.l.s4 1966171168
  %v3387 = vunpack.c.0.s8 %v3386
  %v3388 = vlaneseq
  %v3389 = vshrl.u32 %v3388, 7
  %v3390 = vsub.s32 %v3387, %v3389
  %v3391 = vrot.slane %v3383, %v3390
  %v3393 = vunpack.c.l.s4 1966171168
  %v3394 = vunpack.c.0.s8 %v3393
  %v3395 = vlaneseq
  %v3396 = vshrl.u32 %v3395, 7
  %v3397 = vsub.s32 %v3394, %v3396
  %v3398 = vrot.slane %v3384, %v3397
  %v3399 = vcombine.low %v3391, %v3398
  %v3400 = vcombine.low %v1869, %v1873
  %v3401 = vcombine.low %v1877, %v1881
  %v3402 = vcombine.low %v1885, %v1889
  %v3403 = vcombine.low %v1893, %v1897
  %v3405 = vunpack.c.l.s4 1966171168
  %v3406 = vunpack.c.0.s8 %v3405
  %v3407 = vlaneseq
  %v3408 = vshrl.u32 %v3407, 7
  %v3409 = vsub.s32 %v3406, %v3408
  %v3410 = vrot.slane %v3400, %v3409
  %v3412 = vunpack.c.l.s4 1966171168
  %v3413 = vunpack.c.0.s8 %v3412
  %v3414 = vlaneseq
  %v3415 = vshrl.u32 %v3414, 7
  %v3416 = vsub.s32 %v3413, %v3415
  %v3417 = vrot.slane %v3401, %v3416
  %v3419 = vunpack.c.l.s4 1966171168
  %v3420 = vunpack.c.0.s8 %v3419
  %v3421 = vlaneseq
  %v3422 = vshrl.u32 %v3421, 7
  %v3423 = vsub.s32 %v3420, %v3422
  %v3424 = vrot.slane %v3402, %v3423
  %v3426 = vunpack.c.l.s4 1966171168
  %v3427 = vunpack.c.0.s8 %v3426
  %v3428 = vlaneseq
  %v3429 = vshrl.u32 %v3428, 7
  %v3430 = vsub.s32 %v3427, %v3429
  %v3431 = vrot.slane %v3403, %v3430
  %v3432 = vcombine.low %v3410, %v3417
  %v3433 = vcombine.low %v3424, %v3431
  %v3435 = vunpack.c.l.s4 1966171168
  %v3436 = vunpack.c.0.s8 %v3435
  %v3437 = vlaneseq
  %v3438 = vshrl.u32 %v3437, 7
  %v3439 = vsub.s32 %v3436, %v3438
  %v3440 = vrot.slane %v3432, %v3439
  %v3442 = vunpack.c.l.s4 1966171168
  %v3443 = vunpack.c.0.s8 %v3442
  %v3444 = vlaneseq
  %v3445 = vshrl.u32 %v3444, 7
  %v3446 = vsub.s32 %v3443, %v3445
  %v3447 = vrot.slane %v3433, %v3446
  %v3448 = vcombine.low %v3440, %v3447
  %v3449 = vcombine.low %v1901, %v1905
  %v3450 = vcombine.low %v1909, %v1913
  %v3451 = vcombine.low %v1917, %v1921
  %v3452 = vcombine.low %v1925, %v1929
  %v3454 = vunpack.c.l.s4 1966171168
  %v3455 = vunpack.c.0.s8 %v3454
  %v3456 = vlaneseq
  %v3457 = vshrl.u32 %v3456, 7
  %v3458 = vsub.s32 %v3455, %v3457
  %v3459 = vrot.slane %v3449, %v3458
  %v3461 = vunpack.c.l.s4 1966171168
  %v3462 = vunpack.c.0.s8 %v3461
  %v3463 = vlaneseq
  %v3464 = vshrl.u32 %v3463, 7
  %v3465 = vsub.s32 %v3462, %v3464
  %v3466 = vrot.slane %v3450, %v3465
  %v3468 = vunpack.c.l.s4 1966171168
  %v3469 = vunpack.c.0.s8 %v3468
  %v3470 = vlaneseq
  %v3471 = vshrl.u32 %v3470, 7
  %v3472 = vsub.s32 %v3469, %v3471
  %v3473 = vrot.slane %v3451, %v3472
  %v3475 = vunpack.c.l.s4 1966171168
  %v3476 = vunpack.c.0.s8 %v3475
  %v3477 = vlaneseq
  %v3478 = vshrl.u32 %v3477, 7
  %v3479 = vsub.s32 %v3476, %v3478
  %v3480 = vrot.slane %v3452, %v3479
  %v3481 = vcombine.low %v3459, %v3466
  %v3482 = vcombine.low %v3473, %v3480
  %v3484 = vunpack.c.l.s4 1966171168
  %v3485 = vunpack.c.0.s8 %v3484
  %v3486 = vlaneseq
  %v3487 = vshrl.u32 %v3486, 7
  %v3488 = vsub.s32 %v3485, %v3487
  %v3489 = vrot.slane %v3481, %v3488
  %v3491 = vunpack.c.l.s4 1966171168
  %v3492 = vunpack.c.0.s8 %v3491
  %v3493 = vlaneseq
  %v3494 = vshrl.u32 %v3493, 7
  %v3495 = vsub.s32 %v3492, %v3494
  %v3496 = vrot.slane %v3482, %v3495
  %v3497 = vcombine.low %v3489, %v3496
  %3498 = vset.pattern.permute.xlu0 0
  %3499 = vperm.xlu0 %3498, %v1978
  %v3500 = vpop.permute.xlu0 %3499
  %3501 = vset.pattern.permute.xlu0 0
  %3502 = vperm.xlu0 %3501, %v2027
  %v3503 = vpop.permute.xlu0 %3502
  %3504 = vset.pattern.permute.xlu0 0
  %3505 = vperm.xlu0 %3504, %v2076
  %v3506 = vpop.permute.xlu0 %3505
  %3507 = vset.pattern.permute.xlu0 0
  %3508 = vperm.xlu0 %3507, %v2125
  %v3509 = vpop.permute.xlu0 %3508
  %3510 = vset.pattern.permute.xlu0 0
  %3511 = vperm.xlu0 %3510, %v2174
  %v3512 = vpop.permute.xlu0 %3511
  %3513 = vset.pattern.permute.xlu0 0
  %3514 = vperm.xlu0 %3513, %v2223
  %v3515 = vpop.permute.xlu0 %3514
  %3516 = vset.pattern.permute.xlu0 0
  %3517 = vperm.xlu0 %3516, %v2272
  %v3518 = vpop.permute.xlu0 %3517
  %3519 = vset.pattern.permute.xlu0 0
  %3520 = vperm.xlu0 %3519, %v2321
  %v3521 = vpop.permute.xlu0 %3520
  %3522 = vset.pattern.permute.xlu0 0
  %3523 = vperm.xlu0 %3522, %v2370
  %v3524 = vpop.permute.xlu0 %3523
  %3525 = vset.pattern.permute.xlu0 0
  %3526 = vperm.xlu0 %3525, %v2419
  %v3527 = vpop.permute.xlu0 %3526
  %3528 = vset.pattern.permute.xlu0 0
  %3529 = vperm.xlu0 %3528, %v2468
  %v3530 = vpop.permute.xlu0 %3529
  %3531 = vset.pattern.permute.xlu0 0
  %3532 = vperm.xlu0 %3531, %v2517
  %v3533 = vpop.permute.xlu0 %3532
  %3534 = vset.pattern.permute.xlu0 0
  %3535 = vperm.xlu0 %3534, %v2566
  %v3536 = vpop.permute.xlu0 %3535
  %3537 = vset.pattern.permute.xlu0 0
  %3538 = vperm.xlu0 %3537, %v2615
  %v3539 = vpop.permute.xlu0 %3538
  %3540 = vset.pattern.permute.xlu0 0
  %3541 = vperm.xlu0 %3540, %v2664
  %v3542 = vpop.permute.xlu0 %3541
  %3543 = vset.pattern.permute.xlu0 0
  %3544 = vperm.xlu0 %3543, %v2713
  %v3545 = vpop.permute.xlu0 %3544
  %3546 = vset.pattern.permute.xlu0 0
  %3547 = vperm.xlu0 %3546, %v2762
  %v3548 = vpop.permute.xlu0 %3547
  %3549 = vset.pattern.permute.xlu0 0
  %3550 = vperm.xlu0 %3549, %v2811
  %v3551 = vpop.permute.xlu0 %3550
  %3552 = vset.pattern.permute.xlu0 0
  %3553 = vperm.xlu0 %3552, %v2860
  %v3554 = vpop.permute.xlu0 %3553
  %3555 = vset.pattern.permute.xlu0 0
  %3556 = vperm.xlu0 %3555, %v2909
  %v3557 = vpop.permute.xlu0 %3556
  %3558 = vset.pattern.permute.xlu0 0
  %3559 = vperm.xlu0 %3558, %v2958
  %v3560 = vpop.permute.xlu0 %3559
  %3561 = vset.pattern.permute.xlu0 0
  %3562 = vperm.xlu0 %3561, %v3007
  %v3563 = vpop.permute.xlu0 %3562
  %3564 = vset.pattern.permute.xlu0 0
  %3565 = vperm.xlu0 %3564, %v3056
  %v3566 = vpop.permute.xlu0 %3565
  %3567 = vset.pattern.permute.xlu0 0
  %3568 = vperm.xlu0 %3567, %v3105
  %v3569 = vpop.permute.xlu0 %3568
  %3570 = vset.pattern.permute.xlu0 0
  %3571 = vperm.xlu0 %3570, %v3154
  %v3572 = vpop.permute.xlu0 %3571
  %3573 = vset.pattern.permute.xlu0 0
  %3574 = vperm.xlu0 %3573, %v3203
  %v3575 = vpop.permute.xlu0 %3574
  %3576 = vset.pattern.permute.xlu0 0
  %3577 = vperm.xlu0 %3576, %v3252
  %v3578 = vpop.permute.xlu0 %3577
  %3579 = vset.pattern.permute.xlu0 0
  %3580 = vperm.xlu0 %3579, %v3301
  %v3581 = vpop.permute.xlu0 %3580
  %3582 = vset.pattern.permute.xlu0 0
  %3583 = vperm.xlu0 %3582, %v3350
  %v3584 = vpop.permute.xlu0 %3583
  %3585 = vset.pattern.permute.xlu0 0
  %3586 = vperm.xlu0 %3585, %v3399
  %v3587 = vpop.permute.xlu0 %3586
  %3588 = vset.pattern.permute.xlu0 0
  %3589 = vperm.xlu0 %3588, %v3448
  %v3590 = vpop.permute.xlu0 %3589
  %3591 = vset.pattern.permute.xlu0 0
  %3592 = vperm.xlu0 %3591, %v3497
  %v3593 = vpop.permute.xlu0 %3592
  %v3594 = vlaneseq
  %v3595 = vand.u32 %v3594, 127
  %v3596 = vlaneseq
  %v3597 = vshrl.u32 %v3596, 7
  %v3598 = vsub.s32 %v3595, %v3597
  %v3599 = vrot.slane %v3500, %v3598
  %v3600 = vadd.s32 %v3595, 4294967288
  %v3601 = vlaneseq
  %v3602 = vshrl.u32 %v3601, 7
  %v3603 = vsub.s32 %v3600, %v3602
  %v3604 = vrot.slane %v3503, %v3603
  %vm3605 = vcmask 130112
  %v3606 = vsel %vm3605, %v3604, %v3599
  %v3607 = vadd.s32 %v3595, 4294967280
  %v3608 = vlaneseq
  %v3609 = vshrl.u32 %v3608, 7
  %v3610 = vsub.s32 %v3607, %v3609
  %v3611 = vrot.slane %v3506, %v3610
  %vm3612 = vcmask 195712
  %v3613 = vsel %vm3612, %v3611, %v3606
  %v3614 = vadd.s32 %v3595, 4294967272
  %v3615 = vlaneseq
  %v3616 = vshrl.u32 %v3615, 7
  %v3617 = vsub.s32 %v3614, %v3616
  %v3618 = vrot.slane %v3509, %v3617
  %vm3619 = vcmask 261312
  %v3620 = vsel %vm3619, %v3618, %v3613
  %v3621 = vadd.s32 %v3595, 4294967264
  %v3622 = vlaneseq
  %v3623 = vshrl.u32 %v3622, 7
  %v3624 = vsub.s32 %v3621, %v3623
  %v3625 = vrot.slane %v3512, %v3624
  %vm3626 = vcmask 326912
  %v3627 = vsel %vm3626, %v3625, %v3620
  %v3628 = vadd.s32 %v3595, 4294967256
  %v3629 = vlaneseq
  %v3630 = vshrl.u32 %v3629, 7
  %v3631 = vsub.s32 %v3628, %v3630
  %v3632 = vrot.slane %v3515, %v3631
  %vm3633 = vcmask 392512
  %v3634 = vsel %vm3633, %v3632, %v3627
  %v3635 = vadd.s32 %v3595, 4294967248
  %v3636 = vlaneseq
  %v3637 = vshrl.u32 %v3636, 7
  %v3638 = vsub.s32 %v3635, %v3637
  %v3639 = vrot.slane %v3518, %v3638
  %vm3640 = vcmask 458112
  %v3641 = vsel %vm3640, %v3639, %v3634
  %v3642 = vadd.s32 %v3595, 4294967240
  %v3643 = vlaneseq
  %v3644 = vshrl.u32 %v3643, 7
  %v3645 = vsub.s32 %v3642, %v3644
  %v3646 = vrot.slane %v3521, %v3645
  %vm3647 = vcmask 523712
  %v3648 = vsel %vm3647, %v3646, %v3641
  %v3649 = vadd.s32 %v3595, 4294967232
  %v3650 = vlaneseq
  %v3651 = vshrl.u32 %v3650, 7
  %v3652 = vsub.s32 %v3649, %v3651
  %v3653 = vrot.slane %v3524, %v3652
  %vm3654 = vcmask 589312
  %v3655 = vsel %vm3654, %v3653, %v3648
  %v3656 = vadd.s32 %v3595, 4294967224
  %v3657 = vlaneseq
  %v3658 = vshrl.u32 %v3657, 7
  %v3659 = vsub.s32 %v3656, %v3658
  %v3660 = vrot.slane %v3527, %v3659
  %vm3661 = vcmask 654912
  %v3662 = vsel %vm3661, %v3660, %v3655
  %v3663 = vadd.s32 %v3595, 4294967216
  %v3664 = vlaneseq
  %v3665 = vshrl.u32 %v3664, 7
  %v3666 = vsub.s32 %v3663, %v3665
  %v3667 = vrot.slane %v3530, %v3666
  %vm3668 = vcmask 720512
  %v3669 = vsel %vm3668, %v3667, %v3662
  %v3670 = vadd.s32 %v3595, 4294967208
  %v3671 = vlaneseq
  %v3672 = vshrl.u32 %v3671, 7
  %v3673 = vsub.s32 %v3670, %v3672
  %v3674 = vrot.slane %v3533, %v3673
  %vm3675 = vcmask 786112
  %v3676 = vsel %vm3675, %v3674, %v3669
  %v3677 = vadd.s32 %v3595, 4294967200
  %v3678 = vlaneseq
  %v3679 = vshrl.u32 %v3678, 7
  %v3680 = vsub.s32 %v3677, %v3679
  %v3681 = vrot.slane %v3536, %v3680
  %vm3682 = vcmask 851712
  %v3683 = vsel %vm3682, %v3681, %v3676
  %v3684 = vadd.s32 %v3595, 4294967192
  %v3685 = vlaneseq
  %v3686 = vshrl.u32 %v3685, 7
  %v3687 = vsub.s32 %v3684, %v3686
  %v3688 = vrot.slane %v3539, %v3687
  %vm3689 = vcmask 917312
  %v3690 = vsel %vm3689, %v3688, %v3683
  %v3691 = vadd.s32 %v3595, 4294967184
  %v3692 = vlaneseq
  %v3693 = vshrl.u32 %v3692, 7
  %v3694 = vsub.s32 %v3691, %v3693
  %v3695 = vrot.slane %v3542, %v3694
  %vm3696 = vcmask 982912
  %v3697 = vsel %vm3696, %v3695, %v3690
  %v3698 = vadd.s32 %v3595, 4294967176
  %v3699 = vlaneseq
  %v3700 = vshrl.u32 %v3699, 7
  %v3701 = vsub.s32 %v3698, %v3700
  %v3702 = vrot.slane %v3545, %v3701
  %vm3703 = vcmask 1048512
  %v3704 = vsel %vm3703, %v3702, %v3697
  %v3705 = vlaneseq
  %v3706 = vshrl.u32 %v3705, 7
  %v3707 = vsub.s32 %v3595, %v3706
  %v3708 = vrot.slane %v3548, %v3707
  %v3709 = vlaneseq
  %v3710 = vshrl.u32 %v3709, 7
  %v3711 = vsub.s32 %v3600, %v3710
  %v3712 = vrot.slane %v3551, %v3711
  %v3713 = vsel %vm3605, %v3712, %v3708
  %v3714 = vlaneseq
  %v3715 = vshrl.u32 %v3714, 7
  %v3716 = vsub.s32 %v3607, %v3715
  %v3717 = vrot.slane %v3554, %v3716
  %v3718 = vsel %vm3612, %v3717, %v3713
  %v3719 = vlaneseq
  %v3720 = vshrl.u32 %v3719, 7
  %v3721 = vsub.s32 %v3614, %v3720
  %v3722 = vrot.slane %v3557, %v3721
  %v3723 = vsel %vm3619, %v3722, %v3718
  %v3724 = vlaneseq
  %v3725 = vshrl.u32 %v3724, 7
  %v3726 = vsub.s32 %v3621, %v3725
  %v3727 = vrot.slane %v3560, %v3726
  %v3728 = vsel %vm3626, %v3727, %v3723
  %v3729 = vlaneseq
  %v3730 = vshrl.u32 %v3729, 7
  %v3731 = vsub.s32 %v3628, %v3730
  %v3732 = vrot.slane %v3563, %v3731
  %v3733 = vsel %vm3633, %v3732, %v3728
  %v3734 = vlaneseq
  %v3735 = vshrl.u32 %v3734, 7
  %v3736 = vsub.s32 %v3635, %v3735
  %v3737 = vrot.slane %v3566, %v3736
  %v3738 = vsel %vm3640, %v3737, %v3733
  %v3739 = vlaneseq
  %v3740 = vshrl.u32 %v3739, 7
  %v3741 = vsub.s32 %v3642, %v3740
  %v3742 = vrot.slane %v3569, %v3741
  %v3743 = vsel %vm3647, %v3742, %v3738
  %v3744 = vlaneseq
  %v3745 = vshrl.u32 %v3744, 7
  %v3746 = vsub.s32 %v3649, %v3745
  %v3747 = vrot.slane %v3572, %v3746
  %v3748 = vsel %vm3654, %v3747, %v3743
  %v3749 = vlaneseq
  %v3750 = vshrl.u32 %v3749, 7
  %v3751 = vsub.s32 %v3656, %v3750
  %v3752 = vrot.slane %v3575, %v3751
  %v3753 = vsel %vm3661, %v3752, %v3748
  %v3754 = vlaneseq
  %v3755 = vshrl.u32 %v3754, 7
  %v3756 = vsub.s32 %v3663, %v3755
  %v3757 = vrot.slane %v3578, %v3756
  %v3758 = vsel %vm3668, %v3757, %v3753
  %v3759 = vlaneseq
  %v3760 = vshrl.u32 %v3759, 7
  %v3761 = vsub.s32 %v3670, %v3760
  %v3762 = vrot.slane %v3581, %v3761
  %v3763 = vsel %vm3675, %v3762, %v3758
  %v3764 = vlaneseq
  %v3765 = vshrl.u32 %v3764, 7
  %v3766 = vsub.s32 %v3677, %v3765
  %v3767 = vrot.slane %v3584, %v3766
  %v3768 = vsel %vm3682, %v3767, %v3763
  %v3769 = vlaneseq
  %v3770 = vshrl.u32 %v3769, 7
  %v3771 = vsub.s32 %v3684, %v3770
  %v3772 = vrot.slane %v3587, %v3771
  %v3773 = vsel %vm3689, %v3772, %v3768
  %v3774 = vlaneseq
  %v3775 = vshrl.u32 %v3774, 7
  %v3776 = vsub.s32 %v3691, %v3775
  %v3777 = vrot.slane %v3590, %v3776
  %v3778 = vsel %vm3696, %v3777, %v3773
  %v3779 = vlaneseq
  %v3780 = vshrl.u32 %v3779, 7
  %v3781 = vsub.s32 %v3698, %v3780
  %v3782 = vrot.slane %v3593, %v3781
  %v3783 = vsel %vm3703, %v3782, %v3778
  %v3784 = vcombine.low %v3704, %v3783
  %v3786 = vunpack.c.l.s4 1966171168
  %v3787 = vunpack.c.0.s8 %v3786
  %v3788 = vlaneseq
  %v3789 = vshrl.u32 %v3788, 7
  %v3790 = vsub.s32 %v3787, %v3789
  %v3791 = vrot.slane %v3784, %v3790
  %v3793 = vunpack.c.l.s4 1966171168
  %v3794 = vunpack.c.0.s8 %v3793
  %v3795 = vlaneseq
  %v3796 = vshrl.u32 %v3795, 7
  %v3797 = vsub.s32 %v3794, %v3796
  %v3798 = vrot.slane %v3791, %v3797
  %v3800 = vlaneseq
  %vm3801 = vcmp.ge.s32.totalorder %v3800, 0
  %vm3802 = vcmp.lt.s32.totalorder %v3800, 256
  %vm3803 = vmand %vm3801, %vm3802
  %3804 = vst.msk [vmem:[%s7] sm:$0x3] %vm3803, %v3798
  // Predicated region
  $region30: #{mlp_regressor_forward.1} parent=0 // pred_check
    _
  $region31: #{mlp_regressor_forward.1} parent=0 // pred_check_branch
    %3806 = sbr.rel (0) target = $region33
  $region32: #{mlp_regressor_forward.1} parent=0 // pred_region
    _
  $region33: #{mlp_regressor_forward.1} parent=0 // pred_fallthru
    _
  // Predicated region
  $region34: #{mlp_regressor_forward.1} parent=0 // pred_check
    _
  $region35: #{mlp_regressor_forward.1} parent=0 // pred_check_branch
    %3808 = sbr.rel (0) target = $region37
  $region36: #{mlp_regressor_forward.1} parent=0 // pred_region
    _
  $region37: #{mlp_regressor_forward.1} parent=0 // pred_fallthru
    _

</llo_original>
